<compile_context>
chip_gen: v7x
topology: tpu7x:2x2x1
jax: 0.10.0
libtpu: 0.0.40
codegen_flags: <defaults>
</compile_context>

<pallas_src>
import math
import numpy as np
import jax
import jax.numpy as jnp
from jax.experimental import pallas as pl
from jax.experimental.pallas import tpu as pltpu

# Full-precision (multi-pass) f32 MXU contractions in BOTH the Pallas kernel and
# the pure-JAX reference so the two are numerically comparable at tight tolerance.
jax.config.update("jax_default_matmul_precision", "highest")

# Small, deterministic problem sizes (module defaults scaled down).
LATENT_DIM = 32
CONDITION_DIM = 32
HIDDEN_DIM = 32                      # -> head hidden = 16
NUM_FEATURES = 6
BATCH = 8                            # fills the 8-sublane vreg dimension
LN_EPS = 1e-5

D_IN = LATENT_DIM + CONDITION_DIM    # 64
H = HIDDEN_DIM                       # 32
HH = HIDDEN_DIM // 2                 # 16
F = NUM_FEATURES                     # 6
GH = F * HH                          # 96  (fused head width)
OUT_PAD = 128                        # lane-dense output width

# Row offsets inside the single parameter slab (all multiples of 8).
R_W1A = 0                            # [LATENT_DIM, H]      W1 rows for z
R_W1B = R_W1A + LATENT_DIM           # [CONDITION_DIM, H]   W1 rows for condition
R_W2 = R_W1B + CONDITION_DIM         # [H, H]
R_HW1 = R_W2 + H                     # [H, GH]   fused head Linear1
R_HW1AVG = R_HW1 + H                 # [H, GH]   precomputed HW1 @ avg (grouped-LN mean)
R_A = R_HW1AVG + H                   # [GH, GH]  block-diag group-averaging matrix
R_HW2 = R_A + GH                     # [GH, OUT_PAD] block-diag head Linear2 (cols 0:F)
R_V = R_HW2 + GH                     # 16 rows of bias / LN vectors
M_ROWS = R_V + 16                    # 368

# Vector rows (within the R_V block).
(VR_B1, VR_G1, VR_BE1, VR_B2, VR_G2, VR_BE2,
 VR_HB1, VR_HG, VR_HBE, VR_HB2, VR_HB1AVG) = range(11)

_SQRT_HALF = 0.7071067811865476
_ERF_P = 0.3275911
_ERF_A = (0.254829592, -0.284496736, 1.421413741, -1.453152027, 1.061405429)


def _erf_poly(x):
    """Abramowitz-Stegun 7.1.26 erf approximation (|abs err| <= 1.5e-7).

    Uses only exp/abs/where/mul/add so it lowers cleanly inside Mosaic.
    """
    s = jnp.where(x < 0.0, -1.0, 1.0)
    a = jnp.abs(x)
    t = 1.0 / (1.0 + _ERF_P * a)
    a1, a2, a3, a4, a5 = _ERF_A
    poly = ((((a5 * t + a4) * t + a3) * t + a2) * t + a1) * t
    return s * (1.0 - poly * jnp.exp(-a * a))


def _gelu_kernel(h):
    # exact-erf GELU (torch.nn.GELU() default) via f32-accurate polynomial
    return 0.5 * h * (1.0 + _erf_poly(h * _SQRT_HALF))


def _gelu_ref(h):
    return 0.5 * h * (1.0 + jax.scipy.special.erf(h * _SQRT_HALF))


def _layernorm(h, gamma, beta):
    mu = jnp.mean(h, axis=-1, keepdims=True)
    var = jnp.mean(jnp.square(h - mu), axis=-1, keepdims=True)
    return (h - mu) * jax.lax.rsqrt(var + LN_EPS) * gamma + beta


def decoder_kernel(z_ref, c_ref, p_ref, out_ref):
    def vrow(i, n):
        return p_ref[R_V + i:R_V + i + 1, 0:n]          # [1, n] bias/LN vector row

    z = z_ref[...]                                       # [B, LATENT_DIM]
    c = c_ref[...]                                       # [B, CONDITION_DIM]

    # ---- shared encoder: (Linear -> LN -> GELU -> [Dropout=id]) x 2 ----
    # Concat folded in: W1 split into z-rows and condition-rows.
    h = (jnp.dot(z, p_ref[R_W1A:R_W1A + LATENT_DIM, 0:H],
                 preferred_element_type=jnp.float32)
         + jnp.dot(c, p_ref[R_W1B:R_W1B + CONDITION_DIM, 0:H],
                   preferred_element_type=jnp.float32)
         + vrow(VR_B1, H))
    h = _gelu_kernel(_layernorm(h, vrow(VR_G1, H), vrow(VR_BE1, H)))
    h = jnp.dot(h, p_ref[R_W2:R_W2 + H, 0:H],
                preferred_element_type=jnp.float32) + vrow(VR_B2, H)
    h = _gelu_kernel(_layernorm(h, vrow(VR_G2, H), vrow(VR_BE2, H)))     # [B, H]

    # ---- fused per-feature heads ----
    # hh and mu both depend ONLY on h -> their MXU pushes pipeline back-to-back.
    hh = jnp.dot(h, p_ref[R_HW1:R_HW1 + H, 0:GH],
                 preferred_element_type=jnp.float32) + vrow(VR_HB1, GH)          # [B, GH]
    mu = jnp.dot(h, p_ref[R_HW1AVG:R_HW1AVG + H, 0:GH],
                 preferred_element_type=jnp.float32) + vrow(VR_HB1AVG, GH)       # per-group mean

    # Grouped LayerNorm (per 16-lane head group); exact biased variance.
    d = hh - mu
    var = jnp.dot(d * d, p_ref[R_A:R_A + GH, 0:GH],
                  preferred_element_type=jnp.float32)
    hn = d * jax.lax.rsqrt(var + LN_EPS) * vrow(VR_HG, GH) + vrow(VR_HBE, GH)
    hg = _gelu_kernel(hn)                                                        # [B, GH]

    # All six head Linear(HH, 1) layers + concat as one block-diagonal matmul,
    # producing a lane-dense [B, OUT_PAD] slab (cols 0:F carry the features).
    out = jnp.dot(hg, p_ref[R_HW2:R_HW2 + GH, :],
                  preferred_element_type=jnp.float32) + vrow(VR_HB2, OUT_PAD)
    out_ref[...] = out


def masked_feature_decoder(z, condition, param_slab):
    """Returns the lane-dense [batch, 128] output slab; columns 0:NUM_FEATURES
    carry the features (slice / split in the consumer, not here)."""
    B = z.shape[0]
    return pl.pallas_call(
        decoder_kernel,
        in_specs=[pl.BlockSpec(memory_space=pltpu.MemorySpace.VMEM)] * 3,
        out_specs=pl.BlockSpec(memory_space=pltpu.MemorySpace.VMEM),
        out_shape=jax.ShapeDtypeStruct((B, OUT_PAD), jnp.float32),
        cost_estimate=pl.CostEstimate(flops=500_000, transcendentals=1_536,
                                      bytes_accessed=200_000),
        # TODO(synk): if batch ever grows beyond a few hundred rows, add a batch
        # grid with dimension_semantics=("parallel",) so v7x's second TensorCore
        # is used and the weight slab stays resident across grid steps.
    )(z.astype(jnp.float32), condition.astype(jnp.float32), param_slab)


def pack_params(p):
    """Pack all module parameters into ONE lane-dense f32 slab [M_ROWS, 128]."""
    m = np.zeros((M_ROWS, 128), np.float32)

    w1 = np.asarray(p["w1"], np.float32)                             # [D_IN, H]
    m[R_W1A:R_W1A + LATENT_DIM, 0:H] = w1[:LATENT_DIM]
    m[R_W1B:R_W1B + CONDITION_DIM, 0:H] = w1[LATENT_DIM:]
    m[R_W2:R_W2 + H, 0:H] = np.asarray(p["w2"], np.float32)

    # Fused head Linear1: [F, H, HH] -> [H, F*HH]
    hw1 = np.asarray(p["hw1"], np.float32)
    hw1f = np.transpose(hw1, (1, 0, 2)).reshape(H, GH)
    m[R_HW1:R_HW1 + H, 0:GH] = hw1f

    # Block-diagonal group-averaging matrix for the fused LayerNorm.
    avg = np.zeros((GH, GH), np.float64)
    for f in range(F):
        avg[f * HH:(f + 1) * HH, f * HH:(f + 1) * HH] = 1.0 / HH
    m[R_A:R_A + GH, 0:GH] = avg.astype(np.float32)

    # Precomputed mean path: HW1 @ avg and hb1 @ avg (done in f64 host-side).
    m[R_HW1AVG:R_HW1AVG + H, 0:GH] = (hw1f.astype(np.float64) @ avg).astype(np.float32)
    hb1f = np.asarray(p["hb1"], np.float32).reshape(GH)              # [F,HH] row-major

    # Block-diagonal head Linear2: column f holds head f's [HH] weights.
    hw2 = np.asarray(p["hw2"], np.float32)                           # [F, HH]
    for f in range(F):
        m[R_HW2 + f * HH:R_HW2 + (f + 1) * HH, f] = hw2[f]
    # (Columns F:128 of this block and of the bias row stay exactly zero so the
    #  padded output lanes are garbage-free.)

    m[R_V + VR_B1, 0:H] = np.asarray(p["b1"]).reshape(-1)
    m[R_V + VR_G1, 0:H] = np.asarray(p["g1"]).reshape(-1)
    m[R_V + VR_BE1, 0:H] = np.asarray(p["be1"]).reshape(-1)
    m[R_V + VR_B2, 0:H] = np.asarray(p["b2"]).reshape(-1)
    m[R_V + VR_G2, 0:H] = np.asarray(p["g2"]).reshape(-1)
    m[R_V + VR_BE2, 0:H] = np.asarray(p["be2"]).reshape(-1)
    m[R_V + VR_HB1, 0:GH] = hb1f
    m[R_V + VR_HG, 0:GH] = np.asarray(p["hg"]).reshape(-1)
    m[R_V + VR_HBE, 0:GH] = np.asarray(p["hbe"]).reshape(-1)
    m[R_V + VR_HB2, 0:F] = np.asarray(p["hb2"]).reshape(-1)
    m[R_V + VR_HB1AVG, 0:GH] = (hb1f.astype(np.float64) @ avg).astype(np.float32)
    return jnp.asarray(m)


def reference(z, condition, params):
    """Pure-JAX reference of the PyTorch forward (eval mode, exact erf GELU)."""
    x = jnp.concatenate([z, condition], axis=-1)
    h = x @ params["w1"] + params["b1"]
    h = _gelu_ref(_layernorm(h, params["g1"], params["be1"]))
    h = h @ params["w2"] + params["b2"]
    h = _gelu_ref(_layernorm(h, params["g2"], params["be2"]))
    outs = []
    for i in range(NUM_FEATURES):
        hi = h @ params["hw1"][i] + params["hb1"][i]
        hi = _gelu_ref(_layernorm(hi, params["hg"][i], params["hbe"][i]))
        outs.append(jnp.sum(hi * params["hw2"][i], axis=-1) + params["hb2"][0, i])
    return outs


def init_params(key):
    ks = jax.random.split(key, 2 + 2 * F + 8)

    def lin(k, fi, fo):
        # deterministic Linear-style init (uniform +/- 1/sqrt(fan_in)), [in, out] layout
        bound = 1.0 / math.sqrt(fi)
        kw, kb = jax.random.split(k)
        w = jax.random.uniform(kw, (fi, fo), jnp.float32, -bound, bound)
        b = jax.random.uniform(kb, (fo,), jnp.float32, -bound, bound)
        return w, b

    w1, b1 = lin(ks[0], D_IN, H)
    w2, b2 = lin(ks[1], H, H)

    hw1, hb1, hw2, hb2 = [], [], [], []
    for i in range(F):
        a, b = lin(ks[2 + i], H, HH)
        c, d = lin(ks[2 + F + i], HH, 1)
        hw1.append(a); hb1.append(b); hw2.append(c[:, 0]); hb2.append(d[0])

    kk = ks[2 + 2 * F:]
    g1 = 1.0 + 0.1 * jax.random.normal(kk[0], (H,), jnp.float32)
    be1 = 0.1 * jax.random.normal(kk[1], (H,), jnp.float32)
    g2 = 1.0 + 0.1 * jax.random.normal(kk[2], (H,), jnp.float32)
    be2 = 0.1 * jax.random.normal(kk[3], (H,), jnp.float32)
    hg = 1.0 + 0.1 * jax.random.normal(kk[4], (F, HH), jnp.float32)
    hbe = 0.1 * jax.random.normal(kk[5], (F, HH), jnp.float32)

    return dict(
        w1=w1, b1=b1.reshape(1, H), g1=g1.reshape(1, H), be1=be1.reshape(1, H),
        w2=w2, b2=b2.reshape(1, H), g2=g2.reshape(1, H), be2=be2.reshape(1, H),
        hw1=jnp.stack(hw1),                 # [F, H, HH]
        hb1=jnp.stack(hb1),                 # [F, HH]
        hg=hg, hbe=hbe,                     # [F, HH]
        hw2=jnp.stack(hw2),                 # [F, HH]  (Linear(HH,1) weight, flattened)
        hb2=jnp.stack(hb2).reshape(1, F),   # [1, F]
    )


if __name__ == "__main__":
    key = jax.random.PRNGKey(0)
    kp, kz, kc = jax.random.split(key, 3)
    params = init_params(kp)
    slab = pack_params(params)

    z = jax.random.normal(kz, (BATCH, LATENT_DIM), jnp.float32)
    cond = jax.random.normal(kc, (BATCH, CONDITION_DIM), jnp.float32)

    out_slab = masked_feature_decoder(z, cond, slab)      # lane-dense [B, 128]
    out_slab = jax.block_until_ready(out_slab)

    # Module API returns a list of [batch] tensors; split in the consumer.
    feats = [out_slab[:, i] for i in range(NUM_FEATURES)]

    ref = reference(z, cond, params)
    assert len(feats) == NUM_FEATURES
    for f, r in zip(feats, ref):
        assert f.shape == (BATCH,)
        # Tolerance covers multi-pass fp32 MXU contraction vs the XLA "highest"
        # reference plus the <=1.5e-7 erf-polynomial error.
        np.testing.assert_allclose(np.asarray(f), np.asarray(r), rtol=2e-4, atol=2e-4)

    # Padded output lanes must stay exactly zero (block-diag HW2 cols F:128 and
    # bias row cols F:128 are zero by construction).
    np.testing.assert_allclose(np.asarray(out_slab[:, NUM_FEATURES:]), 0.0, atol=1e-6)

    print("KERNEL_OK")
</pallas_src>

<mosaic_0001>
module attributes {stable_mosaic.version = 11 : i64} {
  func.func @decoder_kernel(%arg0: memref<8x32xf32, #tpu.memory_space<vmem>>, %arg1: memref<8x32xf32, #tpu.memory_space<vmem>>, %arg2: memref<368x128xf32, #tpu.memory_space<vmem>>, %arg3: memref<8x128xf32, #tpu.memory_space<vmem>>) attributes {dimension_semantics = [], scalar_prefetch = 0 : i64, scratch_operands = 0 : i64, tpu.core_type = #tpu.core_type<tc>} {
    %c0 = arith.constant 0 : index
    %c0_0 = arith.constant 0 : index
    %0 = vector.load %arg0[%c0, %c0_0] : memref<8x32xf32, #tpu.memory_space<vmem>>, vector<8x32xf32>
    %c0_1 = arith.constant 0 : index
    %c0_2 = arith.constant 0 : index
    %1 = vector.load %arg1[%c0_1, %c0_2] : memref<8x32xf32, #tpu.memory_space<vmem>>, vector<8x32xf32>
    %c0_3 = arith.constant 0 : index
    %c0_4 = arith.constant 0 : index
    %2 = vector.load %arg2[%c0_3, %c0_4] : memref<368x128xf32, #tpu.memory_space<vmem>>, vector<32x32xf32>
    %cst = arith.constant dense<0.000000e+00> : vector<8x32xf32>
    %3 = tpu.matmul %0, %2, %cst {dimension_numbers = #tpu.dot_dimension_numbers<[1], [0], [0], [1], [0, 0, 1, 1], [], []>, precision = #tpu.contract_precision<fp32>} : vector<8x32xf32>, vector<32x32xf32>, vector<8x32xf32> -> vector<8x32xf32>
    %c32 = arith.constant 32 : index
    %c0_5 = arith.constant 0 : index
    %4 = vector.load %arg2[%c32, %c0_5] : memref<368x128xf32, #tpu.memory_space<vmem>>, vector<32x32xf32>
    %cst_6 = arith.constant dense<0.000000e+00> : vector<8x32xf32>
    %5 = tpu.matmul %1, %4, %cst_6 {dimension_numbers = #tpu.dot_dimension_numbers<[1], [0], [0], [1], [0, 0, 1, 1], [], []>, precision = #tpu.contract_precision<fp32>} : vector<8x32xf32>, vector<32x32xf32>, vector<8x32xf32> -> vector<8x32xf32>
    %6 = arith.addf %3, %5 : vector<8x32xf32>
    %c352 = arith.constant 352 : index
    %c0_7 = arith.constant 0 : index
    %7 = vector.load %arg2[%c352, %c0_7] : memref<368x128xf32, #tpu.memory_space<vmem>>, vector<1x32xf32>
    %8 = vector.broadcast %7 : vector<1x32xf32> to vector<8x32xf32>
    %9 = arith.addf %6, %8 : vector<8x32xf32>
    %c353 = arith.constant 353 : index
    %c0_8 = arith.constant 0 : index
    %10 = vector.load %arg2[%c353, %c0_8] : memref<368x128xf32, #tpu.memory_space<vmem>>, vector<1x32xf32>
    %c354 = arith.constant 354 : index
    %c0_9 = arith.constant 0 : index
    %11 = vector.load %arg2[%c354, %c0_9] : memref<368x128xf32, #tpu.memory_space<vmem>>, vector<1x32xf32>
    %cst_10 = arith.constant dense<0.000000e+00> : vector<8xf32>
    %12 = vector.multi_reduction <add>, %9, %cst_10 [1] : vector<8x32xf32> to vector<8xf32>
    %13 = vector.shape_cast %12 : vector<8xf32> to vector<8x1xf32>
    %cst_11 = arith.constant 3.200000e+01 : f32
    %14 = vector.broadcast %cst_11 : f32 to vector<8x1xf32>
    %15 = arith.divf %13, %14 : vector<8x1xf32>
    %16 = vector.broadcast %15 : vector<8x1xf32> to vector<8x32xf32>
    %17 = arith.subf %9, %16 : vector<8x32xf32>
    %18 = arith.mulf %17, %17 : vector<8x32xf32>
    %cst_12 = arith.constant dense<0.000000e+00> : vector<8xf32>
    %19 = vector.multi_reduction <add>, %18, %cst_12 [1] : vector<8x32xf32> to vector<8xf32>
    %20 = vector.shape_cast %19 : vector<8xf32> to vector<8x1xf32>
    %cst_13 = arith.constant 3.200000e+01 : f32
    %21 = vector.broadcast %cst_13 : f32 to vector<8x1xf32>
    %22 = arith.divf %20, %21 : vector<8x1xf32>
    %23 = vector.broadcast %15 : vector<8x1xf32> to vector<8x32xf32>
    %24 = arith.subf %9, %23 : vector<8x32xf32>
    %cst_14 = arith.constant 9.99999974E-6 : f32
    %25 = vector.broadcast %cst_14 : f32 to vector<8x1xf32>
    %26 = arith.addf %22, %25 : vector<8x1xf32>
    %27 = math.rsqrt %26 : vector<8x1xf32>
    %28 = vector.broadcast %27 : vector<8x1xf32> to vector<8x32xf32>
    %29 = arith.mulf %24, %28 : vector<8x32xf32>
    %30 = vector.broadcast %10 : vector<1x32xf32> to vector<8x32xf32>
    %31 = arith.mulf %29, %30 : vector<8x32xf32>
    %32 = vector.broadcast %11 : vector<1x32xf32> to vector<8x32xf32>
    %33 = arith.addf %31, %32 : vector<8x32xf32>
    %cst_15 = arith.constant 5.000000e-01 : f32
    %34 = vector.broadcast %cst_15 : f32 to vector<8x32xf32>
    %35 = arith.mulf %34, %33 : vector<8x32xf32>
    %cst_16 = arith.constant 0.707106769 : f32
    %36 = vector.broadcast %cst_16 : f32 to vector<8x32xf32>
    %37 = arith.mulf %33, %36 : vector<8x32xf32>
    %cst_17 = arith.constant 0.000000e+00 : f32
    %38 = vector.broadcast %cst_17 : f32 to vector<8x32xf32>
    %39 = arith.cmpf olt, %37, %38 : vector<8x32xf32>
    %cst_18 = arith.constant -1.000000e+00 : f32
    %cst_19 = arith.constant 1.000000e+00 : f32
    %40 = vector.broadcast %cst_18 : f32 to vector<8x32xf32>
    %41 = vector.broadcast %cst_19 : f32 to vector<8x32xf32>
    %42 = arith.select %39, %40, %41 : vector<8x32xi1>, vector<8x32xf32>
    %43 = math.absf %37 : vector<8x32xf32>
    %cst_20 = arith.constant 0.327591091 : f32
    %44 = vector.broadcast %cst_20 : f32 to vector<8x32xf32>
    %45 = arith.mulf %44, %43 : vector<8x32xf32>
    %cst_21 = arith.constant 1.000000e+00 : f32
    %46 = vector.broadcast %cst_21 : f32 to vector<8x32xf32>
    %47 = arith.addf %46, %45 : vector<8x32xf32>
    %cst_22 = arith.constant 1.000000e+00 : f32
    %48 = vector.broadcast %cst_22 : f32 to vector<8x32xf32>
    %49 = arith.divf %48, %47 : vector<8x32xf32>
    %cst_23 = arith.constant 1.06140542 : f32
    %50 = vector.broadcast %cst_23 : f32 to vector<8x32xf32>
    %51 = arith.mulf %50, %49 : vector<8x32xf32>
    %cst_24 = arith.constant -1.45315206 : f32
    %52 = vector.broadcast %cst_24 : f32 to vector<8x32xf32>
    %53 = arith.addf %51, %52 : vector<8x32xf32>
    %54 = arith.mulf %53, %49 : vector<8x32xf32>
    %cst_25 = arith.constant 1.42141378 : f32
    %55 = vector.broadcast %cst_25 : f32 to vector<8x32xf32>
    %56 = arith.addf %54, %55 : vector<8x32xf32>
    %57 = arith.mulf %56, %49 : vector<8x32xf32>
    %cst_26 = arith.constant -0.284496725 : f32
    %58 = vector.broadcast %cst_26 : f32 to vector<8x32xf32>
    %59 = arith.addf %57, %58 : vector<8x32xf32>
    %60 = arith.mulf %59, %49 : vector<8x32xf32>
    %cst_27 = arith.constant 0.254829586 : f32
    %61 = vector.broadcast %cst_27 : f32 to vector<8x32xf32>
    %62 = arith.addf %60, %61 : vector<8x32xf32>
    %63 = arith.mulf %62, %49 : vector<8x32xf32>
    %cst_28 = arith.constant 0.000000e+00 : f32
    %64 = vector.broadcast %cst_28 : f32 to vector<8x32xf32>
    %65 = arith.subf %64, %43 : vector<8x32xf32>
    %66 = arith.mulf %65, %43 : vector<8x32xf32>
    %67 = math.exp %66 : vector<8x32xf32>
    %68 = arith.mulf %63, %67 : vector<8x32xf32>
    %cst_29 = arith.constant 1.000000e+00 : f32
    %69 = vector.broadcast %cst_29 : f32 to vector<8x32xf32>
    %70 = arith.subf %69, %68 : vector<8x32xf32>
    %71 = arith.mulf %42, %70 : vector<8x32xf32>
    %cst_30 = arith.constant 1.000000e+00 : f32
    %72 = vector.broadcast %cst_30 : f32 to vector<8x32xf32>
    %73 = arith.addf %72, %71 : vector<8x32xf32>
    %74 = arith.mulf %35, %73 : vector<8x32xf32>
    %c64 = arith.constant 64 : index
    %c0_31 = arith.constant 0 : index
    %75 = vector.load %arg2[%c64, %c0_31] : memref<368x128xf32, #tpu.memory_space<vmem>>, vector<32x32xf32>
    %cst_32 = arith.constant dense<0.000000e+00> : vector<8x32xf32>
    %76 = tpu.matmul %74, %75, %cst_32 {dimension_numbers = #tpu.dot_dimension_numbers<[1], [0], [0], [1], [0, 0, 1, 1], [], []>, precision = #tpu.contract_precision<fp32>} : vector<8x32xf32>, vector<32x32xf32>, vector<8x32xf32> -> vector<8x32xf32>
    %c355 = arith.constant 355 : index
    %c0_33 = arith.constant 0 : index
    %77 = vector.load %arg2[%c355, %c0_33] : memref<368x128xf32, #tpu.memory_space<vmem>>, vector<1x32xf32>
    %78 = vector.broadcast %77 : vector<1x32xf32> to vector<8x32xf32>
    %79 = arith.addf %76, %78 : vector<8x32xf32>
    %c356 = arith.constant 356 : index
    %c0_34 = arith.constant 0 : index
    %80 = vector.load %arg2[%c356, %c0_34] : memref<368x128xf32, #tpu.memory_space<vmem>>, vector<1x32xf32>
    %c357 = arith.constant 357 : index
    %c0_35 = arith.constant 0 : index
    %81 = vector.load %arg2[%c357, %c0_35] : memref<368x128xf32, #tpu.memory_space<vmem>>, vector<1x32xf32>
    %cst_36 = arith.constant dense<0.000000e+00> : vector<8xf32>
    %82 = vector.multi_reduction <add>, %79, %cst_36 [1] : vector<8x32xf32> to vector<8xf32>
    %83 = vector.shape_cast %82 : vector<8xf32> to vector<8x1xf32>
    %cst_37 = arith.constant 3.200000e+01 : f32
    %84 = vector.broadcast %cst_37 : f32 to vector<8x1xf32>
    %85 = arith.divf %83, %84 : vector<8x1xf32>
    %86 = vector.broadcast %85 : vector<8x1xf32> to vector<8x32xf32>
    %87 = arith.subf %79, %86 : vector<8x32xf32>
    %88 = arith.mulf %87, %87 : vector<8x32xf32>
    %cst_38 = arith.constant dense<0.000000e+00> : vector<8xf32>
    %89 = vector.multi_reduction <add>, %88, %cst_38 [1] : vector<8x32xf32> to vector<8xf32>
    %90 = vector.shape_cast %89 : vector<8xf32> to vector<8x1xf32>
    %cst_39 = arith.constant 3.200000e+01 : f32
    %91 = vector.broadcast %cst_39 : f32 to vector<8x1xf32>
    %92 = arith.divf %90, %91 : vector<8x1xf32>
    %93 = vector.broadcast %85 : vector<8x1xf32> to vector<8x32xf32>
    %94 = arith.subf %79, %93 : vector<8x32xf32>
    %cst_40 = arith.constant 9.99999974E-6 : f32
    %95 = vector.broadcast %cst_40 : f32 to vector<8x1xf32>
    %96 = arith.addf %92, %95 : vector<8x1xf32>
    %97 = math.rsqrt %96 : vector<8x1xf32>
    %98 = vector.broadcast %97 : vector<8x1xf32> to vector<8x32xf32>
    %99 = arith.mulf %94, %98 : vector<8x32xf32>
    %100 = vector.broadcast %80 : vector<1x32xf32> to vector<8x32xf32>
    %101 = arith.mulf %99, %100 : vector<8x32xf32>
    %102 = vector.broadcast %81 : vector<1x32xf32> to vector<8x32xf32>
    %103 = arith.addf %101, %102 : vector<8x32xf32>
    %cst_41 = arith.constant 5.000000e-01 : f32
    %104 = vector.broadcast %cst_41 : f32 to vector<8x32xf32>
    %105 = arith.mulf %104, %103 : vector<8x32xf32>
    %cst_42 = arith.constant 0.707106769 : f32
    %106 = vector.broadcast %cst_42 : f32 to vector<8x32xf32>
    %107 = arith.mulf %103, %106 : vector<8x32xf32>
    %cst_43 = arith.constant 0.000000e+00 : f32
    %108 = vector.broadcast %cst_43 : f32 to vector<8x32xf32>
    %109 = arith.cmpf olt, %107, %108 : vector<8x32xf32>
    %cst_44 = arith.constant -1.000000e+00 : f32
    %cst_45 = arith.constant 1.000000e+00 : f32
    %110 = vector.broadcast %cst_44 : f32 to vector<8x32xf32>
    %111 = vector.broadcast %cst_45 : f32 to vector<8x32xf32>
    %112 = arith.select %109, %110, %111 : vector<8x32xi1>, vector<8x32xf32>
    %113 = math.absf %107 : vector<8x32xf32>
    %cst_46 = arith.constant 0.327591091 : f32
    %114 = vector.broadcast %cst_46 : f32 to vector<8x32xf32>
    %115 = arith.mulf %114, %113 : vector<8x32xf32>
    %cst_47 = arith.constant 1.000000e+00 : f32
    %116 = vector.broadcast %cst_47 : f32 to vector<8x32xf32>
    %117 = arith.addf %116, %115 : vector<8x32xf32>
    %cst_48 = arith.constant 1.000000e+00 : f32
    %118 = vector.broadcast %cst_48 : f32 to vector<8x32xf32>
    %119 = arith.divf %118, %117 : vector<8x32xf32>
    %cst_49 = arith.constant 1.06140542 : f32
    %120 = vector.broadcast %cst_49 : f32 to vector<8x32xf32>
    %121 = arith.mulf %120, %119 : vector<8x32xf32>
    %cst_50 = arith.constant -1.45315206 : f32
    %122 = vector.broadcast %cst_50 : f32 to vector<8x32xf32>
    %123 = arith.addf %121, %122 : vector<8x32xf32>
    %124 = arith.mulf %123, %119 : vector<8x32xf32>
    %cst_51 = arith.constant 1.42141378 : f32
    %125 = vector.broadcast %cst_51 : f32 to vector<8x32xf32>
    %126 = arith.addf %124, %125 : vector<8x32xf32>
    %127 = arith.mulf %126, %119 : vector<8x32xf32>
    %cst_52 = arith.constant -0.284496725 : f32
    %128 = vector.broadcast %cst_52 : f32 to vector<8x32xf32>
    %129 = arith.addf %127, %128 : vector<8x32xf32>
    %130 = arith.mulf %129, %119 : vector<8x32xf32>
    %cst_53 = arith.constant 0.254829586 : f32
    %131 = vector.broadcast %cst_53 : f32 to vector<8x32xf32>
    %132 = arith.addf %130, %131 : vector<8x32xf32>
    %133 = arith.mulf %132, %119 : vector<8x32xf32>
    %cst_54 = arith.constant 0.000000e+00 : f32
    %134 = vector.broadcast %cst_54 : f32 to vector<8x32xf32>
    %135 = arith.subf %134, %113 : vector<8x32xf32>
    %136 = arith.mulf %135, %113 : vector<8x32xf32>
    %137 = math.exp %136 : vector<8x32xf32>
    %138 = arith.mulf %133, %137 : vector<8x32xf32>
    %cst_55 = arith.constant 1.000000e+00 : f32
    %139 = vector.broadcast %cst_55 : f32 to vector<8x32xf32>
    %140 = arith.subf %139, %138 : vector<8x32xf32>
    %141 = arith.mulf %112, %140 : vector<8x32xf32>
    %cst_56 = arith.constant 1.000000e+00 : f32
    %142 = vector.broadcast %cst_56 : f32 to vector<8x32xf32>
    %143 = arith.addf %142, %141 : vector<8x32xf32>
    %144 = arith.mulf %105, %143 : vector<8x32xf32>
    %c96 = arith.constant 96 : index
    %c0_57 = arith.constant 0 : index
    %145 = vector.load %arg2[%c96, %c0_57] : memref<368x128xf32, #tpu.memory_space<vmem>>, vector<32x96xf32>
    %cst_58 = arith.constant dense<0.000000e+00> : vector<8x96xf32>
    %146 = tpu.matmul %144, %145, %cst_58 {dimension_numbers = #tpu.dot_dimension_numbers<[1], [0], [0], [1], [0, 0, 1, 1], [], []>, precision = #tpu.contract_precision<fp32>} : vector<8x32xf32>, vector<32x96xf32>, vector<8x96xf32> -> vector<8x96xf32>
    %c358 = arith.constant 358 : index
    %c0_59 = arith.constant 0 : index
    %147 = vector.load %arg2[%c358, %c0_59] : memref<368x128xf32, #tpu.memory_space<vmem>>, vector<1x96xf32>
    %148 = vector.broadcast %147 : vector<1x96xf32> to vector<8x96xf32>
    %149 = arith.addf %146, %148 : vector<8x96xf32>
    %c128 = arith.constant 128 : index
    %c0_60 = arith.constant 0 : index
    %150 = vector.load %arg2[%c128, %c0_60] : memref<368x128xf32, #tpu.memory_space<vmem>>, vector<32x96xf32>
    %cst_61 = arith.constant dense<0.000000e+00> : vector<8x96xf32>
    %151 = tpu.matmul %144, %150, %cst_61 {dimension_numbers = #tpu.dot_dimension_numbers<[1], [0], [0], [1], [0, 0, 1, 1], [], []>, precision = #tpu.contract_precision<fp32>} : vector<8x32xf32>, vector<32x96xf32>, vector<8x96xf32> -> vector<8x96xf32>
    %c362 = arith.constant 362 : index
    %c0_62 = arith.constant 0 : index
    %152 = vector.load %arg2[%c362, %c0_62] : memref<368x128xf32, #tpu.memory_space<vmem>>, vector<1x96xf32>
    %153 = vector.broadcast %152 : vector<1x96xf32> to vector<8x96xf32>
    %154 = arith.addf %151, %153 : vector<8x96xf32>
    %155 = arith.subf %149, %154 : vector<8x96xf32>
    %156 = arith.mulf %155, %155 : vector<8x96xf32>
    %c160 = arith.constant 160 : index
    %c0_63 = arith.constant 0 : index
    %157 = vector.load %arg2[%c160, %c0_63] : memref<368x128xf32, #tpu.memory_space<vmem>>, vector<96x96xf32>
    %cst_64 = arith.constant dense<0.000000e+00> : vector<8x96xf32>
    %158 = tpu.matmul %156, %157, %cst_64 {dimension_numbers = #tpu.dot_dimension_numbers<[1], [0], [0], [1], [0, 0, 1, 1], [], []>, precision = #tpu.contract_precision<fp32>} : vector<8x96xf32>, vector<96x96xf32>, vector<8x96xf32> -> vector<8x96xf32>
    %cst_65 = arith.constant 9.99999974E-6 : f32
    %159 = vector.broadcast %cst_65 : f32 to vector<8x96xf32>
    %160 = arith.addf %158, %159 : vector<8x96xf32>
    %161 = math.rsqrt %160 : vector<8x96xf32>
    %162 = arith.mulf %155, %161 : vector<8x96xf32>
    %c359 = arith.constant 359 : index
    %c0_66 = arith.constant 0 : index
    %163 = vector.load %arg2[%c359, %c0_66] : memref<368x128xf32, #tpu.memory_space<vmem>>, vector<1x96xf32>
    %164 = vector.broadcast %163 : vector<1x96xf32> to vector<8x96xf32>
    %165 = arith.mulf %162, %164 : vector<8x96xf32>
    %c360 = arith.constant 360 : index
    %c0_67 = arith.constant 0 : index
    %166 = vector.load %arg2[%c360, %c0_67] : memref<368x128xf32, #tpu.memory_space<vmem>>, vector<1x96xf32>
    %167 = vector.broadcast %166 : vector<1x96xf32> to vector<8x96xf32>
    %168 = arith.addf %165, %167 : vector<8x96xf32>
    %cst_68 = arith.constant 5.000000e-01 : f32
    %169 = vector.broadcast %cst_68 : f32 to vector<8x96xf32>
    %170 = arith.mulf %169, %168 : vector<8x96xf32>
    %cst_69 = arith.constant 0.707106769 : f32
    %171 = vector.broadcast %cst_69 : f32 to vector<8x96xf32>
    %172 = arith.mulf %168, %171 : vector<8x96xf32>
    %cst_70 = arith.constant 0.000000e+00 : f32
    %173 = vector.broadcast %cst_70 : f32 to vector<8x96xf32>
    %174 = arith.cmpf olt, %172, %173 : vector<8x96xf32>
    %cst_71 = arith.constant -1.000000e+00 : f32
    %cst_72 = arith.constant 1.000000e+00 : f32
    %175 = vector.broadcast %cst_71 : f32 to vector<8x96xf32>
    %176 = vector.broadcast %cst_72 : f32 to vector<8x96xf32>
    %177 = arith.select %174, %175, %176 : vector<8x96xi1>, vector<8x96xf32>
    %178 = math.absf %172 : vector<8x96xf32>
    %cst_73 = arith.constant 0.327591091 : f32
    %179 = vector.broadcast %cst_73 : f32 to vector<8x96xf32>
    %180 = arith.mulf %179, %178 : vector<8x96xf32>
    %cst_74 = arith.constant 1.000000e+00 : f32
    %181 = vector.broadcast %cst_74 : f32 to vector<8x96xf32>
    %182 = arith.addf %181, %180 : vector<8x96xf32>
    %cst_75 = arith.constant 1.000000e+00 : f32
    %183 = vector.broadcast %cst_75 : f32 to vector<8x96xf32>
    %184 = arith.divf %183, %182 : vector<8x96xf32>
    %cst_76 = arith.constant 1.06140542 : f32
    %185 = vector.broadcast %cst_76 : f32 to vector<8x96xf32>
    %186 = arith.mulf %185, %184 : vector<8x96xf32>
    %cst_77 = arith.constant -1.45315206 : f32
    %187 = vector.broadcast %cst_77 : f32 to vector<8x96xf32>
    %188 = arith.addf %186, %187 : vector<8x96xf32>
    %189 = arith.mulf %188, %184 : vector<8x96xf32>
    %cst_78 = arith.constant 1.42141378 : f32
    %190 = vector.broadcast %cst_78 : f32 to vector<8x96xf32>
    %191 = arith.addf %189, %190 : vector<8x96xf32>
    %192 = arith.mulf %191, %184 : vector<8x96xf32>
    %cst_79 = arith.constant -0.284496725 : f32
    %193 = vector.broadcast %cst_79 : f32 to vector<8x96xf32>
    %194 = arith.addf %192, %193 : vector<8x96xf32>
    %195 = arith.mulf %194, %184 : vector<8x96xf32>
    %cst_80 = arith.constant 0.254829586 : f32
    %196 = vector.broadcast %cst_80 : f32 to vector<8x96xf32>
    %197 = arith.addf %195, %196 : vector<8x96xf32>
    %198 = arith.mulf %197, %184 : vector<8x96xf32>
    %cst_81 = arith.constant 0.000000e+00 : f32
    %199 = vector.broadcast %cst_81 : f32 to vector<8x96xf32>
    %200 = arith.subf %199, %178 : vector<8x96xf32>
    %201 = arith.mulf %200, %178 : vector<8x96xf32>
    %202 = math.exp %201 : vector<8x96xf32>
    %203 = arith.mulf %198, %202 : vector<8x96xf32>
    %cst_82 = arith.constant 1.000000e+00 : f32
    %204 = vector.broadcast %cst_82 : f32 to vector<8x96xf32>
    %205 = arith.subf %204, %203 : vector<8x96xf32>
    %206 = arith.mulf %177, %205 : vector<8x96xf32>
    %cst_83 = arith.constant 1.000000e+00 : f32
    %207 = vector.broadcast %cst_83 : f32 to vector<8x96xf32>
    %208 = arith.addf %207, %206 : vector<8x96xf32>
    %209 = arith.mulf %170, %208 : vector<8x96xf32>
    %c256 = arith.constant 256 : index
    %c0_84 = arith.constant 0 : index
    %210 = vector.load %arg2[%c256, %c0_84] : memref<368x128xf32, #tpu.memory_space<vmem>>, vector<96x128xf32>
    %cst_85 = arith.constant dense<0.000000e+00> : vector<8x128xf32>
    %211 = tpu.matmul %209, %210, %cst_85 {dimension_numbers = #tpu.dot_dimension_numbers<[1], [0], [0], [1], [0, 0, 1, 1], [], []>, precision = #tpu.contract_precision<fp32>} : vector<8x96xf32>, vector<96x128xf32>, vector<8x128xf32> -> vector<8x128xf32>
    %c361 = arith.constant 361 : index
    %c0_86 = arith.constant 0 : index
    %212 = vector.load %arg2[%c361, %c0_86] : memref<368x128xf32, #tpu.memory_space<vmem>>, vector<1x128xf32>
    %213 = vector.broadcast %212 : vector<1x128xf32> to vector<8x128xf32>
    %214 = arith.addf %211, %213 : vector<8x128xf32>
    %c0_87 = arith.constant 0 : index
    %c0_88 = arith.constant 0 : index
    %215 = vector.load %arg3[%c0_87, %c0_88] : memref<8x128xf32, #tpu.memory_space<vmem>>, vector<8x128xf32>
    tpu.vector_store %arg3[%c0_87, %c0_88], %214 {strides = array<i32>} : memref<8x128xf32, #tpu.memory_space<vmem>>, vector<8x128xf32>,
    return
  }
}

</mosaic_0001>

<llo_original>
// kernel: tpu_custom_call.1
$region0: #{tpu_custom_call.1}
  #allocation0 [shape = 'u32[]', space=smem, size = 0x4, offset = 0x4, fixed_abs, tag = 'smem constant byte address 0x4 - core index']
  #allocation1 [shape = 'u32[144,128]{1,0:T(1,128)}', space=vmem, size = 0x12000, scoped, tag = 'internal scratch']
  %s0 = inlined_call_operand.hbm [shape: f32[8,32], index: 0, kind: input, shape index: {}]
  %s1 = inlined_call_operand.hbm [shape: f32[8,32], index: 1, kind: input, shape index: {}]
  %s2 = inlined_call_operand.hbm [shape: f32[368,128], index: 2, kind: input, shape index: {}]
  %s3 = inlined_call_operand.hbm [shape: f32[8,128], index: 3, kind: output, shape index: {}]
  %s4 = sld [smem:[#allocation0]]
  $region34: #{tpu_custom_call.1} parent=0
    _
  %s6 = ssub.s32 1, %s4
  %s7 = scalar_select 0, %s6, %s4
  $region1: #{tpu_custom_call.1} parent=0
    #allocation2 [shape = 'u8[4096]{0}', space=vmem, size = 0x1000, scoped, tag = 'input window, operand 0, single buffered']
    #allocation3 [shape = 's32[1]{0}', space=sflag, size = 0x4, scoped, tag = 'scoped memory for tpu_custom_call.1']
    #allocation4 [shape = 's32[1]{0}', space=sflag, size = 0x4, scoped, tag = 'scoped memory for tpu_custom_call.1']
    #allocation5 [shape = 'u8[4096]{0}', space=vmem, size = 0x1000, scoped, tag = 'input window, operand 1, single buffered']
    #allocation6 [shape = 's32[1]{0}', space=sflag, size = 0x4, scoped, tag = 'scoped memory for tpu_custom_call.1']
    #allocation7 [shape = 'u8[188416]{0}', space=vmem, size = 0x2e000, scoped, tag = 'input window, operand 2, single buffered']
    #allocation8 [shape = 'u8[4096]{0}', space=vmem, size = 0x1000, scoped, tag = 'output window, operand 0, single buffered']
    %8 = vsyncpa [#allocation3], 0
    %9 = vsyncpa [#allocation6], 0
    %10 = vsyncpa [#allocation4], 0
    // Predicated region
    $region2: #{tpu_custom_call.1} parent=1 // pred_check
      _
    $region3: #{tpu_custom_call.1} parent=1 // pred_check_branch
      %12 = sbr.rel (0) target = $region5
    $region4: #{tpu_custom_call.1} parent=1 // pred_region
      %s14 = ssub.s32 128, 128
      %15 = vsyncadd [#allocation3], %s14
      %s17 = sshll.u32 [#allocation2], 4
      %s18 = int_to_ptr.vmem [resolvable:$true] %s17
      %20 = dma.hbm_to_vmem [thread:$0]  %s0, 128, %s18, [#allocation3]
    $region5: #{tpu_custom_call.1} parent=1 // pred_fallthru
      _
    // Predicated region
    $region6: #{tpu_custom_call.1} parent=1 // pred_check
      _
    $region7: #{tpu_custom_call.1} parent=1 // pred_check_branch
      %22 = sbr.rel (0) target = $region9
    $region8: #{tpu_custom_call.1} parent=1 // pred_region
      %s24 = ssub.s32 128, 128
      %25 = vsyncadd [#allocation6], %s24
      %s27 = sshll.u32 [#allocation5], 4
      %s28 = int_to_ptr.vmem [resolvable:$true] %s27
      %30 = dma.hbm_to_vmem [thread:$0]  %s1, 128, %s28, [#allocation6]
    $region9: #{tpu_custom_call.1} parent=1 // pred_fallthru
      _
    // Predicated region
    $region10: #{tpu_custom_call.1} parent=1 // pred_check
      _
    $region11: #{tpu_custom_call.1} parent=1 // pred_check_branch
      %32 = sbr.rel (0) target = $region13
    $region12: #{tpu_custom_call.1} parent=1 // pred_region
      %s34 = ssub.s32 5888, 5888
      %35 = vsyncadd [#allocation6], %s34
      %s36 = sshll.u32 [#allocation7], 4
      %s37 = int_to_ptr.vmem [resolvable:$true] %s36
      %42 = dma.hbm_to_vmem [thread:$0]  %s2, 5888, %s37, [#allocation6], 128, 128, 8
    $region13: #{tpu_custom_call.1} parent=1 // pred_fallthru
      _
    // Predicated region
    $region14: #{tpu_custom_call.1} parent=1 // pred_check
      _
    $region15: #{tpu_custom_call.1} parent=1 // pred_check_branch
      %44 = sbr.rel (0) target = $region17
    $region16: #{tpu_custom_call.1} parent=1 // pred_region
      %45 = dma.done [#allocation3], 128
    $region17: #{tpu_custom_call.1} parent=1 // pred_fallthru
      _
    // Predicated region
    $region18: #{tpu_custom_call.1} parent=1 // pred_check
      _
    $region19: #{tpu_custom_call.1} parent=1 // pred_check_branch
      %47 = sbr.rel (0) target = $region21
    $region20: #{tpu_custom_call.1} parent=1 // pred_region
      %48 = dma.done [#allocation6], 128
    $region21: #{tpu_custom_call.1} parent=1 // pred_fallthru
      _
    // Predicated region
    $region22: #{tpu_custom_call.1} parent=1 // pred_check
      _
    $region23: #{tpu_custom_call.1} parent=1 // pred_check_branch
      %50 = sbr.rel (0) target = $region25
    $region24: #{tpu_custom_call.1} parent=1 // pred_region
      %51 = dma.done [#allocation6], 5888
    $region25: #{tpu_custom_call.1} parent=1 // pred_fallthru
      _
    %v52 = vld [vmem:[#allocation2] sm:$0xff]
    %v53 = vld [vmem:[#allocation5] sm:$0xff]
    %v54 = vld [vmem:[#allocation7] sm:$0xff]
    %v55 = vld [vmem:[#allocation7 + $0x8] sm:$0xff]
    %v56 = vld [vmem:[#allocation7 + $0x10] sm:$0xff]
    %v57 = vld [vmem:[#allocation7 + $0x18] sm:$0xff]
    %v58 = vld [vmem:[#allocation7 + $0x20] sm:$0xff]
    %v59 = vld [vmem:[#allocation7 + $0x28] sm:$0xff]
    %v60 = vld [vmem:[#allocation7 + $0x30] sm:$0xff]
    %v61 = vld [vmem:[#allocation7 + $0x38] sm:$0xff]
    %vm62 = vcmask 261120
    %v64 = vsel %vm62, %v53, 0
    %66 = vmatprep.subr.mxu0 0.0
    %v67 = vand.u32 %v58, 4294901760
    %68 = vmatpush1.msra.mxu0 %v67
    %69 = vmatprep.subr.mxu0 0.0
    %v70 = vand.u32 %v59, 4294901760
    %71 = vmatpush1.msra.mxu0 %v70
    %72 = vmatprep.subr.mxu0 0.0
    %v73 = vand.u32 %v60, 4294901760
    %74 = vmatpush1.msra.mxu0 %v73
    %75 = vmatprep.subr.mxu0 0.0
    %v76 = vand.u32 %v61, 4294901760
    %77 = vmatpush1.msra.mxu0 %v76
    %78 = vmatprep.subr.mxu0 0.0
    %79 = vmatpush1.msra.mxu0 0.0
    %80 = vmatprep.subr.mxu0 0.0
    %81 = vmatpush1.msra.mxu0 0.0
    %82 = vmatprep.subr.mxu0 0.0
    %83 = vmatpush1.msra.mxu0 0.0
    %84 = vmatprep.subr.mxu0 0.0
    %85 = vmatpush1.msra.mxu0 0.0
    %86 = vmatprep.subr.mxu0 0.0
    %87 = vmatpush1.msra.mxu0 0.0
    %88 = vmatprep.subr.mxu0 0.0
    %89 = vmatpush1.msra.mxu0 0.0
    %90 = vmatprep.subr.mxu0 0.0
    %91 = vmatpush1.msra.mxu0 0.0
    %92 = vmatprep.subr.mxu0 0.0
    %93 = vmatpush1.msra.mxu0 0.0
    %94 = vmatprep.subr.mxu0 0.0
    %95 = vmatpush1.msra.mxu0 0.0
    %96 = vmatprep.subr.mxu0 0.0
    %97 = vmatpush1.msra.mxu0 0.0
    %98 = vmatprep.subr.mxu0 0.0
    %99 = vmatpush1.msra.mxu0 0.0
    %100 = vmatprep.subr.mxu0 0.0
    %101 = vmatpush1.msra.mxu0 0.0
    %102 = vmatprep.subr.mxu0 0.0
    %103 = vmatpush1.msra.mxu0 0.0
    %104 = vmatprep.subr.mxu0 0.0
    %105 = vmatpush1.msra.mxu0 0.0
    %106 = vmatprep.subr.mxu0 0.0
    %107 = vmatpush1.msra.mxu0 0.0
    %108 = vmatprep.subr.mxu0 0.0
    %109 = vmatpush1.msra.mxu0 0.0
    %110 = vmatprep.subr.mxu0 0.0
    %111 = vmatpush1.msra.mxu0 0.0
    %112 = vmatprep.subr.mxu0 0.0
    %113 = vmatpush1.msra.mxu0 0.0
    %114 = vmatprep.subr.mxu0 0.0
    %115 = vmatpush1.msra.mxu0 0.0
    %116 = vmatprep.subr.mxu0 0.0
    %117 = vmatpush1.msra.mxu0 0.0
    %118 = vmatprep.subr.mxu0 0.0
    %119 = vmatpush1.msra.mxu0 0.0
    %120 = vmatprep.subr.mxu0 0.0
    %121 = vmatpush1.msra.mxu0 0.0
    %122 = vmatprep.subr.mxu0 0.0
    %123 = vmatpush1.msra.mxu0 0.0
    %124 = vmatprep.subr.mxu0 0.0
    %125 = vmatpush1.msra.mxu0 0.0
    %126 = vmatprep.subr.mxu0 0.0
    %127 = vmatpush1.msra.mxu0 0.0
    %128 = vmatprep.subr.mxu0 0.0
    %129 = vmatpush1.msra.mxu0 0.0
    %130 = vmatprep.subr.mxu0 0.0
    %131 = vmatpush1.msra.mxu0 0.0
    %132 = vmatprep.subr.mxu0 0.0
    %133 = vmatpush1.msra.mxu0 0.0
    %134 = vmatprep.mubr.f32.mxu0 0.0
    %v135 = vand.u32 %v64, 4294901760
    %v136 = vsub.f32 %v64, %v135
    %v137 = vand.u32 %v136, 4294901760
    %v138 = vsub.f32 %v136, %v137
    %v139 = vand.u32 %v138, 4294901760
    %140 = vmatmul.mubr.f32.gmra.mrb[0].mxu0 %v139
    %v141 = vpop.f32.mrb[0].mxu0
    %v142 = vadd.f32 0.0, %v141
    %v143 = vpop.f32.mrb[0].mxu0
    %144 = vdwg.mxu0
    %145 = vmatprep.subr.mxu0 0.0
    %v146 = vand.u32 %v58, 4294901760
    %v147 = vsub.f32 %v58, %v146
    %v148 = vand.u32 %v147, 4294901760
    %v149 = vsub.f32 %v147, %v148
    %v150 = vand.u32 %v149, 4294901760
    %151 = vmatpush1.msra.mxu0 %v150
    %152 = vmatprep.subr.mxu0 0.0
    %v153 = vand.u32 %v59, 4294901760
    %v154 = vsub.f32 %v59, %v153
    %v155 = vand.u32 %v154, 4294901760
    %v156 = vsub.f32 %v154, %v155
    %v157 = vand.u32 %v156, 4294901760
    %158 = vmatpush1.msra.mxu0 %v157
    %159 = vmatprep.subr.mxu0 0.0
    %v160 = vand.u32 %v60, 4294901760
    %v161 = vsub.f32 %v60, %v160
    %v162 = vand.u32 %v161, 4294901760
    %v163 = vsub.f32 %v161, %v162
    %v164 = vand.u32 %v163, 4294901760
    %165 = vmatpush1.msra.mxu0 %v164
    %166 = vmatprep.subr.mxu0 0.0
    %v167 = vand.u32 %v61, 4294901760
    %v168 = vsub.f32 %v61, %v167
    %v169 = vand.u32 %v168, 4294901760
    %v170 = vsub.f32 %v168, %v169
    %v171 = vand.u32 %v170, 4294901760
    %172 = vmatpush1.msra.mxu0 %v171
    %173 = vmatprep.subr.mxu0 0.0
    %174 = vmatpush1.msra.mxu0 0.0
    %175 = vmatprep.subr.mxu0 0.0
    %176 = vmatpush1.msra.mxu0 0.0
    %177 = vmatprep.subr.mxu0 0.0
    %178 = vmatpush1.msra.mxu0 0.0
    %179 = vmatprep.subr.mxu0 0.0
    %180 = vmatpush1.msra.mxu0 0.0
    %181 = vmatprep.subr.mxu0 0.0
    %182 = vmatpush1.msra.mxu0 0.0
    %183 = vmatprep.subr.mxu0 0.0
    %184 = vmatpush1.msra.mxu0 0.0
    %185 = vmatprep.subr.mxu0 0.0
    %186 = vmatpush1.msra.mxu0 0.0
    %187 = vmatprep.subr.mxu0 0.0
    %188 = vmatpush1.msra.mxu0 0.0
    %189 = vmatprep.subr.mxu0 0.0
    %190 = vmatpush1.msra.mxu0 0.0
    %191 = vmatprep.subr.mxu0 0.0
    %192 = vmatpush1.msra.mxu0 0.0
    %193 = vmatprep.subr.mxu0 0.0
    %194 = vmatpush1.msra.mxu0 0.0
    %195 = vmatprep.subr.mxu0 0.0
    %196 = vmatpush1.msra.mxu0 0.0
    %197 = vmatprep.subr.mxu0 0.0
    %198 = vmatpush1.msra.mxu0 0.0
    %199 = vmatprep.subr.mxu0 0.0
    %200 = vmatpush1.msra.mxu0 0.0
    %201 = vmatprep.subr.mxu0 0.0
    %202 = vmatpush1.msra.mxu0 0.0
    %203 = vmatprep.subr.mxu0 0.0
    %204 = vmatpush1.msra.mxu0 0.0
    %205 = vmatprep.subr.mxu0 0.0
    %206 = vmatpush1.msra.mxu0 0.0
    %207 = vmatprep.subr.mxu0 0.0
    %208 = vmatpush1.msra.mxu0 0.0
    %209 = vmatprep.subr.mxu0 0.0
    %210 = vmatpush1.msra.mxu0 0.0
    %211 = vmatprep.subr.mxu0 0.0
    %212 = vmatpush1.msra.mxu0 0.0
    %213 = vmatprep.subr.mxu0 0.0
    %214 = vmatpush1.msra.mxu0 0.0
    %215 = vmatprep.subr.mxu0 0.0
    %216 = vmatpush1.msra.mxu0 0.0
    %217 = vmatprep.subr.mxu0 0.0
    %218 = vmatpush1.msra.mxu0 0.0
    %219 = vmatprep.subr.mxu0 0.0
    %220 = vmatpush1.msra.mxu0 0.0
    %221 = vmatprep.subr.mxu0 0.0
    %222 = vmatpush1.msra.mxu0 0.0
    %223 = vmatprep.subr.mxu0 0.0
    %224 = vmatpush1.msra.mxu0 0.0
    %225 = vmatprep.subr.mxu0 0.0
    %226 = vmatpush1.msra.mxu0 0.0
    %227 = vmatprep.subr.mxu0 0.0
    %228 = vmatpush1.msra.mxu0 0.0
    %229 = vmatprep.mubr.f32.mxu0 0.0
    %v230 = vand.u32 %v64, 4294901760
    %231 = vmatmul.mubr.f32.gmra.mrb[0].mxu0 %v230
    %v232 = vpop.f32.mrb[0].mxu0
    %v233 = vadd.f32 %v142, %v232
    %v234 = vpop.f32.mrb[0].mxu0
    %235 = vdwg.mxu0
    %236 = vmatprep.subr.mxu0 0.0
    %v237 = vand.u32 %v58, 4294901760
    %v238 = vsub.f32 %v58, %v237
    %239 = vmatpush1.msra.mxu0 %v238
    %240 = vmatprep.subr.mxu0 0.0
    %v241 = vand.u32 %v59, 4294901760
    %v242 = vsub.f32 %v59, %v241
    %243 = vmatpush1.msra.mxu0 %v242
    %244 = vmatprep.subr.mxu0 0.0
    %v245 = vand.u32 %v60, 4294901760
    %v246 = vsub.f32 %v60, %v245
    %247 = vmatpush1.msra.mxu0 %v246
    %248 = vmatprep.subr.mxu0 0.0
    %v249 = vand.u32 %v61, 4294901760
    %v250 = vsub.f32 %v61, %v249
    %251 = vmatpush1.msra.mxu0 %v250
    %252 = vmatprep.subr.mxu0 0.0
    %253 = vmatpush1.msra.mxu0 0.0
    %254 = vmatprep.subr.mxu0 0.0
    %255 = vmatpush1.msra.mxu0 0.0
    %256 = vmatprep.subr.mxu0 0.0
    %257 = vmatpush1.msra.mxu0 0.0
    %258 = vmatprep.subr.mxu0 0.0
    %259 = vmatpush1.msra.mxu0 0.0
    %260 = vmatprep.subr.mxu0 0.0
    %261 = vmatpush1.msra.mxu0 0.0
    %262 = vmatprep.subr.mxu0 0.0
    %263 = vmatpush1.msra.mxu0 0.0
    %264 = vmatprep.subr.mxu0 0.0
    %265 = vmatpush1.msra.mxu0 0.0
    %266 = vmatprep.subr.mxu0 0.0
    %267 = vmatpush1.msra.mxu0 0.0
    %268 = vmatprep.subr.mxu0 0.0
    %269 = vmatpush1.msra.mxu0 0.0
    %270 = vmatprep.subr.mxu0 0.0
    %271 = vmatpush1.msra.mxu0 0.0
    %272 = vmatprep.subr.mxu0 0.0
    %273 = vmatpush1.msra.mxu0 0.0
    %274 = vmatprep.subr.mxu0 0.0
    %275 = vmatpush1.msra.mxu0 0.0
    %276 = vmatprep.subr.mxu0 0.0
    %277 = vmatpush1.msra.mxu0 0.0
    %278 = vmatprep.subr.mxu0 0.0
    %279 = vmatpush1.msra.mxu0 0.0
    %280 = vmatprep.subr.mxu0 0.0
    %281 = vmatpush1.msra.mxu0 0.0
    %282 = vmatprep.subr.mxu0 0.0
    %283 = vmatpush1.msra.mxu0 0.0
    %284 = vmatprep.subr.mxu0 0.0
    %285 = vmatpush1.msra.mxu0 0.0
    %286 = vmatprep.subr.mxu0 0.0
    %287 = vmatpush1.msra.mxu0 0.0
    %288 = vmatprep.subr.mxu0 0.0
    %289 = vmatpush1.msra.mxu0 0.0
    %290 = vmatprep.subr.mxu0 0.0
    %291 = vmatpush1.msra.mxu0 0.0
    %292 = vmatprep.subr.mxu0 0.0
    %293 = vmatpush1.msra.mxu0 0.0
    %294 = vmatprep.subr.mxu0 0.0
    %295 = vmatpush1.msra.mxu0 0.0
    %296 = vmatprep.subr.mxu0 0.0
    %297 = vmatpush1.msra.mxu0 0.0
    %298 = vmatprep.subr.mxu0 0.0
    %299 = vmatpush1.msra.mxu0 0.0
    %300 = vmatprep.subr.mxu0 0.0
    %301 = vmatpush1.msra.mxu0 0.0
    %302 = vmatprep.subr.mxu0 0.0
    %303 = vmatpush1.msra.mxu0 0.0
    %304 = vmatprep.subr.mxu0 0.0
    %305 = vmatpush1.msra.mxu0 0.0
    %306 = vmatprep.subr.mxu0 0.0
    %307 = vmatpush1.msra.mxu0 0.0
    %308 = vmatprep.mubr.f32.mxu0 0.0
    %v309 = vand.u32 %v64, 4294901760
    %v310 = vsub.f32 %v64, %v309
    %311 = vmatmul.mubr.f32.gmra.mrb[0].mxu0 %v310
    %v312 = vpop.f32.mrb[0].mxu0
    %v313 = vadd.f32 %v233, %v312
    %v314 = vpop.f32.mrb[0].mxu0
    %315 = vdwg.mxu0
    %316 = vmatprep.subr.mxu0 0.0
    %v317 = vand.u32 %v58, 4294901760
    %318 = vmatpush1.msra.mxu0 %v317
    %319 = vmatprep.subr.mxu0 0.0
    %v320 = vand.u32 %v59, 4294901760
    %321 = vmatpush1.msra.mxu0 %v320
    %322 = vmatprep.subr.mxu0 0.0
    %v323 = vand.u32 %v60, 4294901760
    %324 = vmatpush1.msra.mxu0 %v323
    %325 = vmatprep.subr.mxu0 0.0
    %v326 = vand.u32 %v61, 4294901760
    %327 = vmatpush1.msra.mxu0 %v326
    %328 = vmatprep.subr.mxu0 0.0
    %329 = vmatpush1.msra.mxu0 0.0
    %330 = vmatprep.subr.mxu0 0.0
    %331 = vmatpush1.msra.mxu0 0.0
    %332 = vmatprep.subr.mxu0 0.0
    %333 = vmatpush1.msra.mxu0 0.0
    %334 = vmatprep.subr.mxu0 0.0
    %335 = vmatpush1.msra.mxu0 0.0
    %336 = vmatprep.subr.mxu0 0.0
    %337 = vmatpush1.msra.mxu0 0.0
    %338 = vmatprep.subr.mxu0 0.0
    %339 = vmatpush1.msra.mxu0 0.0
    %340 = vmatprep.subr.mxu0 0.0
    %341 = vmatpush1.msra.mxu0 0.0
    %342 = vmatprep.subr.mxu0 0.0
    %343 = vmatpush1.msra.mxu0 0.0
    %344 = vmatprep.subr.mxu0 0.0
    %345 = vmatpush1.msra.mxu0 0.0
    %346 = vmatprep.subr.mxu0 0.0
    %347 = vmatpush1.msra.mxu0 0.0
    %348 = vmatprep.subr.mxu0 0.0
    %349 = vmatpush1.msra.mxu0 0.0
    %350 = vmatprep.subr.mxu0 0.0
    %351 = vmatpush1.msra.mxu0 0.0
    %352 = vmatprep.subr.mxu0 0.0
    %353 = vmatpush1.msra.mxu0 0.0
    %354 = vmatprep.subr.mxu0 0.0
    %355 = vmatpush1.msra.mxu0 0.0
    %356 = vmatprep.subr.mxu0 0.0
    %357 = vmatpush1.msra.mxu0 0.0
    %358 = vmatprep.subr.mxu0 0.0
    %359 = vmatpush1.msra.mxu0 0.0
    %360 = vmatprep.subr.mxu0 0.0
    %361 = vmatpush1.msra.mxu0 0.0
    %362 = vmatprep.subr.mxu0 0.0
    %363 = vmatpush1.msra.mxu0 0.0
    %364 = vmatprep.subr.mxu0 0.0
    %365 = vmatpush1.msra.mxu0 0.0
    %366 = vmatprep.subr.mxu0 0.0
    %367 = vmatpush1.msra.mxu0 0.0
    %368 = vmatprep.subr.mxu0 0.0
    %369 = vmatpush1.msra.mxu0 0.0
    %370 = vmatprep.subr.mxu0 0.0
    %371 = vmatpush1.msra.mxu0 0.0
    %372 = vmatprep.subr.mxu0 0.0
    %373 = vmatpush1.msra.mxu0 0.0
    %374 = vmatprep.subr.mxu0 0.0
    %375 = vmatpush1.msra.mxu0 0.0
    %376 = vmatprep.subr.mxu0 0.0
    %377 = vmatpush1.msra.mxu0 0.0
    %378 = vmatprep.subr.mxu0 0.0
    %379 = vmatpush1.msra.mxu0 0.0
    %380 = vmatprep.subr.mxu0 0.0
    %381 = vmatpush1.msra.mxu0 0.0
    %382 = vmatprep.subr.mxu0 0.0
    %383 = vmatpush1.msra.mxu0 0.0
    %384 = vmatprep.mubr.f32.mxu0 0.0
    %v385 = vand.u32 %v64, 4294901760
    %v386 = vsub.f32 %v64, %v385
    %v387 = vand.u32 %v386, 4294901760
    %388 = vmatmul.mubr.f32.gmra.mrb[0].mxu0 %v387
    %v389 = vpop.f32.mrb[0].mxu0
    %v390 = vadd.f32 %v313, %v389
    %v391 = vpop.f32.mrb[0].mxu0
    %392 = vdwg.mxu0
    %393 = vmatprep.subr.mxu0 0.0
    %v394 = vand.u32 %v58, 4294901760
    %v395 = vsub.f32 %v58, %v394
    %v396 = vand.u32 %v395, 4294901760
    %397 = vmatpush1.msra.mxu0 %v396
    %398 = vmatprep.subr.mxu0 0.0
    %v399 = vand.u32 %v59, 4294901760
    %v400 = vsub.f32 %v59, %v399
    %v401 = vand.u32 %v400, 4294901760
    %402 = vmatpush1.msra.mxu0 %v401
    %403 = vmatprep.subr.mxu0 0.0
    %v404 = vand.u32 %v60, 4294901760
    %v405 = vsub.f32 %v60, %v404
    %v406 = vand.u32 %v405, 4294901760
    %407 = vmatpush1.msra.mxu0 %v406
    %408 = vmatprep.subr.mxu0 0.0
    %v409 = vand.u32 %v61, 4294901760
    %v410 = vsub.f32 %v61, %v409
    %v411 = vand.u32 %v410, 4294901760
    %412 = vmatpush1.msra.mxu0 %v411
    %413 = vmatprep.subr.mxu0 0.0
    %414 = vmatpush1.msra.mxu0 0.0
    %415 = vmatprep.subr.mxu0 0.0
    %416 = vmatpush1.msra.mxu0 0.0
    %417 = vmatprep.subr.mxu0 0.0
    %418 = vmatpush1.msra.mxu0 0.0
    %419 = vmatprep.subr.mxu0 0.0
    %420 = vmatpush1.msra.mxu0 0.0
    %421 = vmatprep.subr.mxu0 0.0
    %422 = vmatpush1.msra.mxu0 0.0
    %423 = vmatprep.subr.mxu0 0.0
    %424 = vmatpush1.msra.mxu0 0.0
    %425 = vmatprep.subr.mxu0 0.0
    %426 = vmatpush1.msra.mxu0 0.0
    %427 = vmatprep.subr.mxu0 0.0
    %428 = vmatpush1.msra.mxu0 0.0
    %429 = vmatprep.subr.mxu0 0.0
    %430 = vmatpush1.msra.mxu0 0.0
    %431 = vmatprep.subr.mxu0 0.0
    %432 = vmatpush1.msra.mxu0 0.0
    %433 = vmatprep.subr.mxu0 0.0
    %434 = vmatpush1.msra.mxu0 0.0
    %435 = vmatprep.subr.mxu0 0.0
    %436 = vmatpush1.msra.mxu0 0.0
    %437 = vmatprep.subr.mxu0 0.0
    %438 = vmatpush1.msra.mxu0 0.0
    %439 = vmatprep.subr.mxu0 0.0
    %440 = vmatpush1.msra.mxu0 0.0
    %441 = vmatprep.subr.mxu0 0.0
    %442 = vmatpush1.msra.mxu0 0.0
    %443 = vmatprep.subr.mxu0 0.0
    %444 = vmatpush1.msra.mxu0 0.0
    %445 = vmatprep.subr.mxu0 0.0
    %446 = vmatpush1.msra.mxu0 0.0
    %447 = vmatprep.subr.mxu0 0.0
    %448 = vmatpush1.msra.mxu0 0.0
    %449 = vmatprep.subr.mxu0 0.0
    %450 = vmatpush1.msra.mxu0 0.0
    %451 = vmatprep.subr.mxu0 0.0
    %452 = vmatpush1.msra.mxu0 0.0
    %453 = vmatprep.subr.mxu0 0.0
    %454 = vmatpush1.msra.mxu0 0.0
    %455 = vmatprep.subr.mxu0 0.0
    %456 = vmatpush1.msra.mxu0 0.0
    %457 = vmatprep.subr.mxu0 0.0
    %458 = vmatpush1.msra.mxu0 0.0
    %459 = vmatprep.subr.mxu0 0.0
    %460 = vmatpush1.msra.mxu0 0.0
    %461 = vmatprep.subr.mxu0 0.0
    %462 = vmatpush1.msra.mxu0 0.0
    %463 = vmatprep.subr.mxu0 0.0
    %464 = vmatpush1.msra.mxu0 0.0
    %465 = vmatprep.subr.mxu0 0.0
    %466 = vmatpush1.msra.mxu0 0.0
    %467 = vmatprep.subr.mxu0 0.0
    %468 = vmatpush1.msra.mxu0 0.0
    %469 = vmatprep.mubr.f32.mxu0 0.0
    %v470 = vand.u32 %v64, 4294901760
    %471 = vmatmul.mubr.f32.gmra.mrb[0].mxu0 %v470
    %v472 = vpop.f32.mrb[0].mxu0
    %v473 = vadd.f32 %v390, %v472
    %v474 = vpop.f32.mrb[0].mxu0
    %475 = vdwg.mxu0
    %476 = vmatprep.subr.mxu0 0.0
    %v477 = vand.u32 %v58, 4294901760
    %478 = vmatpush1.msra.mxu0 %v477
    %479 = vmatprep.subr.mxu0 0.0
    %v480 = vand.u32 %v59, 4294901760
    %481 = vmatpush1.msra.mxu0 %v480
    %482 = vmatprep.subr.mxu0 0.0
    %v483 = vand.u32 %v60, 4294901760
    %484 = vmatpush1.msra.mxu0 %v483
    %485 = vmatprep.subr.mxu0 0.0
    %v486 = vand.u32 %v61, 4294901760
    %487 = vmatpush1.msra.mxu0 %v486
    %488 = vmatprep.subr.mxu0 0.0
    %489 = vmatpush1.msra.mxu0 0.0
    %490 = vmatprep.subr.mxu0 0.0
    %491 = vmatpush1.msra.mxu0 0.0
    %492 = vmatprep.subr.mxu0 0.0
    %493 = vmatpush1.msra.mxu0 0.0
    %494 = vmatprep.subr.mxu0 0.0
    %495 = vmatpush1.msra.mxu0 0.0
    %496 = vmatprep.subr.mxu0 0.0
    %497 = vmatpush1.msra.mxu0 0.0
    %498 = vmatprep.subr.mxu0 0.0
    %499 = vmatpush1.msra.mxu0 0.0
    %500 = vmatprep.subr.mxu0 0.0
    %501 = vmatpush1.msra.mxu0 0.0
    %502 = vmatprep.subr.mxu0 0.0
    %503 = vmatpush1.msra.mxu0 0.0
    %504 = vmatprep.subr.mxu0 0.0
    %505 = vmatpush1.msra.mxu0 0.0
    %506 = vmatprep.subr.mxu0 0.0
    %507 = vmatpush1.msra.mxu0 0.0
    %508 = vmatprep.subr.mxu0 0.0
    %509 = vmatpush1.msra.mxu0 0.0
    %510 = vmatprep.subr.mxu0 0.0
    %511 = vmatpush1.msra.mxu0 0.0
    %512 = vmatprep.subr.mxu0 0.0
    %513 = vmatpush1.msra.mxu0 0.0
    %514 = vmatprep.subr.mxu0 0.0
    %515 = vmatpush1.msra.mxu0 0.0
    %516 = vmatprep.subr.mxu0 0.0
    %517 = vmatpush1.msra.mxu0 0.0
    %518 = vmatprep.subr.mxu0 0.0
    %519 = vmatpush1.msra.mxu0 0.0
    %520 = vmatprep.subr.mxu0 0.0
    %521 = vmatpush1.msra.mxu0 0.0
    %522 = vmatprep.subr.mxu0 0.0
    %523 = vmatpush1.msra.mxu0 0.0
    %524 = vmatprep.subr.mxu0 0.0
    %525 = vmatpush1.msra.mxu0 0.0
    %526 = vmatprep.subr.mxu0 0.0
    %527 = vmatpush1.msra.mxu0 0.0
    %528 = vmatprep.subr.mxu0 0.0
    %529 = vmatpush1.msra.mxu0 0.0
    %530 = vmatprep.subr.mxu0 0.0
    %531 = vmatpush1.msra.mxu0 0.0
    %532 = vmatprep.subr.mxu0 0.0
    %533 = vmatpush1.msra.mxu0 0.0
    %534 = vmatprep.subr.mxu0 0.0
    %535 = vmatpush1.msra.mxu0 0.0
    %536 = vmatprep.subr.mxu0 0.0
    %537 = vmatpush1.msra.mxu0 0.0
    %538 = vmatprep.subr.mxu0 0.0
    %539 = vmatpush1.msra.mxu0 0.0
    %540 = vmatprep.subr.mxu0 0.0
    %541 = vmatpush1.msra.mxu0 0.0
    %542 = vmatprep.subr.mxu0 0.0
    %543 = vmatpush1.msra.mxu0 0.0
    %544 = vmatprep.mubr.f32.mxu0 0.0
    %v545 = vand.u32 %v64, 4294901760
    %546 = vmatmul.mubr.f32.gmra.mrb[0].mxu0 %v545
    %v547 = vpop.f32.mrb[0].mxu0
    %v548 = vadd.f32 %v473, %v547
    %v549 = vpop.f32.mrb[0].mxu0
    %550 = vdwg.mxu0
    %v552 = vsel %vm62, %v52, 0
    %554 = vmatprep.subr.mxu0 0.0
    %v555 = vand.u32 %v54, 4294901760
    %556 = vmatpush1.msra.mxu0 %v555
    %557 = vmatprep.subr.mxu0 0.0
    %v558 = vand.u32 %v55, 4294901760
    %559 = vmatpush1.msra.mxu0 %v558
    %560 = vmatprep.subr.mxu0 0.0
    %v561 = vand.u32 %v56, 4294901760
    %562 = vmatpush1.msra.mxu0 %v561
    %563 = vmatprep.subr.mxu0 0.0
    %v564 = vand.u32 %v57, 4294901760
    %565 = vmatpush1.msra.mxu0 %v564
    %566 = vmatprep.subr.mxu0 0.0
    %567 = vmatpush1.msra.mxu0 0.0
    %568 = vmatprep.subr.mxu0 0.0
    %569 = vmatpush1.msra.mxu0 0.0
    %570 = vmatprep.subr.mxu0 0.0
    %571 = vmatpush1.msra.mxu0 0.0
    %572 = vmatprep.subr.mxu0 0.0
    %573 = vmatpush1.msra.mxu0 0.0
    %574 = vmatprep.subr.mxu0 0.0
    %575 = vmatpush1.msra.mxu0 0.0
    %576 = vmatprep.subr.mxu0 0.0
    %577 = vmatpush1.msra.mxu0 0.0
    %578 = vmatprep.subr.mxu0 0.0
    %579 = vmatpush1.msra.mxu0 0.0
    %580 = vmatprep.subr.mxu0 0.0
    %581 = vmatpush1.msra.mxu0 0.0
    %582 = vmatprep.subr.mxu0 0.0
    %583 = vmatpush1.msra.mxu0 0.0
    %584 = vmatprep.subr.mxu0 0.0
    %585 = vmatpush1.msra.mxu0 0.0
    %586 = vmatprep.subr.mxu0 0.0
    %587 = vmatpush1.msra.mxu0 0.0
    %588 = vmatprep.subr.mxu0 0.0
    %589 = vmatpush1.msra.mxu0 0.0
    %590 = vmatprep.subr.mxu0 0.0
    %591 = vmatpush1.msra.mxu0 0.0
    %592 = vmatprep.subr.mxu0 0.0
    %593 = vmatpush1.msra.mxu0 0.0
    %594 = vmatprep.subr.mxu0 0.0
    %595 = vmatpush1.msra.mxu0 0.0
    %596 = vmatprep.subr.mxu0 0.0
    %597 = vmatpush1.msra.mxu0 0.0
    %598 = vmatprep.subr.mxu0 0.0
    %599 = vmatpush1.msra.mxu0 0.0
    %600 = vmatprep.subr.mxu0 0.0
    %601 = vmatpush1.msra.mxu0 0.0
    %602 = vmatprep.subr.mxu0 0.0
    %603 = vmatpush1.msra.mxu0 0.0
    %604 = vmatprep.subr.mxu0 0.0
    %605 = vmatpush1.msra.mxu0 0.0
    %606 = vmatprep.subr.mxu0 0.0
    %607 = vmatpush1.msra.mxu0 0.0
    %608 = vmatprep.subr.mxu0 0.0
    %609 = vmatpush1.msra.mxu0 0.0
    %610 = vmatprep.subr.mxu0 0.0
    %611 = vmatpush1.msra.mxu0 0.0
    %612 = vmatprep.subr.mxu0 0.0
    %613 = vmatpush1.msra.mxu0 0.0
    %614 = vmatprep.subr.mxu0 0.0
    %615 = vmatpush1.msra.mxu0 0.0
    %616 = vmatprep.subr.mxu0 0.0
    %617 = vmatpush1.msra.mxu0 0.0
    %618 = vmatprep.subr.mxu0 0.0
    %619 = vmatpush1.msra.mxu0 0.0
    %620 = vmatprep.subr.mxu0 0.0
    %621 = vmatpush1.msra.mxu0 0.0
    %622 = vmatprep.mubr.f32.mxu0 0.0
    %v623 = vand.u32 %v552, 4294901760
    %v624 = vsub.f32 %v552, %v623
    %v625 = vand.u32 %v624, 4294901760
    %v626 = vsub.f32 %v624, %v625
    %v627 = vand.u32 %v626, 4294901760
    %628 = vmatmul.mubr.f32.gmra.mrb[0].mxu0 %v627
    %v629 = vpop.f32.mrb[0].mxu0
    %v630 = vadd.f32 %v548, %v629
    %v631 = vpop.f32.mrb[0].mxu0
    %632 = vdwg.mxu0
    %633 = vmatprep.subr.mxu0 0.0
    %v634 = vand.u32 %v54, 4294901760
    %v635 = vsub.f32 %v54, %v634
    %v636 = vand.u32 %v635, 4294901760
    %v637 = vsub.f32 %v635, %v636
    %v638 = vand.u32 %v637, 4294901760
    %639 = vmatpush1.msra.mxu0 %v638
    %640 = vmatprep.subr.mxu0 0.0
    %v641 = vand.u32 %v55, 4294901760
    %v642 = vsub.f32 %v55, %v641
    %v643 = vand.u32 %v642, 4294901760
    %v644 = vsub.f32 %v642, %v643
    %v645 = vand.u32 %v644, 4294901760
    %646 = vmatpush1.msra.mxu0 %v645
    %647 = vmatprep.subr.mxu0 0.0
    %v648 = vand.u32 %v56, 4294901760
    %v649 = vsub.f32 %v56, %v648
    %v650 = vand.u32 %v649, 4294901760
    %v651 = vsub.f32 %v649, %v650
    %v652 = vand.u32 %v651, 4294901760
    %653 = vmatpush1.msra.mxu0 %v652
    %654 = vmatprep.subr.mxu0 0.0
    %v655 = vand.u32 %v57, 4294901760
    %v656 = vsub.f32 %v57, %v655
    %v657 = vand.u32 %v656, 4294901760
    %v658 = vsub.f32 %v656, %v657
    %v659 = vand.u32 %v658, 4294901760
    %660 = vmatpush1.msra.mxu0 %v659
    %661 = vmatprep.subr.mxu0 0.0
    %662 = vmatpush1.msra.mxu0 0.0
    %663 = vmatprep.subr.mxu0 0.0
    %664 = vmatpush1.msra.mxu0 0.0
    %665 = vmatprep.subr.mxu0 0.0
    %666 = vmatpush1.msra.mxu0 0.0
    %667 = vmatprep.subr.mxu0 0.0
    %668 = vmatpush1.msra.mxu0 0.0
    %669 = vmatprep.subr.mxu0 0.0
    %670 = vmatpush1.msra.mxu0 0.0
    %671 = vmatprep.subr.mxu0 0.0
    %672 = vmatpush1.msra.mxu0 0.0
    %673 = vmatprep.subr.mxu0 0.0
    %674 = vmatpush1.msra.mxu0 0.0
    %675 = vmatprep.subr.mxu0 0.0
    %676 = vmatpush1.msra.mxu0 0.0
    %677 = vmatprep.subr.mxu0 0.0
    %678 = vmatpush1.msra.mxu0 0.0
    %679 = vmatprep.subr.mxu0 0.0
    %680 = vmatpush1.msra.mxu0 0.0
    %681 = vmatprep.subr.mxu0 0.0
    %682 = vmatpush1.msra.mxu0 0.0
    %683 = vmatprep.subr.mxu0 0.0
    %684 = vmatpush1.msra.mxu0 0.0
    %685 = vmatprep.subr.mxu0 0.0
    %686 = vmatpush1.msra.mxu0 0.0
    %687 = vmatprep.subr.mxu0 0.0
    %688 = vmatpush1.msra.mxu0 0.0
    %689 = vmatprep.subr.mxu0 0.0
    %690 = vmatpush1.msra.mxu0 0.0
    %691 = vmatprep.subr.mxu0 0.0
    %692 = vmatpush1.msra.mxu0 0.0
    %693 = vmatprep.subr.mxu0 0.0
    %694 = vmatpush1.msra.mxu0 0.0
    %695 = vmatprep.subr.mxu0 0.0
    %696 = vmatpush1.msra.mxu0 0.0
    %697 = vmatprep.subr.mxu0 0.0
    %698 = vmatpush1.msra.mxu0 0.0
    %699 = vmatprep.subr.mxu0 0.0
    %700 = vmatpush1.msra.mxu0 0.0
    %701 = vmatprep.subr.mxu0 0.0
    %702 = vmatpush1.msra.mxu0 0.0
    %703 = vmatprep.subr.mxu0 0.0
    %704 = vmatpush1.msra.mxu0 0.0
    %705 = vmatprep.subr.mxu0 0.0
    %706 = vmatpush1.msra.mxu0 0.0
    %707 = vmatprep.subr.mxu0 0.0
    %708 = vmatpush1.msra.mxu0 0.0
    %709 = vmatprep.subr.mxu0 0.0
    %710 = vmatpush1.msra.mxu0 0.0
    %711 = vmatprep.subr.mxu0 0.0
    %712 = vmatpush1.msra.mxu0 0.0
    %713 = vmatprep.subr.mxu0 0.0
    %714 = vmatpush1.msra.mxu0 0.0
    %715 = vmatprep.subr.mxu0 0.0
    %716 = vmatpush1.msra.mxu0 0.0
    %717 = vmatprep.mubr.f32.mxu0 0.0
    %v718 = vand.u32 %v552, 4294901760
    %719 = vmatmul.mubr.f32.gmra.mrb[0].mxu0 %v718
    %v720 = vpop.f32.mrb[0].mxu0
    %v721 = vadd.f32 %v630, %v720
    %v722 = vpop.f32.mrb[0].mxu0
    %723 = vdwg.mxu0
    %724 = vmatprep.subr.mxu0 0.0
    %v725 = vand.u32 %v54, 4294901760
    %v726 = vsub.f32 %v54, %v725
    %727 = vmatpush1.msra.mxu0 %v726
    %728 = vmatprep.subr.mxu0 0.0
    %v729 = vand.u32 %v55, 4294901760
    %v730 = vsub.f32 %v55, %v729
    %731 = vmatpush1.msra.mxu0 %v730
    %732 = vmatprep.subr.mxu0 0.0
    %v733 = vand.u32 %v56, 4294901760
    %v734 = vsub.f32 %v56, %v733
    %735 = vmatpush1.msra.mxu0 %v734
    %736 = vmatprep.subr.mxu0 0.0
    %v737 = vand.u32 %v57, 4294901760
    %v738 = vsub.f32 %v57, %v737
    %739 = vmatpush1.msra.mxu0 %v738
    %740 = vmatprep.subr.mxu0 0.0
    %741 = vmatpush1.msra.mxu0 0.0
    %742 = vmatprep.subr.mxu0 0.0
    %743 = vmatpush1.msra.mxu0 0.0
    %744 = vmatprep.subr.mxu0 0.0
    %745 = vmatpush1.msra.mxu0 0.0
    %746 = vmatprep.subr.mxu0 0.0
    %747 = vmatpush1.msra.mxu0 0.0
    %748 = vmatprep.subr.mxu0 0.0
    %749 = vmatpush1.msra.mxu0 0.0
    %750 = vmatprep.subr.mxu0 0.0
    %751 = vmatpush1.msra.mxu0 0.0
    %752 = vmatprep.subr.mxu0 0.0
    %753 = vmatpush1.msra.mxu0 0.0
    %754 = vmatprep.subr.mxu0 0.0
    %755 = vmatpush1.msra.mxu0 0.0
    %756 = vmatprep.subr.mxu0 0.0
    %757 = vmatpush1.msra.mxu0 0.0
    %758 = vmatprep.subr.mxu0 0.0
    %759 = vmatpush1.msra.mxu0 0.0
    %760 = vmatprep.subr.mxu0 0.0
    %761 = vmatpush1.msra.mxu0 0.0
    %762 = vmatprep.subr.mxu0 0.0
    %763 = vmatpush1.msra.mxu0 0.0
    %764 = vmatprep.subr.mxu0 0.0
    %765 = vmatpush1.msra.mxu0 0.0
    %766 = vmatprep.subr.mxu0 0.0
    %767 = vmatpush1.msra.mxu0 0.0
    %768 = vmatprep.subr.mxu0 0.0
    %769 = vmatpush1.msra.mxu0 0.0
    %770 = vmatprep.subr.mxu0 0.0
    %771 = vmatpush1.msra.mxu0 0.0
    %772 = vmatprep.subr.mxu0 0.0
    %773 = vmatpush1.msra.mxu0 0.0
    %774 = vmatprep.subr.mxu0 0.0
    %775 = vmatpush1.msra.mxu0 0.0
    %776 = vmatprep.subr.mxu0 0.0
    %777 = vmatpush1.msra.mxu0 0.0
    %778 = vmatprep.subr.mxu0 0.0
    %779 = vmatpush1.msra.mxu0 0.0
    %780 = vmatprep.subr.mxu0 0.0
    %781 = vmatpush1.msra.mxu0 0.0
    %782 = vmatprep.subr.mxu0 0.0
    %783 = vmatpush1.msra.mxu0 0.0
    %784 = vmatprep.subr.mxu0 0.0
    %785 = vmatpush1.msra.mxu0 0.0
    %786 = vmatprep.subr.mxu0 0.0
    %787 = vmatpush1.msra.mxu0 0.0
    %788 = vmatprep.subr.mxu0 0.0
    %789 = vmatpush1.msra.mxu0 0.0
    %790 = vmatprep.subr.mxu0 0.0
    %791 = vmatpush1.msra.mxu0 0.0
    %792 = vmatprep.subr.mxu0 0.0
    %793 = vmatpush1.msra.mxu0 0.0
    %794 = vmatprep.subr.mxu0 0.0
    %795 = vmatpush1.msra.mxu0 0.0
    %796 = vmatprep.mubr.f32.mxu0 0.0
    %v797 = vand.u32 %v552, 4294901760
    %v798 = vsub.f32 %v552, %v797
    %799 = vmatmul.mubr.f32.gmra.mrb[0].mxu0 %v798
    %v800 = vpop.f32.mrb[0].mxu0
    %v801 = vadd.f32 %v721, %v800
    %v802 = vpop.f32.mrb[0].mxu0
    %803 = vdwg.mxu0
    %804 = vmatprep.subr.mxu0 0.0
    %v805 = vand.u32 %v54, 4294901760
    %806 = vmatpush1.msra.mxu0 %v805
    %807 = vmatprep.subr.mxu0 0.0
    %v808 = vand.u32 %v55, 4294901760
    %809 = vmatpush1.msra.mxu0 %v808
    %810 = vmatprep.subr.mxu0 0.0
    %v811 = vand.u32 %v56, 4294901760
    %812 = vmatpush1.msra.mxu0 %v811
    %813 = vmatprep.subr.mxu0 0.0
    %v814 = vand.u32 %v57, 4294901760
    %815 = vmatpush1.msra.mxu0 %v814
    %816 = vmatprep.subr.mxu0 0.0
    %817 = vmatpush1.msra.mxu0 0.0
    %818 = vmatprep.subr.mxu0 0.0
    %819 = vmatpush1.msra.mxu0 0.0
    %820 = vmatprep.subr.mxu0 0.0
    %821 = vmatpush1.msra.mxu0 0.0
    %822 = vmatprep.subr.mxu0 0.0
    %823 = vmatpush1.msra.mxu0 0.0
    %824 = vmatprep.subr.mxu0 0.0
    %825 = vmatpush1.msra.mxu0 0.0
    %826 = vmatprep.subr.mxu0 0.0
    %827 = vmatpush1.msra.mxu0 0.0
    %828 = vmatprep.subr.mxu0 0.0
    %829 = vmatpush1.msra.mxu0 0.0
    %830 = vmatprep.subr.mxu0 0.0
    %831 = vmatpush1.msra.mxu0 0.0
    %832 = vmatprep.subr.mxu0 0.0
    %833 = vmatpush1.msra.mxu0 0.0
    %834 = vmatprep.subr.mxu0 0.0
    %835 = vmatpush1.msra.mxu0 0.0
    %836 = vmatprep.subr.mxu0 0.0
    %837 = vmatpush1.msra.mxu0 0.0
    %838 = vmatprep.subr.mxu0 0.0
    %839 = vmatpush1.msra.mxu0 0.0
    %840 = vmatprep.subr.mxu0 0.0
    %841 = vmatpush1.msra.mxu0 0.0
    %842 = vmatprep.subr.mxu0 0.0
    %843 = vmatpush1.msra.mxu0 0.0
    %844 = vmatprep.subr.mxu0 0.0
    %845 = vmatpush1.msra.mxu0 0.0
    %846 = vmatprep.subr.mxu0 0.0
    %847 = vmatpush1.msra.mxu0 0.0
    %848 = vmatprep.subr.mxu0 0.0
    %849 = vmatpush1.msra.mxu0 0.0
    %850 = vmatprep.subr.mxu0 0.0
    %851 = vmatpush1.msra.mxu0 0.0
    %852 = vmatprep.subr.mxu0 0.0
    %853 = vmatpush1.msra.mxu0 0.0
    %854 = vmatprep.subr.mxu0 0.0
    %855 = vmatpush1.msra.mxu0 0.0
    %856 = vmatprep.subr.mxu0 0.0
    %857 = vmatpush1.msra.mxu0 0.0
    %858 = vmatprep.subr.mxu0 0.0
    %859 = vmatpush1.msra.mxu0 0.0
    %860 = vmatprep.subr.mxu0 0.0
    %861 = vmatpush1.msra.mxu0 0.0
    %862 = vmatprep.subr.mxu0 0.0
    %863 = vmatpush1.msra.mxu0 0.0
    %864 = vmatprep.subr.mxu0 0.0
    %865 = vmatpush1.msra.mxu0 0.0
    %866 = vmatprep.subr.mxu0 0.0
    %867 = vmatpush1.msra.mxu0 0.0
    %868 = vmatprep.subr.mxu0 0.0
    %869 = vmatpush1.msra.mxu0 0.0
    %870 = vmatprep.subr.mxu0 0.0
    %871 = vmatpush1.msra.mxu0 0.0
    %872 = vmatprep.mubr.f32.mxu0 0.0
    %v873 = vand.u32 %v552, 4294901760
    %v874 = vsub.f32 %v552, %v873
    %v875 = vand.u32 %v874, 4294901760
    %876 = vmatmul.mubr.f32.gmra.mrb[0].mxu0 %v875
    %v877 = vpop.f32.mrb[0].mxu0
    %v878 = vadd.f32 %v801, %v877
    %v879 = vpop.f32.mrb[0].mxu0
    %880 = vdwg.mxu0
    %881 = vmatprep.subr.mxu0 0.0
    %v882 = vand.u32 %v54, 4294901760
    %v883 = vsub.f32 %v54, %v882
    %v884 = vand.u32 %v883, 4294901760
    %885 = vmatpush1.msra.mxu0 %v884
    %886 = vmatprep.subr.mxu0 0.0
    %v887 = vand.u32 %v55, 4294901760
    %v888 = vsub.f32 %v55, %v887
    %v889 = vand.u32 %v888, 4294901760
    %890 = vmatpush1.msra.mxu0 %v889
    %891 = vmatprep.subr.mxu0 0.0
    %v892 = vand.u32 %v56, 4294901760
    %v893 = vsub.f32 %v56, %v892
    %v894 = vand.u32 %v893, 4294901760
    %895 = vmatpush1.msra.mxu0 %v894
    %896 = vmatprep.subr.mxu0 0.0
    %v897 = vand.u32 %v57, 4294901760
    %v898 = vsub.f32 %v57, %v897
    %v899 = vand.u32 %v898, 4294901760
    %900 = vmatpush1.msra.mxu0 %v899
    %901 = vmatprep.subr.mxu0 0.0
    %902 = vmatpush1.msra.mxu0 0.0
    %903 = vmatprep.subr.mxu0 0.0
    %904 = vmatpush1.msra.mxu0 0.0
    %905 = vmatprep.subr.mxu0 0.0
    %906 = vmatpush1.msra.mxu0 0.0
    %907 = vmatprep.subr.mxu0 0.0
    %908 = vmatpush1.msra.mxu0 0.0
    %909 = vmatprep.subr.mxu0 0.0
    %910 = vmatpush1.msra.mxu0 0.0
    %911 = vmatprep.subr.mxu0 0.0
    %912 = vmatpush1.msra.mxu0 0.0
    %913 = vmatprep.subr.mxu0 0.0
    %914 = vmatpush1.msra.mxu0 0.0
    %915 = vmatprep.subr.mxu0 0.0
    %916 = vmatpush1.msra.mxu0 0.0
    %917 = vmatprep.subr.mxu0 0.0
    %918 = vmatpush1.msra.mxu0 0.0
    %919 = vmatprep.subr.mxu0 0.0
    %920 = vmatpush1.msra.mxu0 0.0
    %921 = vmatprep.subr.mxu0 0.0
    %922 = vmatpush1.msra.mxu0 0.0
    %923 = vmatprep.subr.mxu0 0.0
    %924 = vmatpush1.msra.mxu0 0.0
    %925 = vmatprep.subr.mxu0 0.0
    %926 = vmatpush1.msra.mxu0 0.0
    %927 = vmatprep.subr.mxu0 0.0
    %928 = vmatpush1.msra.mxu0 0.0
    %929 = vmatprep.subr.mxu0 0.0
    %930 = vmatpush1.msra.mxu0 0.0
    %931 = vmatprep.subr.mxu0 0.0
    %932 = vmatpush1.msra.mxu0 0.0
    %933 = vmatprep.subr.mxu0 0.0
    %934 = vmatpush1.msra.mxu0 0.0
    %935 = vmatprep.subr.mxu0 0.0
    %936 = vmatpush1.msra.mxu0 0.0
    %937 = vmatprep.subr.mxu0 0.0
    %938 = vmatpush1.msra.mxu0 0.0
    %939 = vmatprep.subr.mxu0 0.0
    %940 = vmatpush1.msra.mxu0 0.0
    %941 = vmatprep.subr.mxu0 0.0
    %942 = vmatpush1.msra.mxu0 0.0
    %943 = vmatprep.subr.mxu0 0.0
    %944 = vmatpush1.msra.mxu0 0.0
    %945 = vmatprep.subr.mxu0 0.0
    %946 = vmatpush1.msra.mxu0 0.0
    %947 = vmatprep.subr.mxu0 0.0
    %948 = vmatpush1.msra.mxu0 0.0
    %949 = vmatprep.subr.mxu0 0.0
    %950 = vmatpush1.msra.mxu0 0.0
    %951 = vmatprep.subr.mxu0 0.0
    %952 = vmatpush1.msra.mxu0 0.0
    %953 = vmatprep.subr.mxu0 0.0
    %954 = vmatpush1.msra.mxu0 0.0
    %955 = vmatprep.subr.mxu0 0.0
    %956 = vmatpush1.msra.mxu0 0.0
    %957 = vmatprep.mubr.f32.mxu0 0.0
    %v958 = vand.u32 %v552, 4294901760
    %959 = vmatmul.mubr.f32.gmra.mrb[0].mxu0 %v958
    %v960 = vpop.f32.mrb[0].mxu0
    %v961 = vadd.f32 %v878, %v960
    %v962 = vpop.f32.mrb[0].mxu0
    %963 = vdwg.mxu0
    %964 = vmatprep.subr.mxu0 0.0
    %v965 = vand.u32 %v54, 4294901760
    %966 = vmatpush1.msra.mxu0 %v965
    %967 = vmatprep.subr.mxu0 0.0
    %v968 = vand.u32 %v55, 4294901760
    %969 = vmatpush1.msra.mxu0 %v968
    %970 = vmatprep.subr.mxu0 0.0
    %v971 = vand.u32 %v56, 4294901760
    %972 = vmatpush1.msra.mxu0 %v971
    %973 = vmatprep.subr.mxu0 0.0
    %v974 = vand.u32 %v57, 4294901760
    %975 = vmatpush1.msra.mxu0 %v974
    %976 = vmatprep.subr.mxu0 0.0
    %977 = vmatpush1.msra.mxu0 0.0
    %978 = vmatprep.subr.mxu0 0.0
    %979 = vmatpush1.msra.mxu0 0.0
    %980 = vmatprep.subr.mxu0 0.0
    %981 = vmatpush1.msra.mxu0 0.0
    %982 = vmatprep.subr.mxu0 0.0
    %983 = vmatpush1.msra.mxu0 0.0
    %984 = vmatprep.subr.mxu0 0.0
    %985 = vmatpush1.msra.mxu0 0.0
    %986 = vmatprep.subr.mxu0 0.0
    %987 = vmatpush1.msra.mxu0 0.0
    %988 = vmatprep.subr.mxu0 0.0
    %989 = vmatpush1.msra.mxu0 0.0
    %990 = vmatprep.subr.mxu0 0.0
    %991 = vmatpush1.msra.mxu0 0.0
    %992 = vmatprep.subr.mxu0 0.0
    %993 = vmatpush1.msra.mxu0 0.0
    %994 = vmatprep.subr.mxu0 0.0
    %995 = vmatpush1.msra.mxu0 0.0
    %996 = vmatprep.subr.mxu0 0.0
    %997 = vmatpush1.msra.mxu0 0.0
    %998 = vmatprep.subr.mxu0 0.0
    %999 = vmatpush1.msra.mxu0 0.0
    %1000 = vmatprep.subr.mxu0 0.0
    %1001 = vmatpush1.msra.mxu0 0.0
    %1002 = vmatprep.subr.mxu0 0.0
    %1003 = vmatpush1.msra.mxu0 0.0
    %1004 = vmatprep.subr.mxu0 0.0
    %1005 = vmatpush1.msra.mxu0 0.0
    %1006 = vmatprep.subr.mxu0 0.0
    %1007 = vmatpush1.msra.mxu0 0.0
    %1008 = vmatprep.subr.mxu0 0.0
    %1009 = vmatpush1.msra.mxu0 0.0
    %1010 = vmatprep.subr.mxu0 0.0
    %1011 = vmatpush1.msra.mxu0 0.0
    %1012 = vmatprep.subr.mxu0 0.0
    %1013 = vmatpush1.msra.mxu0 0.0
    %1014 = vmatprep.subr.mxu0 0.0
    %1015 = vmatpush1.msra.mxu0 0.0
    %1016 = vmatprep.subr.mxu0 0.0
    %1017 = vmatpush1.msra.mxu0 0.0
    %1018 = vmatprep.subr.mxu0 0.0
    %1019 = vmatpush1.msra.mxu0 0.0
    %1020 = vmatprep.subr.mxu0 0.0
    %1021 = vmatpush1.msra.mxu0 0.0
    %1022 = vmatprep.subr.mxu0 0.0
    %1023 = vmatpush1.msra.mxu0 0.0
    %1024 = vmatprep.subr.mxu0 0.0
    %1025 = vmatpush1.msra.mxu0 0.0
    %1026 = vmatprep.subr.mxu0 0.0
    %1027 = vmatpush1.msra.mxu0 0.0
    %1028 = vmatprep.subr.mxu0 0.0
    %1029 = vmatpush1.msra.mxu0 0.0
    %1030 = vmatprep.subr.mxu0 0.0
    %1031 = vmatpush1.msra.mxu0 0.0
    %1032 = vmatprep.mubr.f32.mxu0 0.0
    %v1033 = vand.u32 %v552, 4294901760
    %1034 = vmatmul.mubr.f32.gmra.mrb[0].mxu0 %v1033
    %v1035 = vpop.f32.mrb[0].mxu0
    %v1036 = vadd.f32 %v961, %v1035
    %v1037 = vpop.f32.mrb[0].mxu0
    %1038 = vdwg.mxu0
    %v1039 = vld [vmem:[#allocation7 + $0x160] sm:$0x1]
    %v1040 = vlaneseq
    %v1041 = vshrl.u32 %v1040, 7
    %v1042 = vsub.s32 0, %v1041
    %v1043 = vrot.slane %v1039, %v1042
    %v1044 = vadd.f32 %v1036, %v1043
    %v1045 = vld [vmem:[#allocation7 + $0x161] sm:$0x1]
    %v1046 = vld [vmem:[#allocation7 + $0x162] sm:$0x1]
    %v1047 = vsel %vm62, %v1044, 0.0
    %1048 = vadd.xlane.f32.xlu0 %v1047
    %v1049 = vpop.xlane.xlu0 %1048
    %v1050 = vrcp.pop 32.0
    %v1051 = vmul.f32 %v1049, %v1050
    %v1052 = vsub.f32 %v1044, %v1051
    %v1053 = vmul.f32 %v1052, %v1052
    %v1054 = vsel %vm62, %v1053, 0.0
    %1055 = vadd.xlane.f32.xlu0 %v1054
    %v1056 = vpop.xlane.xlu0 %1055
    %v1057 = vmul.f32 %v1056, %v1050
    %v1058 = vadd.f32 %v1057, 1e-05
    %v1059 = vrsqrt.pop %v1058
    %v1060 = vmul.f32 %v1052, %v1059
    %v1061 = vlaneseq
    %v1062 = vshrl.u32 %v1061, 7
    %v1063 = vsub.s32 0, %v1062
    %v1064 = vrot.slane %v1045, %v1063
    %v1065 = vmul.f32 %v1060, %v1064
    %v1066 = vlaneseq
    %v1067 = vshrl.u32 %v1066, 7
    %v1068 = vsub.s32 0, %v1067
    %v1069 = vrot.slane %v1046, %v1068
    %v1070 = vadd.f32 %v1065, %v1069
    %v1071 = vmul.f32 %v1070, 0.5
    %v1072 = vmul.f32 %v1070, 0.70710677
    %vm1073 = vcmp.lt.f32.partialorder %v1072, 0.0
    %v1074 = vsel %vm1073, -1.0, 1.0
    %v1075 = vand.u32 2147483647, %v1072
    %v1076 = vmul.f32 %v1075, 0.3275911
    %v1077 = vadd.f32 %v1076, 1.0
    %v1078 = vrcp.pop %v1077
    %v1079 = vmul.f32 1.0, %v1078
    %v1080 = vmul.f32 %v1079, 1.0614054
    %v1081 = vadd.f32 %v1080, -1.4531521
    %v1082 = vmul.f32 %v1081, %v1079
    %v1083 = vadd.f32 %v1082, 1.4214138
    %v1084 = vmul.f32 %v1083, %v1079
    %v1085 = vadd.f32 %v1084, -0.28449672
    %v1086 = vmul.f32 %v1085, %v1079
    %v1087 = vadd.f32 %v1086, 0.2548296
    %v1088 = vmul.f32 %v1087, %v1079
    %v1089 = vsub.f32 0.0, %v1075
    %v1090 = vmul.f32 %v1089, %v1075
    %v1091 = vmul.f32 %v1090, 1.442695
    %v1092 = vpow.pop %v1091
    %v1093 = vmul.f32 %v1088, %v1092
    %v1094 = vsub.f32 1.0, %v1093
    %v1095 = vmul.f32 %v1074, %v1094
    %v1096 = vadd.f32 %v1095, 1.0
    %v1097 = vmul.f32 %v1071, %v1096
    %v1098 = vld [vmem:[#allocation7 + $0x40] sm:$0xff]
    %v1099 = vld [vmem:[#allocation7 + $0x48] sm:$0xff]
    %v1100 = vld [vmem:[#allocation7 + $0x50] sm:$0xff]
    %v1101 = vld [vmem:[#allocation7 + $0x58] sm:$0xff]
    %v1102 = vld [vmem:[#allocation7 + $0x163] sm:$0x1]
    %v1103 = vlaneseq
    %v1104 = vshrl.u32 %v1103, 7
    %v1105 = vsub.s32 0, %v1104
    %v1106 = vrot.slane %v1102, %v1105
    %v1108 = vsel %vm62, %v1097, 0
    %1110 = vmatprep.subr.mxu0 0.0
    %v1111 = vand.u32 %v1098, 4294901760
    %1112 = vmatpush1.msra.mxu0 %v1111
    %1113 = vmatprep.subr.mxu0 0.0
    %v1114 = vand.u32 %v1099, 4294901760
    %1115 = vmatpush1.msra.mxu0 %v1114
    %1116 = vmatprep.subr.mxu0 0.0
    %v1117 = vand.u32 %v1100, 4294901760
    %1118 = vmatpush1.msra.mxu0 %v1117
    %1119 = vmatprep.subr.mxu0 0.0
    %v1120 = vand.u32 %v1101, 4294901760
    %1121 = vmatpush1.msra.mxu0 %v1120
    %1122 = vmatprep.subr.mxu0 0.0
    %1123 = vmatpush1.msra.mxu0 0.0
    %1124 = vmatprep.subr.mxu0 0.0
    %1125 = vmatpush1.msra.mxu0 0.0
    %1126 = vmatprep.subr.mxu0 0.0
    %1127 = vmatpush1.msra.mxu0 0.0
    %1128 = vmatprep.subr.mxu0 0.0
    %1129 = vmatpush1.msra.mxu0 0.0
    %1130 = vmatprep.subr.mxu0 0.0
    %1131 = vmatpush1.msra.mxu0 0.0
    %1132 = vmatprep.subr.mxu0 0.0
    %1133 = vmatpush1.msra.mxu0 0.0
    %1134 = vmatprep.subr.mxu0 0.0
    %1135 = vmatpush1.msra.mxu0 0.0
    %1136 = vmatprep.subr.mxu0 0.0
    %1137 = vmatpush1.msra.mxu0 0.0
    %1138 = vmatprep.subr.mxu0 0.0
    %1139 = vmatpush1.msra.mxu0 0.0
    %1140 = vmatprep.subr.mxu0 0.0
    %1141 = vmatpush1.msra.mxu0 0.0
    %1142 = vmatprep.subr.mxu0 0.0
    %1143 = vmatpush1.msra.mxu0 0.0
    %1144 = vmatprep.subr.mxu0 0.0
    %1145 = vmatpush1.msra.mxu0 0.0
    %1146 = vmatprep.subr.mxu0 0.0
    %1147 = vmatpush1.msra.mxu0 0.0
    %1148 = vmatprep.subr.mxu0 0.0
    %1149 = vmatpush1.msra.mxu0 0.0
    %1150 = vmatprep.subr.mxu0 0.0
    %1151 = vmatpush1.msra.mxu0 0.0
    %1152 = vmatprep.subr.mxu0 0.0
    %1153 = vmatpush1.msra.mxu0 0.0
    %1154 = vmatprep.subr.mxu0 0.0
    %1155 = vmatpush1.msra.mxu0 0.0
    %1156 = vmatprep.subr.mxu0 0.0
    %1157 = vmatpush1.msra.mxu0 0.0
    %1158 = vmatprep.subr.mxu0 0.0
    %1159 = vmatpush1.msra.mxu0 0.0
    %1160 = vmatprep.subr.mxu0 0.0
    %1161 = vmatpush1.msra.mxu0 0.0
    %1162 = vmatprep.subr.mxu0 0.0
    %1163 = vmatpush1.msra.mxu0 0.0
    %1164 = vmatprep.subr.mxu0 0.0
    %1165 = vmatpush1.msra.mxu0 0.0
    %1166 = vmatprep.subr.mxu0 0.0
    %1167 = vmatpush1.msra.mxu0 0.0
    %1168 = vmatprep.subr.mxu0 0.0
    %1169 = vmatpush1.msra.mxu0 0.0
    %1170 = vmatprep.subr.mxu0 0.0
    %1171 = vmatpush1.msra.mxu0 0.0
    %1172 = vmatprep.subr.mxu0 0.0
    %1173 = vmatpush1.msra.mxu0 0.0
    %1174 = vmatprep.subr.mxu0 0.0
    %1175 = vmatpush1.msra.mxu0 0.0
    %1176 = vmatprep.subr.mxu0 0.0
    %1177 = vmatpush1.msra.mxu0 0.0
    %1178 = vmatprep.mubr.f32.mxu0 0.0
    %v1179 = vand.u32 %v1108, 4294901760
    %v1180 = vsub.f32 %v1108, %v1179
    %v1181 = vand.u32 %v1180, 4294901760
    %v1182 = vsub.f32 %v1180, %v1181
    %v1183 = vand.u32 %v1182, 4294901760
    %1184 = vmatmul.mubr.f32.gmra.mrb[0].mxu0 %v1183
    %v1185 = vpop.f32.mrb[0].mxu0
    %v1186 = vadd.f32 %v1106, %v1185
    %v1187 = vpop.f32.mrb[0].mxu0
    %1188 = vdwg.mxu0
    %1189 = vmatprep.subr.mxu0 0.0
    %v1190 = vand.u32 %v1098, 4294901760
    %v1191 = vsub.f32 %v1098, %v1190
    %v1192 = vand.u32 %v1191, 4294901760
    %v1193 = vsub.f32 %v1191, %v1192
    %v1194 = vand.u32 %v1193, 4294901760
    %1195 = vmatpush1.msra.mxu0 %v1194
    %1196 = vmatprep.subr.mxu0 0.0
    %v1197 = vand.u32 %v1099, 4294901760
    %v1198 = vsub.f32 %v1099, %v1197
    %v1199 = vand.u32 %v1198, 4294901760
    %v1200 = vsub.f32 %v1198, %v1199
    %v1201 = vand.u32 %v1200, 4294901760
    %1202 = vmatpush1.msra.mxu0 %v1201
    %1203 = vmatprep.subr.mxu0 0.0
    %v1204 = vand.u32 %v1100, 4294901760
    %v1205 = vsub.f32 %v1100, %v1204
    %v1206 = vand.u32 %v1205, 4294901760
    %v1207 = vsub.f32 %v1205, %v1206
    %v1208 = vand.u32 %v1207, 4294901760
    %1209 = vmatpush1.msra.mxu0 %v1208
    %1210 = vmatprep.subr.mxu0 0.0
    %v1211 = vand.u32 %v1101, 4294901760
    %v1212 = vsub.f32 %v1101, %v1211
    %v1213 = vand.u32 %v1212, 4294901760
    %v1214 = vsub.f32 %v1212, %v1213
    %v1215 = vand.u32 %v1214, 4294901760
    %1216 = vmatpush1.msra.mxu0 %v1215
    %1217 = vmatprep.subr.mxu0 0.0
    %1218 = vmatpush1.msra.mxu0 0.0
    %1219 = vmatprep.subr.mxu0 0.0
    %1220 = vmatpush1.msra.mxu0 0.0
    %1221 = vmatprep.subr.mxu0 0.0
    %1222 = vmatpush1.msra.mxu0 0.0
    %1223 = vmatprep.subr.mxu0 0.0
    %1224 = vmatpush1.msra.mxu0 0.0
    %1225 = vmatprep.subr.mxu0 0.0
    %1226 = vmatpush1.msra.mxu0 0.0
    %1227 = vmatprep.subr.mxu0 0.0
    %1228 = vmatpush1.msra.mxu0 0.0
    %1229 = vmatprep.subr.mxu0 0.0
    %1230 = vmatpush1.msra.mxu0 0.0
    %1231 = vmatprep.subr.mxu0 0.0
    %1232 = vmatpush1.msra.mxu0 0.0
    %1233 = vmatprep.subr.mxu0 0.0
    %1234 = vmatpush1.msra.mxu0 0.0
    %1235 = vmatprep.subr.mxu0 0.0
    %1236 = vmatpush1.msra.mxu0 0.0
    %1237 = vmatprep.subr.mxu0 0.0
    %1238 = vmatpush1.msra.mxu0 0.0
    %1239 = vmatprep.subr.mxu0 0.0
    %1240 = vmatpush1.msra.mxu0 0.0
    %1241 = vmatprep.subr.mxu0 0.0
    %1242 = vmatpush1.msra.mxu0 0.0
    %1243 = vmatprep.subr.mxu0 0.0
    %1244 = vmatpush1.msra.mxu0 0.0
    %1245 = vmatprep.subr.mxu0 0.0
    %1246 = vmatpush1.msra.mxu0 0.0
    %1247 = vmatprep.subr.mxu0 0.0
    %1248 = vmatpush1.msra.mxu0 0.0
    %1249 = vmatprep.subr.mxu0 0.0
    %1250 = vmatpush1.msra.mxu0 0.0
    %1251 = vmatprep.subr.mxu0 0.0
    %1252 = vmatpush1.msra.mxu0 0.0
    %1253 = vmatprep.subr.mxu0 0.0
    %1254 = vmatpush1.msra.mxu0 0.0
    %1255 = vmatprep.subr.mxu0 0.0
    %1256 = vmatpush1.msra.mxu0 0.0
    %1257 = vmatprep.subr.mxu0 0.0
    %1258 = vmatpush1.msra.mxu0 0.0
    %1259 = vmatprep.subr.mxu0 0.0
    %1260 = vmatpush1.msra.mxu0 0.0
    %1261 = vmatprep.subr.mxu0 0.0
    %1262 = vmatpush1.msra.mxu0 0.0
    %1263 = vmatprep.subr.mxu0 0.0
    %1264 = vmatpush1.msra.mxu0 0.0
    %1265 = vmatprep.subr.mxu0 0.0
    %1266 = vmatpush1.msra.mxu0 0.0
    %1267 = vmatprep.subr.mxu0 0.0
    %1268 = vmatpush1.msra.mxu0 0.0
    %1269 = vmatprep.subr.mxu0 0.0
    %1270 = vmatpush1.msra.mxu0 0.0
    %1271 = vmatprep.subr.mxu0 0.0
    %1272 = vmatpush1.msra.mxu0 0.0
    %1273 = vmatprep.mubr.f32.mxu0 0.0
    %v1274 = vand.u32 %v1108, 4294901760
    %1275 = vmatmul.mubr.f32.gmra.mrb[0].mxu0 %v1274
    %v1276 = vpop.f32.mrb[0].mxu0
    %v1277 = vadd.f32 %v1186, %v1276
    %v1278 = vpop.f32.mrb[0].mxu0
    %1279 = vdwg.mxu0
    %1280 = vmatprep.subr.mxu0 0.0
    %v1281 = vand.u32 %v1098, 4294901760
    %v1282 = vsub.f32 %v1098, %v1281
    %1283 = vmatpush1.msra.mxu0 %v1282
    %1284 = vmatprep.subr.mxu0 0.0
    %v1285 = vand.u32 %v1099, 4294901760
    %v1286 = vsub.f32 %v1099, %v1285
    %1287 = vmatpush1.msra.mxu0 %v1286
    %1288 = vmatprep.subr.mxu0 0.0
    %v1289 = vand.u32 %v1100, 4294901760
    %v1290 = vsub.f32 %v1100, %v1289
    %1291 = vmatpush1.msra.mxu0 %v1290
    %1292 = vmatprep.subr.mxu0 0.0
    %v1293 = vand.u32 %v1101, 4294901760
    %v1294 = vsub.f32 %v1101, %v1293
    %1295 = vmatpush1.msra.mxu0 %v1294
    %1296 = vmatprep.subr.mxu0 0.0
    %1297 = vmatpush1.msra.mxu0 0.0
    %1298 = vmatprep.subr.mxu0 0.0
    %1299 = vmatpush1.msra.mxu0 0.0
    %1300 = vmatprep.subr.mxu0 0.0
    %1301 = vmatpush1.msra.mxu0 0.0
    %1302 = vmatprep.subr.mxu0 0.0
    %1303 = vmatpush1.msra.mxu0 0.0
    %1304 = vmatprep.subr.mxu0 0.0
    %1305 = vmatpush1.msra.mxu0 0.0
    %1306 = vmatprep.subr.mxu0 0.0
    %1307 = vmatpush1.msra.mxu0 0.0
    %1308 = vmatprep.subr.mxu0 0.0
    %1309 = vmatpush1.msra.mxu0 0.0
    %1310 = vmatprep.subr.mxu0 0.0
    %1311 = vmatpush1.msra.mxu0 0.0
    %1312 = vmatprep.subr.mxu0 0.0
    %1313 = vmatpush1.msra.mxu0 0.0
    %1314 = vmatprep.subr.mxu0 0.0
    %1315 = vmatpush1.msra.mxu0 0.0
    %1316 = vmatprep.subr.mxu0 0.0
    %1317 = vmatpush1.msra.mxu0 0.0
    %1318 = vmatprep.subr.mxu0 0.0
    %1319 = vmatpush1.msra.mxu0 0.0
    %1320 = vmatprep.subr.mxu0 0.0
    %1321 = vmatpush1.msra.mxu0 0.0
    %1322 = vmatprep.subr.mxu0 0.0
    %1323 = vmatpush1.msra.mxu0 0.0
    %1324 = vmatprep.subr.mxu0 0.0
    %1325 = vmatpush1.msra.mxu0 0.0
    %1326 = vmatprep.subr.mxu0 0.0
    %1327 = vmatpush1.msra.mxu0 0.0
    %1328 = vmatprep.subr.mxu0 0.0
    %1329 = vmatpush1.msra.mxu0 0.0
    %1330 = vmatprep.subr.mxu0 0.0
    %1331 = vmatpush1.msra.mxu0 0.0
    %1332 = vmatprep.subr.mxu0 0.0
    %1333 = vmatpush1.msra.mxu0 0.0
    %1334 = vmatprep.subr.mxu0 0.0
    %1335 = vmatpush1.msra.mxu0 0.0
    %1336 = vmatprep.subr.mxu0 0.0
    %1337 = vmatpush1.msra.mxu0 0.0
    %1338 = vmatprep.subr.mxu0 0.0
    %1339 = vmatpush1.msra.mxu0 0.0
    %1340 = vmatprep.subr.mxu0 0.0
    %1341 = vmatpush1.msra.mxu0 0.0
    %1342 = vmatprep.subr.mxu0 0.0
    %1343 = vmatpush1.msra.mxu0 0.0
    %1344 = vmatprep.subr.mxu0 0.0
    %1345 = vmatpush1.msra.mxu0 0.0
    %1346 = vmatprep.subr.mxu0 0.0
    %1347 = vmatpush1.msra.mxu0 0.0
    %1348 = vmatprep.subr.mxu0 0.0
    %1349 = vmatpush1.msra.mxu0 0.0
    %1350 = vmatprep.subr.mxu0 0.0
    %1351 = vmatpush1.msra.mxu0 0.0
    %1352 = vmatprep.mubr.f32.mxu0 0.0
    %v1353 = vand.u32 %v1108, 4294901760
    %v1354 = vsub.f32 %v1108, %v1353
    %1355 = vmatmul.mubr.f32.gmra.mrb[0].mxu0 %v1354
    %v1356 = vpop.f32.mrb[0].mxu0
    %v1357 = vadd.f32 %v1277, %v1356
    %v1358 = vpop.f32.mrb[0].mxu0
    %1359 = vdwg.mxu0
    %1360 = vmatprep.subr.mxu0 0.0
    %v1361 = vand.u32 %v1098, 4294901760
    %1362 = vmatpush1.msra.mxu0 %v1361
    %1363 = vmatprep.subr.mxu0 0.0
    %v1364 = vand.u32 %v1099, 4294901760
    %1365 = vmatpush1.msra.mxu0 %v1364
    %1366 = vmatprep.subr.mxu0 0.0
    %v1367 = vand.u32 %v1100, 4294901760
    %1368 = vmatpush1.msra.mxu0 %v1367
    %1369 = vmatprep.subr.mxu0 0.0
    %v1370 = vand.u32 %v1101, 4294901760
    %1371 = vmatpush1.msra.mxu0 %v1370
    %1372 = vmatprep.subr.mxu0 0.0
    %1373 = vmatpush1.msra.mxu0 0.0
    %1374 = vmatprep.subr.mxu0 0.0
    %1375 = vmatpush1.msra.mxu0 0.0
    %1376 = vmatprep.subr.mxu0 0.0
    %1377 = vmatpush1.msra.mxu0 0.0
    %1378 = vmatprep.subr.mxu0 0.0
    %1379 = vmatpush1.msra.mxu0 0.0
    %1380 = vmatprep.subr.mxu0 0.0
    %1381 = vmatpush1.msra.mxu0 0.0
    %1382 = vmatprep.subr.mxu0 0.0
    %1383 = vmatpush1.msra.mxu0 0.0
    %1384 = vmatprep.subr.mxu0 0.0
    %1385 = vmatpush1.msra.mxu0 0.0
    %1386 = vmatprep.subr.mxu0 0.0
    %1387 = vmatpush1.msra.mxu0 0.0
    %1388 = vmatprep.subr.mxu0 0.0
    %1389 = vmatpush1.msra.mxu0 0.0
    %1390 = vmatprep.subr.mxu0 0.0
    %1391 = vmatpush1.msra.mxu0 0.0
    %1392 = vmatprep.subr.mxu0 0.0
    %1393 = vmatpush1.msra.mxu0 0.0
    %1394 = vmatprep.subr.mxu0 0.0
    %1395 = vmatpush1.msra.mxu0 0.0
    %1396 = vmatprep.subr.mxu0 0.0
    %1397 = vmatpush1.msra.mxu0 0.0
    %1398 = vmatprep.subr.mxu0 0.0
    %1399 = vmatpush1.msra.mxu0 0.0
    %1400 = vmatprep.subr.mxu0 0.0
    %1401 = vmatpush1.msra.mxu0 0.0
    %1402 = vmatprep.subr.mxu0 0.0
    %1403 = vmatpush1.msra.mxu0 0.0
    %1404 = vmatprep.subr.mxu0 0.0
    %1405 = vmatpush1.msra.mxu0 0.0
    %1406 = vmatprep.subr.mxu0 0.0
    %1407 = vmatpush1.msra.mxu0 0.0
    %1408 = vmatprep.subr.mxu0 0.0
    %1409 = vmatpush1.msra.mxu0 0.0
    %1410 = vmatprep.subr.mxu0 0.0
    %1411 = vmatpush1.msra.mxu0 0.0
    %1412 = vmatprep.subr.mxu0 0.0
    %1413 = vmatpush1.msra.mxu0 0.0
    %1414 = vmatprep.subr.mxu0 0.0
    %1415 = vmatpush1.msra.mxu0 0.0
    %1416 = vmatprep.subr.mxu0 0.0
    %1417 = vmatpush1.msra.mxu0 0.0
    %1418 = vmatprep.subr.mxu0 0.0
    %1419 = vmatpush1.msra.mxu0 0.0
    %1420 = vmatprep.subr.mxu0 0.0
    %1421 = vmatpush1.msra.mxu0 0.0
    %1422 = vmatprep.subr.mxu0 0.0
    %1423 = vmatpush1.msra.mxu0 0.0
    %1424 = vmatprep.subr.mxu0 0.0
    %1425 = vmatpush1.msra.mxu0 0.0
    %1426 = vmatprep.subr.mxu0 0.0
    %1427 = vmatpush1.msra.mxu0 0.0
    %1428 = vmatprep.mubr.f32.mxu0 0.0
    %v1429 = vand.u32 %v1108, 4294901760
    %v1430 = vsub.f32 %v1108, %v1429
    %v1431 = vand.u32 %v1430, 4294901760
    %1432 = vmatmul.mubr.f32.gmra.mrb[0].mxu0 %v1431
    %v1433 = vpop.f32.mrb[0].mxu0
    %v1434 = vadd.f32 %v1357, %v1433
    %v1435 = vpop.f32.mrb[0].mxu0
    %1436 = vdwg.mxu0
    %1437 = vmatprep.subr.mxu0 0.0
    %v1438 = vand.u32 %v1098, 4294901760
    %v1439 = vsub.f32 %v1098, %v1438
    %v1440 = vand.u32 %v1439, 4294901760
    %1441 = vmatpush1.msra.mxu0 %v1440
    %1442 = vmatprep.subr.mxu0 0.0
    %v1443 = vand.u32 %v1099, 4294901760
    %v1444 = vsub.f32 %v1099, %v1443
    %v1445 = vand.u32 %v1444, 4294901760
    %1446 = vmatpush1.msra.mxu0 %v1445
    %1447 = vmatprep.subr.mxu0 0.0
    %v1448 = vand.u32 %v1100, 4294901760
    %v1449 = vsub.f32 %v1100, %v1448
    %v1450 = vand.u32 %v1449, 4294901760
    %1451 = vmatpush1.msra.mxu0 %v1450
    %1452 = vmatprep.subr.mxu0 0.0
    %v1453 = vand.u32 %v1101, 4294901760
    %v1454 = vsub.f32 %v1101, %v1453
    %v1455 = vand.u32 %v1454, 4294901760
    %1456 = vmatpush1.msra.mxu0 %v1455
    %1457 = vmatprep.subr.mxu0 0.0
    %1458 = vmatpush1.msra.mxu0 0.0
    %1459 = vmatprep.subr.mxu0 0.0
    %1460 = vmatpush1.msra.mxu0 0.0
    %1461 = vmatprep.subr.mxu0 0.0
    %1462 = vmatpush1.msra.mxu0 0.0
    %1463 = vmatprep.subr.mxu0 0.0
    %1464 = vmatpush1.msra.mxu0 0.0
    %1465 = vmatprep.subr.mxu0 0.0
    %1466 = vmatpush1.msra.mxu0 0.0
    %1467 = vmatprep.subr.mxu0 0.0
    %1468 = vmatpush1.msra.mxu0 0.0
    %1469 = vmatprep.subr.mxu0 0.0
    %1470 = vmatpush1.msra.mxu0 0.0
    %1471 = vmatprep.subr.mxu0 0.0
    %1472 = vmatpush1.msra.mxu0 0.0
    %1473 = vmatprep.subr.mxu0 0.0
    %1474 = vmatpush1.msra.mxu0 0.0
    %1475 = vmatprep.subr.mxu0 0.0
    %1476 = vmatpush1.msra.mxu0 0.0
    %1477 = vmatprep.subr.mxu0 0.0
    %1478 = vmatpush1.msra.mxu0 0.0
    %1479 = vmatprep.subr.mxu0 0.0
    %1480 = vmatpush1.msra.mxu0 0.0
    %1481 = vmatprep.subr.mxu0 0.0
    %1482 = vmatpush1.msra.mxu0 0.0
    %1483 = vmatprep.subr.mxu0 0.0
    %1484 = vmatpush1.msra.mxu0 0.0
    %1485 = vmatprep.subr.mxu0 0.0
    %1486 = vmatpush1.msra.mxu0 0.0
    %1487 = vmatprep.subr.mxu0 0.0
    %1488 = vmatpush1.msra.mxu0 0.0
    %1489 = vmatprep.subr.mxu0 0.0
    %1490 = vmatpush1.msra.mxu0 0.0
    %1491 = vmatprep.subr.mxu0 0.0
    %1492 = vmatpush1.msra.mxu0 0.0
    %1493 = vmatprep.subr.mxu0 0.0
    %1494 = vmatpush1.msra.mxu0 0.0
    %1495 = vmatprep.subr.mxu0 0.0
    %1496 = vmatpush1.msra.mxu0 0.0
    %1497 = vmatprep.subr.mxu0 0.0
    %1498 = vmatpush1.msra.mxu0 0.0
    %1499 = vmatprep.subr.mxu0 0.0
    %1500 = vmatpush1.msra.mxu0 0.0
    %1501 = vmatprep.subr.mxu0 0.0
    %1502 = vmatpush1.msra.mxu0 0.0
    %1503 = vmatprep.subr.mxu0 0.0
    %1504 = vmatpush1.msra.mxu0 0.0
    %1505 = vmatprep.subr.mxu0 0.0
    %1506 = vmatpush1.msra.mxu0 0.0
    %1507 = vmatprep.subr.mxu0 0.0
    %1508 = vmatpush1.msra.mxu0 0.0
    %1509 = vmatprep.subr.mxu0 0.0
    %1510 = vmatpush1.msra.mxu0 0.0
    %1511 = vmatprep.subr.mxu0 0.0
    %1512 = vmatpush1.msra.mxu0 0.0
    %1513 = vmatprep.mubr.f32.mxu0 0.0
    %v1514 = vand.u32 %v1108, 4294901760
    %1515 = vmatmul.mubr.f32.gmra.mrb[0].mxu0 %v1514
    %v1516 = vpop.f32.mrb[0].mxu0
    %v1517 = vadd.f32 %v1434, %v1516
    %v1518 = vpop.f32.mrb[0].mxu0
    %1519 = vdwg.mxu0
    %1520 = vmatprep.subr.mxu0 0.0
    %v1521 = vand.u32 %v1098, 4294901760
    %1522 = vmatpush1.msra.mxu0 %v1521
    %1523 = vmatprep.subr.mxu0 0.0
    %v1524 = vand.u32 %v1099, 4294901760
    %1525 = vmatpush1.msra.mxu0 %v1524
    %1526 = vmatprep.subr.mxu0 0.0
    %v1527 = vand.u32 %v1100, 4294901760
    %1528 = vmatpush1.msra.mxu0 %v1527
    %1529 = vmatprep.subr.mxu0 0.0
    %v1530 = vand.u32 %v1101, 4294901760
    %1531 = vmatpush1.msra.mxu0 %v1530
    %1532 = vmatprep.subr.mxu0 0.0
    %1533 = vmatpush1.msra.mxu0 0.0
    %1534 = vmatprep.subr.mxu0 0.0
    %1535 = vmatpush1.msra.mxu0 0.0
    %1536 = vmatprep.subr.mxu0 0.0
    %1537 = vmatpush1.msra.mxu0 0.0
    %1538 = vmatprep.subr.mxu0 0.0
    %1539 = vmatpush1.msra.mxu0 0.0
    %1540 = vmatprep.subr.mxu0 0.0
    %1541 = vmatpush1.msra.mxu0 0.0
    %1542 = vmatprep.subr.mxu0 0.0
    %1543 = vmatpush1.msra.mxu0 0.0
    %1544 = vmatprep.subr.mxu0 0.0
    %1545 = vmatpush1.msra.mxu0 0.0
    %1546 = vmatprep.subr.mxu0 0.0
    %1547 = vmatpush1.msra.mxu0 0.0
    %1548 = vmatprep.subr.mxu0 0.0
    %1549 = vmatpush1.msra.mxu0 0.0
    %1550 = vmatprep.subr.mxu0 0.0
    %1551 = vmatpush1.msra.mxu0 0.0
    %1552 = vmatprep.subr.mxu0 0.0
    %1553 = vmatpush1.msra.mxu0 0.0
    %1554 = vmatprep.subr.mxu0 0.0
    %1555 = vmatpush1.msra.mxu0 0.0
    %1556 = vmatprep.subr.mxu0 0.0
    %1557 = vmatpush1.msra.mxu0 0.0
    %1558 = vmatprep.subr.mxu0 0.0
    %1559 = vmatpush1.msra.mxu0 0.0
    %1560 = vmatprep.subr.mxu0 0.0
    %1561 = vmatpush1.msra.mxu0 0.0
    %1562 = vmatprep.subr.mxu0 0.0
    %1563 = vmatpush1.msra.mxu0 0.0
    %1564 = vmatprep.subr.mxu0 0.0
    %1565 = vmatpush1.msra.mxu0 0.0
    %1566 = vmatprep.subr.mxu0 0.0
    %1567 = vmatpush1.msra.mxu0 0.0
    %1568 = vmatprep.subr.mxu0 0.0
    %1569 = vmatpush1.msra.mxu0 0.0
    %1570 = vmatprep.subr.mxu0 0.0
    %1571 = vmatpush1.msra.mxu0 0.0
    %1572 = vmatprep.subr.mxu0 0.0
    %1573 = vmatpush1.msra.mxu0 0.0
    %1574 = vmatprep.subr.mxu0 0.0
    %1575 = vmatpush1.msra.mxu0 0.0
    %1576 = vmatprep.subr.mxu0 0.0
    %1577 = vmatpush1.msra.mxu0 0.0
    %1578 = vmatprep.subr.mxu0 0.0
    %1579 = vmatpush1.msra.mxu0 0.0
    %1580 = vmatprep.subr.mxu0 0.0
    %1581 = vmatpush1.msra.mxu0 0.0
    %1582 = vmatprep.subr.mxu0 0.0
    %1583 = vmatpush1.msra.mxu0 0.0
    %1584 = vmatprep.subr.mxu0 0.0
    %1585 = vmatpush1.msra.mxu0 0.0
    %1586 = vmatprep.subr.mxu0 0.0
    %1587 = vmatpush1.msra.mxu0 0.0
    %1588 = vmatprep.mubr.f32.mxu0 0.0
    %v1589 = vand.u32 %v1108, 4294901760
    %1590 = vmatmul.mubr.f32.gmra.mrb[0].mxu0 %v1589
    %v1591 = vpop.f32.mrb[0].mxu0
    %v1592 = vadd.f32 %v1517, %v1591
    %v1593 = vpop.f32.mrb[0].mxu0
    %1594 = vdwg.mxu0
    %v1595 = vld [vmem:[#allocation7 + $0x164] sm:$0x1]
    %v1596 = vld [vmem:[#allocation7 + $0x165] sm:$0x1]
    %v1597 = vsel %vm62, %v1592, 0.0
    %1598 = vadd.xlane.f32.xlu0 %v1597
    %v1599 = vpop.xlane.xlu0 %1598
    %v1600 = vmul.f32 %v1599, %v1050
    %v1601 = vsub.f32 %v1592, %v1600
    %v1602 = vmul.f32 %v1601, %v1601
    %v1603 = vsel %vm62, %v1602, 0.0
    %1604 = vadd.xlane.f32.xlu0 %v1603
    %v1605 = vpop.xlane.xlu0 %1604
    %v1606 = vmul.f32 %v1605, %v1050
    %v1607 = vadd.f32 %v1606, 1e-05
    %v1608 = vrsqrt.pop %v1607
    %v1609 = vmul.f32 %v1601, %v1608
    %v1610 = vlaneseq
    %v1611 = vshrl.u32 %v1610, 7
    %v1612 = vsub.s32 0, %v1611
    %v1613 = vrot.slane %v1595, %v1612
    %v1614 = vmul.f32 %v1609, %v1613
    %v1615 = vlaneseq
    %v1616 = vshrl.u32 %v1615, 7
    %v1617 = vsub.s32 0, %v1616
    %v1618 = vrot.slane %v1596, %v1617
    %v1619 = vadd.f32 %v1614, %v1618
    %v1620 = vmul.f32 %v1619, 0.5
    %v1621 = vmul.f32 %v1619, 0.70710677
    %vm1622 = vcmp.lt.f32.partialorder %v1621, 0.0
    %v1623 = vsel %vm1622, -1.0, 1.0
    %v1624 = vand.u32 2147483647, %v1621
    %v1625 = vmul.f32 %v1624, 0.3275911
    %v1626 = vadd.f32 %v1625, 1.0
    %v1627 = vrcp.pop %v1626
    %v1628 = vmul.f32 1.0, %v1627
    %v1629 = vmul.f32 %v1628, 1.0614054
    %v1630 = vadd.f32 %v1629, -1.4531521
    %v1631 = vmul.f32 %v1630, %v1628
    %v1632 = vadd.f32 %v1631, 1.4214138
    %v1633 = vmul.f32 %v1632, %v1628
    %v1634 = vadd.f32 %v1633, -0.28449672
    %v1635 = vmul.f32 %v1634, %v1628
    %v1636 = vadd.f32 %v1635, 0.2548296
    %v1637 = vmul.f32 %v1636, %v1628
    %v1638 = vsub.f32 0.0, %v1624
    %v1639 = vmul.f32 %v1638, %v1624
    %v1640 = vmul.f32 %v1639, 1.442695
    %v1641 = vpow.pop %v1640
    %v1642 = vmul.f32 %v1637, %v1641
    %v1643 = vsub.f32 1.0, %v1642
    %v1644 = vmul.f32 %v1623, %v1643
    %v1645 = vadd.f32 %v1644, 1.0
    %v1646 = vmul.f32 %v1620, %v1645
    %v1647 = vld [vmem:[#allocation7 + $0x60] sm:$0xff]
    %v1648 = vld [vmem:[#allocation7 + $0x68] sm:$0xff]
    %v1649 = vld [vmem:[#allocation7 + $0x70] sm:$0xff]
    %v1650 = vld [vmem:[#allocation7 + $0x78] sm:$0xff]
    %v1651 = vld [vmem:[#allocation7 + $0x166] sm:$0x1]
    %v1652 = vlaneseq
    %v1653 = vshrl.u32 %v1652, 7
    %v1654 = vsub.s32 0, %v1653
    %v1655 = vrot.slane %v1651, %v1654
    %v1657 = vsel %vm62, %v1646, 0
    %1659 = vmatprep.subr.mxu0 0.0
    %v1660 = vand.u32 %v1647, 4294901760
    %1661 = vmatpush1.msra.mxu0 %v1660
    %1662 = vmatprep.subr.mxu0 0.0
    %v1663 = vand.u32 %v1648, 4294901760
    %1664 = vmatpush1.msra.mxu0 %v1663
    %1665 = vmatprep.subr.mxu0 0.0
    %v1666 = vand.u32 %v1649, 4294901760
    %1667 = vmatpush1.msra.mxu0 %v1666
    %1668 = vmatprep.subr.mxu0 0.0
    %v1669 = vand.u32 %v1650, 4294901760
    %1670 = vmatpush1.msra.mxu0 %v1669
    %1671 = vmatprep.subr.mxu0 0.0
    %1672 = vmatpush1.msra.mxu0 0.0
    %1673 = vmatprep.subr.mxu0 0.0
    %1674 = vmatpush1.msra.mxu0 0.0
    %1675 = vmatprep.subr.mxu0 0.0
    %1676 = vmatpush1.msra.mxu0 0.0
    %1677 = vmatprep.subr.mxu0 0.0
    %1678 = vmatpush1.msra.mxu0 0.0
    %1679 = vmatprep.subr.mxu0 0.0
    %1680 = vmatpush1.msra.mxu0 0.0
    %1681 = vmatprep.subr.mxu0 0.0
    %1682 = vmatpush1.msra.mxu0 0.0
    %1683 = vmatprep.subr.mxu0 0.0
    %1684 = vmatpush1.msra.mxu0 0.0
    %1685 = vmatprep.subr.mxu0 0.0
    %1686 = vmatpush1.msra.mxu0 0.0
    %1687 = vmatprep.subr.mxu0 0.0
    %1688 = vmatpush1.msra.mxu0 0.0
    %1689 = vmatprep.subr.mxu0 0.0
    %1690 = vmatpush1.msra.mxu0 0.0
    %1691 = vmatprep.subr.mxu0 0.0
    %1692 = vmatpush1.msra.mxu0 0.0
    %1693 = vmatprep.subr.mxu0 0.0
    %1694 = vmatpush1.msra.mxu0 0.0
    %1695 = vmatprep.subr.mxu0 0.0
    %1696 = vmatpush1.msra.mxu0 0.0
    %1697 = vmatprep.subr.mxu0 0.0
    %1698 = vmatpush1.msra.mxu0 0.0
    %1699 = vmatprep.subr.mxu0 0.0
    %1700 = vmatpush1.msra.mxu0 0.0
    %1701 = vmatprep.subr.mxu0 0.0
    %1702 = vmatpush1.msra.mxu0 0.0
    %1703 = vmatprep.subr.mxu0 0.0
    %1704 = vmatpush1.msra.mxu0 0.0
    %1705 = vmatprep.subr.mxu0 0.0
    %1706 = vmatpush1.msra.mxu0 0.0
    %1707 = vmatprep.subr.mxu0 0.0
    %1708 = vmatpush1.msra.mxu0 0.0
    %1709 = vmatprep.subr.mxu0 0.0
    %1710 = vmatpush1.msra.mxu0 0.0
    %1711 = vmatprep.subr.mxu0 0.0
    %1712 = vmatpush1.msra.mxu0 0.0
    %1713 = vmatprep.subr.mxu0 0.0
    %1714 = vmatpush1.msra.mxu0 0.0
    %1715 = vmatprep.subr.mxu0 0.0
    %1716 = vmatpush1.msra.mxu0 0.0
    %1717 = vmatprep.subr.mxu0 0.0
    %1718 = vmatpush1.msra.mxu0 0.0
    %1719 = vmatprep.subr.mxu0 0.0
    %1720 = vmatpush1.msra.mxu0 0.0
    %1721 = vmatprep.subr.mxu0 0.0
    %1722 = vmatpush1.msra.mxu0 0.0
    %1723 = vmatprep.subr.mxu0 0.0
    %1724 = vmatpush1.msra.mxu0 0.0
    %1725 = vmatprep.subr.mxu0 0.0
    %1726 = vmatpush1.msra.mxu0 0.0
    %1727 = vmatprep.mubr.f32.mxu0 0.0
    %v1728 = vand.u32 %v1657, 4294901760
    %v1729 = vsub.f32 %v1657, %v1728
    %v1730 = vand.u32 %v1729, 4294901760
    %v1731 = vsub.f32 %v1729, %v1730
    %v1732 = vand.u32 %v1731, 4294901760
    %1733 = vmatmul.mubr.f32.gmra.mrb[0].mxu0 %v1732
    %v1734 = vpop.f32.mrb[0].mxu0
    %v1735 = vadd.f32 %v1655, %v1734
    %v1736 = vpop.f32.mrb[0].mxu0
    %1737 = vdwg.mxu0
    %1738 = vmatprep.subr.mxu0 0.0
    %v1739 = vand.u32 %v1647, 4294901760
    %v1740 = vsub.f32 %v1647, %v1739
    %v1741 = vand.u32 %v1740, 4294901760
    %v1742 = vsub.f32 %v1740, %v1741
    %v1743 = vand.u32 %v1742, 4294901760
    %1744 = vmatpush1.msra.mxu0 %v1743
    %1745 = vmatprep.subr.mxu0 0.0
    %v1746 = vand.u32 %v1648, 4294901760
    %v1747 = vsub.f32 %v1648, %v1746
    %v1748 = vand.u32 %v1747, 4294901760
    %v1749 = vsub.f32 %v1747, %v1748
    %v1750 = vand.u32 %v1749, 4294901760
    %1751 = vmatpush1.msra.mxu0 %v1750
    %1752 = vmatprep.subr.mxu0 0.0
    %v1753 = vand.u32 %v1649, 4294901760
    %v1754 = vsub.f32 %v1649, %v1753
    %v1755 = vand.u32 %v1754, 4294901760
    %v1756 = vsub.f32 %v1754, %v1755
    %v1757 = vand.u32 %v1756, 4294901760
    %1758 = vmatpush1.msra.mxu0 %v1757
    %1759 = vmatprep.subr.mxu0 0.0
    %v1760 = vand.u32 %v1650, 4294901760
    %v1761 = vsub.f32 %v1650, %v1760
    %v1762 = vand.u32 %v1761, 4294901760
    %v1763 = vsub.f32 %v1761, %v1762
    %v1764 = vand.u32 %v1763, 4294901760
    %1765 = vmatpush1.msra.mxu0 %v1764
    %1766 = vmatprep.subr.mxu0 0.0
    %1767 = vmatpush1.msra.mxu0 0.0
    %1768 = vmatprep.subr.mxu0 0.0
    %1769 = vmatpush1.msra.mxu0 0.0
    %1770 = vmatprep.subr.mxu0 0.0
    %1771 = vmatpush1.msra.mxu0 0.0
    %1772 = vmatprep.subr.mxu0 0.0
    %1773 = vmatpush1.msra.mxu0 0.0
    %1774 = vmatprep.subr.mxu0 0.0
    %1775 = vmatpush1.msra.mxu0 0.0
    %1776 = vmatprep.subr.mxu0 0.0
    %1777 = vmatpush1.msra.mxu0 0.0
    %1778 = vmatprep.subr.mxu0 0.0
    %1779 = vmatpush1.msra.mxu0 0.0
    %1780 = vmatprep.subr.mxu0 0.0
    %1781 = vmatpush1.msra.mxu0 0.0
    %1782 = vmatprep.subr.mxu0 0.0
    %1783 = vmatpush1.msra.mxu0 0.0
    %1784 = vmatprep.subr.mxu0 0.0
    %1785 = vmatpush1.msra.mxu0 0.0
    %1786 = vmatprep.subr.mxu0 0.0
    %1787 = vmatpush1.msra.mxu0 0.0
    %1788 = vmatprep.subr.mxu0 0.0
    %1789 = vmatpush1.msra.mxu0 0.0
    %1790 = vmatprep.subr.mxu0 0.0
    %1791 = vmatpush1.msra.mxu0 0.0
    %1792 = vmatprep.subr.mxu0 0.0
    %1793 = vmatpush1.msra.mxu0 0.0
    %1794 = vmatprep.subr.mxu0 0.0
    %1795 = vmatpush1.msra.mxu0 0.0
    %1796 = vmatprep.subr.mxu0 0.0
    %1797 = vmatpush1.msra.mxu0 0.0
    %1798 = vmatprep.subr.mxu0 0.0
    %1799 = vmatpush1.msra.mxu0 0.0
    %1800 = vmatprep.subr.mxu0 0.0
    %1801 = vmatpush1.msra.mxu0 0.0
    %1802 = vmatprep.subr.mxu0 0.0
    %1803 = vmatpush1.msra.mxu0 0.0
    %1804 = vmatprep.subr.mxu0 0.0
    %1805 = vmatpush1.msra.mxu0 0.0
    %1806 = vmatprep.subr.mxu0 0.0
    %1807 = vmatpush1.msra.mxu0 0.0
    %1808 = vmatprep.subr.mxu0 0.0
    %1809 = vmatpush1.msra.mxu0 0.0
    %1810 = vmatprep.subr.mxu0 0.0
    %1811 = vmatpush1.msra.mxu0 0.0
    %1812 = vmatprep.subr.mxu0 0.0
    %1813 = vmatpush1.msra.mxu0 0.0
    %1814 = vmatprep.subr.mxu0 0.0
    %1815 = vmatpush1.msra.mxu0 0.0
    %1816 = vmatprep.subr.mxu0 0.0
    %1817 = vmatpush1.msra.mxu0 0.0
    %1818 = vmatprep.subr.mxu0 0.0
    %1819 = vmatpush1.msra.mxu0 0.0
    %1820 = vmatprep.subr.mxu0 0.0
    %1821 = vmatpush1.msra.mxu0 0.0
    %1822 = vmatprep.mubr.f32.mxu0 0.0
    %v1823 = vand.u32 %v1657, 4294901760
    %1824 = vmatmul.mubr.f32.gmra.mrb[0].mxu0 %v1823
    %v1825 = vpop.f32.mrb[0].mxu0
    %v1826 = vadd.f32 %v1735, %v1825
    %v1827 = vpop.f32.mrb[0].mxu0
    %1828 = vdwg.mxu0
    %1829 = vmatprep.subr.mxu0 0.0
    %v1830 = vand.u32 %v1647, 4294901760
    %v1831 = vsub.f32 %v1647, %v1830
    %1832 = vmatpush1.msra.mxu0 %v1831
    %1833 = vmatprep.subr.mxu0 0.0
    %v1834 = vand.u32 %v1648, 4294901760
    %v1835 = vsub.f32 %v1648, %v1834
    %1836 = vmatpush1.msra.mxu0 %v1835
    %1837 = vmatprep.subr.mxu0 0.0
    %v1838 = vand.u32 %v1649, 4294901760
    %v1839 = vsub.f32 %v1649, %v1838
    %1840 = vmatpush1.msra.mxu0 %v1839
    %1841 = vmatprep.subr.mxu0 0.0
    %v1842 = vand.u32 %v1650, 4294901760
    %v1843 = vsub.f32 %v1650, %v1842
    %1844 = vmatpush1.msra.mxu0 %v1843
    %1845 = vmatprep.subr.mxu0 0.0
    %1846 = vmatpush1.msra.mxu0 0.0
    %1847 = vmatprep.subr.mxu0 0.0
    %1848 = vmatpush1.msra.mxu0 0.0
    %1849 = vmatprep.subr.mxu0 0.0
    %1850 = vmatpush1.msra.mxu0 0.0
    %1851 = vmatprep.subr.mxu0 0.0
    %1852 = vmatpush1.msra.mxu0 0.0
    %1853 = vmatprep.subr.mxu0 0.0
    %1854 = vmatpush1.msra.mxu0 0.0
    %1855 = vmatprep.subr.mxu0 0.0
    %1856 = vmatpush1.msra.mxu0 0.0
    %1857 = vmatprep.subr.mxu0 0.0
    %1858 = vmatpush1.msra.mxu0 0.0
    %1859 = vmatprep.subr.mxu0 0.0
    %1860 = vmatpush1.msra.mxu0 0.0
    %1861 = vmatprep.subr.mxu0 0.0
    %1862 = vmatpush1.msra.mxu0 0.0
    %1863 = vmatprep.subr.mxu0 0.0
    %1864 = vmatpush1.msra.mxu0 0.0
    %1865 = vmatprep.subr.mxu0 0.0
    %1866 = vmatpush1.msra.mxu0 0.0
    %1867 = vmatprep.subr.mxu0 0.0
    %1868 = vmatpush1.msra.mxu0 0.0
    %1869 = vmatprep.subr.mxu0 0.0
    %1870 = vmatpush1.msra.mxu0 0.0
    %1871 = vmatprep.subr.mxu0 0.0
    %1872 = vmatpush1.msra.mxu0 0.0
    %1873 = vmatprep.subr.mxu0 0.0
    %1874 = vmatpush1.msra.mxu0 0.0
    %1875 = vmatprep.subr.mxu0 0.0
    %1876 = vmatpush1.msra.mxu0 0.0
    %1877 = vmatprep.subr.mxu0 0.0
    %1878 = vmatpush1.msra.mxu0 0.0
    %1879 = vmatprep.subr.mxu0 0.0
    %1880 = vmatpush1.msra.mxu0 0.0
    %1881 = vmatprep.subr.mxu0 0.0
    %1882 = vmatpush1.msra.mxu0 0.0
    %1883 = vmatprep.subr.mxu0 0.0
    %1884 = vmatpush1.msra.mxu0 0.0
    %1885 = vmatprep.subr.mxu0 0.0
    %1886 = vmatpush1.msra.mxu0 0.0
    %1887 = vmatprep.subr.mxu0 0.0
    %1888 = vmatpush1.msra.mxu0 0.0
    %1889 = vmatprep.subr.mxu0 0.0
    %1890 = vmatpush1.msra.mxu0 0.0
    %1891 = vmatprep.subr.mxu0 0.0
    %1892 = vmatpush1.msra.mxu0 0.0
    %1893 = vmatprep.subr.mxu0 0.0
    %1894 = vmatpush1.msra.mxu0 0.0
    %1895 = vmatprep.subr.mxu0 0.0
    %1896 = vmatpush1.msra.mxu0 0.0
    %1897 = vmatprep.subr.mxu0 0.0
    %1898 = vmatpush1.msra.mxu0 0.0
    %1899 = vmatprep.subr.mxu0 0.0
    %1900 = vmatpush1.msra.mxu0 0.0
    %1901 = vmatprep.mubr.f32.mxu0 0.0
    %v1902 = vand.u32 %v1657, 4294901760
    %v1903 = vsub.f32 %v1657, %v1902
    %1904 = vmatmul.mubr.f32.gmra.mrb[0].mxu0 %v1903
    %v1905 = vpop.f32.mrb[0].mxu0
    %v1906 = vadd.f32 %v1826, %v1905
    %v1907 = vpop.f32.mrb[0].mxu0
    %1908 = vdwg.mxu0
    %1909 = vmatprep.subr.mxu0 0.0
    %v1910 = vand.u32 %v1647, 4294901760
    %1911 = vmatpush1.msra.mxu0 %v1910
    %1912 = vmatprep.subr.mxu0 0.0
    %v1913 = vand.u32 %v1648, 4294901760
    %1914 = vmatpush1.msra.mxu0 %v1913
    %1915 = vmatprep.subr.mxu0 0.0
    %v1916 = vand.u32 %v1649, 4294901760
    %1917 = vmatpush1.msra.mxu0 %v1916
    %1918 = vmatprep.subr.mxu0 0.0
    %v1919 = vand.u32 %v1650, 4294901760
    %1920 = vmatpush1.msra.mxu0 %v1919
    %1921 = vmatprep.subr.mxu0 0.0
    %1922 = vmatpush1.msra.mxu0 0.0
    %1923 = vmatprep.subr.mxu0 0.0
    %1924 = vmatpush1.msra.mxu0 0.0
    %1925 = vmatprep.subr.mxu0 0.0
    %1926 = vmatpush1.msra.mxu0 0.0
    %1927 = vmatprep.subr.mxu0 0.0
    %1928 = vmatpush1.msra.mxu0 0.0
    %1929 = vmatprep.subr.mxu0 0.0
    %1930 = vmatpush1.msra.mxu0 0.0
    %1931 = vmatprep.subr.mxu0 0.0
    %1932 = vmatpush1.msra.mxu0 0.0
    %1933 = vmatprep.subr.mxu0 0.0
    %1934 = vmatpush1.msra.mxu0 0.0
    %1935 = vmatprep.subr.mxu0 0.0
    %1936 = vmatpush1.msra.mxu0 0.0
    %1937 = vmatprep.subr.mxu0 0.0
    %1938 = vmatpush1.msra.mxu0 0.0
    %1939 = vmatprep.subr.mxu0 0.0
    %1940 = vmatpush1.msra.mxu0 0.0
    %1941 = vmatprep.subr.mxu0 0.0
    %1942 = vmatpush1.msra.mxu0 0.0
    %1943 = vmatprep.subr.mxu0 0.0
    %1944 = vmatpush1.msra.mxu0 0.0
    %1945 = vmatprep.subr.mxu0 0.0
    %1946 = vmatpush1.msra.mxu0 0.0
    %1947 = vmatprep.subr.mxu0 0.0
    %1948 = vmatpush1.msra.mxu0 0.0
    %1949 = vmatprep.subr.mxu0 0.0
    %1950 = vmatpush1.msra.mxu0 0.0
    %1951 = vmatprep.subr.mxu0 0.0
    %1952 = vmatpush1.msra.mxu0 0.0
    %1953 = vmatprep.subr.mxu0 0.0
    %1954 = vmatpush1.msra.mxu0 0.0
    %1955 = vmatprep.subr.mxu0 0.0
    %1956 = vmatpush1.msra.mxu0 0.0
    %1957 = vmatprep.subr.mxu0 0.0
    %1958 = vmatpush1.msra.mxu0 0.0
    %1959 = vmatprep.subr.mxu0 0.0
    %1960 = vmatpush1.msra.mxu0 0.0
    %1961 = vmatprep.subr.mxu0 0.0
    %1962 = vmatpush1.msra.mxu0 0.0
    %1963 = vmatprep.subr.mxu0 0.0
    %1964 = vmatpush1.msra.mxu0 0.0
    %1965 = vmatprep.subr.mxu0 0.0
    %1966 = vmatpush1.msra.mxu0 0.0
    %1967 = vmatprep.subr.mxu0 0.0
    %1968 = vmatpush1.msra.mxu0 0.0
    %1969 = vmatprep.subr.mxu0 0.0
    %1970 = vmatpush1.msra.mxu0 0.0
    %1971 = vmatprep.subr.mxu0 0.0
    %1972 = vmatpush1.msra.mxu0 0.0
    %1973 = vmatprep.subr.mxu0 0.0
    %1974 = vmatpush1.msra.mxu0 0.0
    %1975 = vmatprep.subr.mxu0 0.0
    %1976 = vmatpush1.msra.mxu0 0.0
    %1977 = vmatprep.mubr.f32.mxu0 0.0
    %v1978 = vand.u32 %v1657, 4294901760
    %v1979 = vsub.f32 %v1657, %v1978
    %v1980 = vand.u32 %v1979, 4294901760
    %1981 = vmatmul.mubr.f32.gmra.mrb[0].mxu0 %v1980
    %v1982 = vpop.f32.mrb[0].mxu0
    %v1983 = vadd.f32 %v1906, %v1982
    %v1984 = vpop.f32.mrb[0].mxu0
    %1985 = vdwg.mxu0
    %1986 = vmatprep.subr.mxu0 0.0
    %v1987 = vand.u32 %v1647, 4294901760
    %v1988 = vsub.f32 %v1647, %v1987
    %v1989 = vand.u32 %v1988, 4294901760
    %1990 = vmatpush1.msra.mxu0 %v1989
    %1991 = vmatprep.subr.mxu0 0.0
    %v1992 = vand.u32 %v1648, 4294901760
    %v1993 = vsub.f32 %v1648, %v1992
    %v1994 = vand.u32 %v1993, 4294901760
    %1995 = vmatpush1.msra.mxu0 %v1994
    %1996 = vmatprep.subr.mxu0 0.0
    %v1997 = vand.u32 %v1649, 4294901760
    %v1998 = vsub.f32 %v1649, %v1997
    %v1999 = vand.u32 %v1998, 4294901760
    %2000 = vmatpush1.msra.mxu0 %v1999
    %2001 = vmatprep.subr.mxu0 0.0
    %v2002 = vand.u32 %v1650, 4294901760
    %v2003 = vsub.f32 %v1650, %v2002
    %v2004 = vand.u32 %v2003, 4294901760
    %2005 = vmatpush1.msra.mxu0 %v2004
    %2006 = vmatprep.subr.mxu0 0.0
    %2007 = vmatpush1.msra.mxu0 0.0
    %2008 = vmatprep.subr.mxu0 0.0
    %2009 = vmatpush1.msra.mxu0 0.0
    %2010 = vmatprep.subr.mxu0 0.0
    %2011 = vmatpush1.msra.mxu0 0.0
    %2012 = vmatprep.subr.mxu0 0.0
    %2013 = vmatpush1.msra.mxu0 0.0
    %2014 = vmatprep.subr.mxu0 0.0
    %2015 = vmatpush1.msra.mxu0 0.0
    %2016 = vmatprep.subr.mxu0 0.0
    %2017 = vmatpush1.msra.mxu0 0.0
    %2018 = vmatprep.subr.mxu0 0.0
    %2019 = vmatpush1.msra.mxu0 0.0
    %2020 = vmatprep.subr.mxu0 0.0
    %2021 = vmatpush1.msra.mxu0 0.0
    %2022 = vmatprep.subr.mxu0 0.0
    %2023 = vmatpush1.msra.mxu0 0.0
    %2024 = vmatprep.subr.mxu0 0.0
    %2025 = vmatpush1.msra.mxu0 0.0
    %2026 = vmatprep.subr.mxu0 0.0
    %2027 = vmatpush1.msra.mxu0 0.0
    %2028 = vmatprep.subr.mxu0 0.0
    %2029 = vmatpush1.msra.mxu0 0.0
    %2030 = vmatprep.subr.mxu0 0.0
    %2031 = vmatpush1.msra.mxu0 0.0
    %2032 = vmatprep.subr.mxu0 0.0
    %2033 = vmatpush1.msra.mxu0 0.0
    %2034 = vmatprep.subr.mxu0 0.0
    %2035 = vmatpush1.msra.mxu0 0.0
    %2036 = vmatprep.subr.mxu0 0.0
    %2037 = vmatpush1.msra.mxu0 0.0
    %2038 = vmatprep.subr.mxu0 0.0
    %2039 = vmatpush1.msra.mxu0 0.0
    %2040 = vmatprep.subr.mxu0 0.0
    %2041 = vmatpush1.msra.mxu0 0.0
    %2042 = vmatprep.subr.mxu0 0.0
    %2043 = vmatpush1.msra.mxu0 0.0
    %2044 = vmatprep.subr.mxu0 0.0
    %2045 = vmatpush1.msra.mxu0 0.0
    %2046 = vmatprep.subr.mxu0 0.0
    %2047 = vmatpush1.msra.mxu0 0.0
    %2048 = vmatprep.subr.mxu0 0.0
    %2049 = vmatpush1.msra.mxu0 0.0
    %2050 = vmatprep.subr.mxu0 0.0
    %2051 = vmatpush1.msra.mxu0 0.0
    %2052 = vmatprep.subr.mxu0 0.0
    %2053 = vmatpush1.msra.mxu0 0.0
    %2054 = vmatprep.subr.mxu0 0.0
    %2055 = vmatpush1.msra.mxu0 0.0
    %2056 = vmatprep.subr.mxu0 0.0
    %2057 = vmatpush1.msra.mxu0 0.0
    %2058 = vmatprep.subr.mxu0 0.0
    %2059 = vmatpush1.msra.mxu0 0.0
    %2060 = vmatprep.subr.mxu0 0.0
    %2061 = vmatpush1.msra.mxu0 0.0
    %2062 = vmatprep.mubr.f32.mxu0 0.0
    %v2063 = vand.u32 %v1657, 4294901760
    %2064 = vmatmul.mubr.f32.gmra.mrb[0].mxu0 %v2063
    %v2065 = vpop.f32.mrb[0].mxu0
    %v2066 = vadd.f32 %v1983, %v2065
    %v2067 = vpop.f32.mrb[0].mxu0
    %2068 = vdwg.mxu0
    %2069 = vmatprep.subr.mxu0 0.0
    %v2070 = vand.u32 %v1647, 4294901760
    %2071 = vmatpush1.msra.mxu0 %v2070
    %2072 = vmatprep.subr.mxu0 0.0
    %v2073 = vand.u32 %v1648, 4294901760
    %2074 = vmatpush1.msra.mxu0 %v2073
    %2075 = vmatprep.subr.mxu0 0.0
    %v2076 = vand.u32 %v1649, 4294901760
    %2077 = vmatpush1.msra.mxu0 %v2076
    %2078 = vmatprep.subr.mxu0 0.0
    %v2079 = vand.u32 %v1650, 4294901760
    %2080 = vmatpush1.msra.mxu0 %v2079
    %2081 = vmatprep.subr.mxu0 0.0
    %2082 = vmatpush1.msra.mxu0 0.0
    %2083 = vmatprep.subr.mxu0 0.0
    %2084 = vmatpush1.msra.mxu0 0.0
    %2085 = vmatprep.subr.mxu0 0.0
    %2086 = vmatpush1.msra.mxu0 0.0
    %2087 = vmatprep.subr.mxu0 0.0
    %2088 = vmatpush1.msra.mxu0 0.0
    %2089 = vmatprep.subr.mxu0 0.0
    %2090 = vmatpush1.msra.mxu0 0.0
    %2091 = vmatprep.subr.mxu0 0.0
    %2092 = vmatpush1.msra.mxu0 0.0
    %2093 = vmatprep.subr.mxu0 0.0
    %2094 = vmatpush1.msra.mxu0 0.0
    %2095 = vmatprep.subr.mxu0 0.0
    %2096 = vmatpush1.msra.mxu0 0.0
    %2097 = vmatprep.subr.mxu0 0.0
    %2098 = vmatpush1.msra.mxu0 0.0
    %2099 = vmatprep.subr.mxu0 0.0
    %2100 = vmatpush1.msra.mxu0 0.0
    %2101 = vmatprep.subr.mxu0 0.0
    %2102 = vmatpush1.msra.mxu0 0.0
    %2103 = vmatprep.subr.mxu0 0.0
    %2104 = vmatpush1.msra.mxu0 0.0
    %2105 = vmatprep.subr.mxu0 0.0
    %2106 = vmatpush1.msra.mxu0 0.0
    %2107 = vmatprep.subr.mxu0 0.0
    %2108 = vmatpush1.msra.mxu0 0.0
    %2109 = vmatprep.subr.mxu0 0.0
    %2110 = vmatpush1.msra.mxu0 0.0
    %2111 = vmatprep.subr.mxu0 0.0
    %2112 = vmatpush1.msra.mxu0 0.0
    %2113 = vmatprep.subr.mxu0 0.0
    %2114 = vmatpush1.msra.mxu0 0.0
    %2115 = vmatprep.subr.mxu0 0.0
    %2116 = vmatpush1.msra.mxu0 0.0
    %2117 = vmatprep.subr.mxu0 0.0
    %2118 = vmatpush1.msra.mxu0 0.0
    %2119 = vmatprep.subr.mxu0 0.0
    %2120 = vmatpush1.msra.mxu0 0.0
    %2121 = vmatprep.subr.mxu0 0.0
    %2122 = vmatpush1.msra.mxu0 0.0
    %2123 = vmatprep.subr.mxu0 0.0
    %2124 = vmatpush1.msra.mxu0 0.0
    %2125 = vmatprep.subr.mxu0 0.0
    %2126 = vmatpush1.msra.mxu0 0.0
    %2127 = vmatprep.subr.mxu0 0.0
    %2128 = vmatpush1.msra.mxu0 0.0
    %2129 = vmatprep.subr.mxu0 0.0
    %2130 = vmatpush1.msra.mxu0 0.0
    %2131 = vmatprep.subr.mxu0 0.0
    %2132 = vmatpush1.msra.mxu0 0.0
    %2133 = vmatprep.subr.mxu0 0.0
    %2134 = vmatpush1.msra.mxu0 0.0
    %2135 = vmatprep.subr.mxu0 0.0
    %2136 = vmatpush1.msra.mxu0 0.0
    %2137 = vmatprep.mubr.f32.mxu0 0.0
    %v2138 = vand.u32 %v1657, 4294901760
    %2139 = vmatmul.mubr.f32.gmra.mrb[0].mxu0 %v2138
    %v2140 = vpop.f32.mrb[0].mxu0
    %v2141 = vadd.f32 %v2066, %v2140
    %v2142 = vpop.f32.mrb[0].mxu0
    %2143 = vdwg.mxu0
    %v2144 = vld [vmem:[#allocation7 + $0x80] sm:$0xff]
    %v2145 = vld [vmem:[#allocation7 + $0x88] sm:$0xff]
    %v2146 = vld [vmem:[#allocation7 + $0x90] sm:$0xff]
    %v2147 = vld [vmem:[#allocation7 + $0x98] sm:$0xff]
    %v2148 = vld [vmem:[#allocation7 + $0x16a] sm:$0x1]
    %v2149 = vlaneseq
    %v2150 = vshrl.u32 %v2149, 7
    %v2151 = vsub.s32 0, %v2150
    %v2152 = vrot.slane %v2148, %v2151
    %2153 = vmatprep.subr.mxu0 0.0
    %v2154 = vand.u32 %v2144, 4294901760
    %2155 = vmatpush1.msra.mxu0 %v2154
    %2156 = vmatprep.subr.mxu0 0.0
    %v2157 = vand.u32 %v2145, 4294901760
    %2158 = vmatpush1.msra.mxu0 %v2157
    %2159 = vmatprep.subr.mxu0 0.0
    %v2160 = vand.u32 %v2146, 4294901760
    %2161 = vmatpush1.msra.mxu0 %v2160
    %2162 = vmatprep.subr.mxu0 0.0
    %v2163 = vand.u32 %v2147, 4294901760
    %2164 = vmatpush1.msra.mxu0 %v2163
    %2165 = vmatprep.subr.mxu0 0.0
    %2166 = vmatpush1.msra.mxu0 0.0
    %2167 = vmatprep.subr.mxu0 0.0
    %2168 = vmatpush1.msra.mxu0 0.0
    %2169 = vmatprep.subr.mxu0 0.0
    %2170 = vmatpush1.msra.mxu0 0.0
    %2171 = vmatprep.subr.mxu0 0.0
    %2172 = vmatpush1.msra.mxu0 0.0
    %2173 = vmatprep.subr.mxu0 0.0
    %2174 = vmatpush1.msra.mxu0 0.0
    %2175 = vmatprep.subr.mxu0 0.0
    %2176 = vmatpush1.msra.mxu0 0.0
    %2177 = vmatprep.subr.mxu0 0.0
    %2178 = vmatpush1.msra.mxu0 0.0
    %2179 = vmatprep.subr.mxu0 0.0
    %2180 = vmatpush1.msra.mxu0 0.0
    %2181 = vmatprep.subr.mxu0 0.0
    %2182 = vmatpush1.msra.mxu0 0.0
    %2183 = vmatprep.subr.mxu0 0.0
    %2184 = vmatpush1.msra.mxu0 0.0
    %2185 = vmatprep.subr.mxu0 0.0
    %2186 = vmatpush1.msra.mxu0 0.0
    %2187 = vmatprep.subr.mxu0 0.0
    %2188 = vmatpush1.msra.mxu0 0.0
    %2189 = vmatprep.subr.mxu0 0.0
    %2190 = vmatpush1.msra.mxu0 0.0
    %2191 = vmatprep.subr.mxu0 0.0
    %2192 = vmatpush1.msra.mxu0 0.0
    %2193 = vmatprep.subr.mxu0 0.0
    %2194 = vmatpush1.msra.mxu0 0.0
    %2195 = vmatprep.subr.mxu0 0.0
    %2196 = vmatpush1.msra.mxu0 0.0
    %2197 = vmatprep.subr.mxu0 0.0
    %2198 = vmatpush1.msra.mxu0 0.0
    %2199 = vmatprep.subr.mxu0 0.0
    %2200 = vmatpush1.msra.mxu0 0.0
    %2201 = vmatprep.subr.mxu0 0.0
    %2202 = vmatpush1.msra.mxu0 0.0
    %2203 = vmatprep.subr.mxu0 0.0
    %2204 = vmatpush1.msra.mxu0 0.0
    %2205 = vmatprep.subr.mxu0 0.0
    %2206 = vmatpush1.msra.mxu0 0.0
    %2207 = vmatprep.subr.mxu0 0.0
    %2208 = vmatpush1.msra.mxu0 0.0
    %2209 = vmatprep.subr.mxu0 0.0
    %2210 = vmatpush1.msra.mxu0 0.0
    %2211 = vmatprep.subr.mxu0 0.0
    %2212 = vmatpush1.msra.mxu0 0.0
    %2213 = vmatprep.subr.mxu0 0.0
    %2214 = vmatpush1.msra.mxu0 0.0
    %2215 = vmatprep.subr.mxu0 0.0
    %2216 = vmatpush1.msra.mxu0 0.0
    %2217 = vmatprep.subr.mxu0 0.0
    %2218 = vmatpush1.msra.mxu0 0.0
    %2219 = vmatprep.subr.mxu0 0.0
    %2220 = vmatpush1.msra.mxu0 0.0
    %2221 = vmatprep.mubr.f32.mxu0 0.0
    %v2222 = vand.u32 %v1657, 4294901760
    %v2223 = vsub.f32 %v1657, %v2222
    %v2224 = vand.u32 %v2223, 4294901760
    %v2225 = vsub.f32 %v2223, %v2224
    %v2226 = vand.u32 %v2225, 4294901760
    %2227 = vmatmul.mubr.f32.gmra.mrb[0].mxu0 %v2226
    %v2228 = vpop.f32.mrb[0].mxu0
    %v2229 = vadd.f32 %v2152, %v2228
    %v2230 = vpop.f32.mrb[0].mxu0
    %2231 = vdwg.mxu0
    %2232 = vmatprep.subr.mxu0 0.0
    %v2233 = vand.u32 %v2144, 4294901760
    %v2234 = vsub.f32 %v2144, %v2233
    %v2235 = vand.u32 %v2234, 4294901760
    %v2236 = vsub.f32 %v2234, %v2235
    %v2237 = vand.u32 %v2236, 4294901760
    %2238 = vmatpush1.msra.mxu0 %v2237
    %2239 = vmatprep.subr.mxu0 0.0
    %v2240 = vand.u32 %v2145, 4294901760
    %v2241 = vsub.f32 %v2145, %v2240
    %v2242 = vand.u32 %v2241, 4294901760
    %v2243 = vsub.f32 %v2241, %v2242
    %v2244 = vand.u32 %v2243, 4294901760
    %2245 = vmatpush1.msra.mxu0 %v2244
    %2246 = vmatprep.subr.mxu0 0.0
    %v2247 = vand.u32 %v2146, 4294901760
    %v2248 = vsub.f32 %v2146, %v2247
    %v2249 = vand.u32 %v2248, 4294901760
    %v2250 = vsub.f32 %v2248, %v2249
    %v2251 = vand.u32 %v2250, 4294901760
    %2252 = vmatpush1.msra.mxu0 %v2251
    %2253 = vmatprep.subr.mxu0 0.0
    %v2254 = vand.u32 %v2147, 4294901760
    %v2255 = vsub.f32 %v2147, %v2254
    %v2256 = vand.u32 %v2255, 4294901760
    %v2257 = vsub.f32 %v2255, %v2256
    %v2258 = vand.u32 %v2257, 4294901760
    %2259 = vmatpush1.msra.mxu0 %v2258
    %2260 = vmatprep.subr.mxu0 0.0
    %2261 = vmatpush1.msra.mxu0 0.0
    %2262 = vmatprep.subr.mxu0 0.0
    %2263 = vmatpush1.msra.mxu0 0.0
    %2264 = vmatprep.subr.mxu0 0.0
    %2265 = vmatpush1.msra.mxu0 0.0
    %2266 = vmatprep.subr.mxu0 0.0
    %2267 = vmatpush1.msra.mxu0 0.0
    %2268 = vmatprep.subr.mxu0 0.0
    %2269 = vmatpush1.msra.mxu0 0.0
    %2270 = vmatprep.subr.mxu0 0.0
    %2271 = vmatpush1.msra.mxu0 0.0
    %2272 = vmatprep.subr.mxu0 0.0
    %2273 = vmatpush1.msra.mxu0 0.0
    %2274 = vmatprep.subr.mxu0 0.0
    %2275 = vmatpush1.msra.mxu0 0.0
    %2276 = vmatprep.subr.mxu0 0.0
    %2277 = vmatpush1.msra.mxu0 0.0
    %2278 = vmatprep.subr.mxu0 0.0
    %2279 = vmatpush1.msra.mxu0 0.0
    %2280 = vmatprep.subr.mxu0 0.0
    %2281 = vmatpush1.msra.mxu0 0.0
    %2282 = vmatprep.subr.mxu0 0.0
    %2283 = vmatpush1.msra.mxu0 0.0
    %2284 = vmatprep.subr.mxu0 0.0
    %2285 = vmatpush1.msra.mxu0 0.0
    %2286 = vmatprep.subr.mxu0 0.0
    %2287 = vmatpush1.msra.mxu0 0.0
    %2288 = vmatprep.subr.mxu0 0.0
    %2289 = vmatpush1.msra.mxu0 0.0
    %2290 = vmatprep.subr.mxu0 0.0
    %2291 = vmatpush1.msra.mxu0 0.0
    %2292 = vmatprep.subr.mxu0 0.0
    %2293 = vmatpush1.msra.mxu0 0.0
    %2294 = vmatprep.subr.mxu0 0.0
    %2295 = vmatpush1.msra.mxu0 0.0
    %2296 = vmatprep.subr.mxu0 0.0
    %2297 = vmatpush1.msra.mxu0 0.0
    %2298 = vmatprep.subr.mxu0 0.0
    %2299 = vmatpush1.msra.mxu0 0.0
    %2300 = vmatprep.subr.mxu0 0.0
    %2301 = vmatpush1.msra.mxu0 0.0
    %2302 = vmatprep.subr.mxu0 0.0
    %2303 = vmatpush1.msra.mxu0 0.0
    %2304 = vmatprep.subr.mxu0 0.0
    %2305 = vmatpush1.msra.mxu0 0.0
    %2306 = vmatprep.subr.mxu0 0.0
    %2307 = vmatpush1.msra.mxu0 0.0
    %2308 = vmatprep.subr.mxu0 0.0
    %2309 = vmatpush1.msra.mxu0 0.0
    %2310 = vmatprep.subr.mxu0 0.0
    %2311 = vmatpush1.msra.mxu0 0.0
    %2312 = vmatprep.subr.mxu0 0.0
    %2313 = vmatpush1.msra.mxu0 0.0
    %2314 = vmatprep.subr.mxu0 0.0
    %2315 = vmatpush1.msra.mxu0 0.0
    %2316 = vmatprep.mubr.f32.mxu0 0.0
    %v2317 = vand.u32 %v1657, 4294901760
    %2318 = vmatmul.mubr.f32.gmra.mrb[0].mxu0 %v2317
    %v2319 = vpop.f32.mrb[0].mxu0
    %v2320 = vadd.f32 %v2229, %v2319
    %v2321 = vpop.f32.mrb[0].mxu0
    %2322 = vdwg.mxu0
    %2323 = vmatprep.subr.mxu0 0.0
    %v2324 = vand.u32 %v2144, 4294901760
    %v2325 = vsub.f32 %v2144, %v2324
    %2326 = vmatpush1.msra.mxu0 %v2325
    %2327 = vmatprep.subr.mxu0 0.0
    %v2328 = vand.u32 %v2145, 4294901760
    %v2329 = vsub.f32 %v2145, %v2328
    %2330 = vmatpush1.msra.mxu0 %v2329
    %2331 = vmatprep.subr.mxu0 0.0
    %v2332 = vand.u32 %v2146, 4294901760
    %v2333 = vsub.f32 %v2146, %v2332
    %2334 = vmatpush1.msra.mxu0 %v2333
    %2335 = vmatprep.subr.mxu0 0.0
    %v2336 = vand.u32 %v2147, 4294901760
    %v2337 = vsub.f32 %v2147, %v2336
    %2338 = vmatpush1.msra.mxu0 %v2337
    %2339 = vmatprep.subr.mxu0 0.0
    %2340 = vmatpush1.msra.mxu0 0.0
    %2341 = vmatprep.subr.mxu0 0.0
    %2342 = vmatpush1.msra.mxu0 0.0
    %2343 = vmatprep.subr.mxu0 0.0
    %2344 = vmatpush1.msra.mxu0 0.0
    %2345 = vmatprep.subr.mxu0 0.0
    %2346 = vmatpush1.msra.mxu0 0.0
    %2347 = vmatprep.subr.mxu0 0.0
    %2348 = vmatpush1.msra.mxu0 0.0
    %2349 = vmatprep.subr.mxu0 0.0
    %2350 = vmatpush1.msra.mxu0 0.0
    %2351 = vmatprep.subr.mxu0 0.0
    %2352 = vmatpush1.msra.mxu0 0.0
    %2353 = vmatprep.subr.mxu0 0.0
    %2354 = vmatpush1.msra.mxu0 0.0
    %2355 = vmatprep.subr.mxu0 0.0
    %2356 = vmatpush1.msra.mxu0 0.0
    %2357 = vmatprep.subr.mxu0 0.0
    %2358 = vmatpush1.msra.mxu0 0.0
    %2359 = vmatprep.subr.mxu0 0.0
    %2360 = vmatpush1.msra.mxu0 0.0
    %2361 = vmatprep.subr.mxu0 0.0
    %2362 = vmatpush1.msra.mxu0 0.0
    %2363 = vmatprep.subr.mxu0 0.0
    %2364 = vmatpush1.msra.mxu0 0.0
    %2365 = vmatprep.subr.mxu0 0.0
    %2366 = vmatpush1.msra.mxu0 0.0
    %2367 = vmatprep.subr.mxu0 0.0
    %2368 = vmatpush1.msra.mxu0 0.0
    %2369 = vmatprep.subr.mxu0 0.0
    %2370 = vmatpush1.msra.mxu0 0.0
    %2371 = vmatprep.subr.mxu0 0.0
    %2372 = vmatpush1.msra.mxu0 0.0
    %2373 = vmatprep.subr.mxu0 0.0
    %2374 = vmatpush1.msra.mxu0 0.0
    %2375 = vmatprep.subr.mxu0 0.0
    %2376 = vmatpush1.msra.mxu0 0.0
    %2377 = vmatprep.subr.mxu0 0.0
    %2378 = vmatpush1.msra.mxu0 0.0
    %2379 = vmatprep.subr.mxu0 0.0
    %2380 = vmatpush1.msra.mxu0 0.0
    %2381 = vmatprep.subr.mxu0 0.0
    %2382 = vmatpush1.msra.mxu0 0.0
    %2383 = vmatprep.subr.mxu0 0.0
    %2384 = vmatpush1.msra.mxu0 0.0
    %2385 = vmatprep.subr.mxu0 0.0
    %2386 = vmatpush1.msra.mxu0 0.0
    %2387 = vmatprep.subr.mxu0 0.0
    %2388 = vmatpush1.msra.mxu0 0.0
    %2389 = vmatprep.subr.mxu0 0.0
    %2390 = vmatpush1.msra.mxu0 0.0
    %2391 = vmatprep.subr.mxu0 0.0
    %2392 = vmatpush1.msra.mxu0 0.0
    %2393 = vmatprep.subr.mxu0 0.0
    %2394 = vmatpush1.msra.mxu0 0.0
    %2395 = vmatprep.mubr.f32.mxu0 0.0
    %v2396 = vand.u32 %v1657, 4294901760
    %v2397 = vsub.f32 %v1657, %v2396
    %2398 = vmatmul.mubr.f32.gmra.mrb[0].mxu0 %v2397
    %v2399 = vpop.f32.mrb[0].mxu0
    %v2400 = vadd.f32 %v2320, %v2399
    %v2401 = vpop.f32.mrb[0].mxu0
    %2402 = vdwg.mxu0
    %2403 = vmatprep.subr.mxu0 0.0
    %v2404 = vand.u32 %v2144, 4294901760
    %2405 = vmatpush1.msra.mxu0 %v2404
    %2406 = vmatprep.subr.mxu0 0.0
    %v2407 = vand.u32 %v2145, 4294901760
    %2408 = vmatpush1.msra.mxu0 %v2407
    %2409 = vmatprep.subr.mxu0 0.0
    %v2410 = vand.u32 %v2146, 4294901760
    %2411 = vmatpush1.msra.mxu0 %v2410
    %2412 = vmatprep.subr.mxu0 0.0
    %v2413 = vand.u32 %v2147, 4294901760
    %2414 = vmatpush1.msra.mxu0 %v2413
    %2415 = vmatprep.subr.mxu0 0.0
    %2416 = vmatpush1.msra.mxu0 0.0
    %2417 = vmatprep.subr.mxu0 0.0
    %2418 = vmatpush1.msra.mxu0 0.0
    %2419 = vmatprep.subr.mxu0 0.0
    %2420 = vmatpush1.msra.mxu0 0.0
    %2421 = vmatprep.subr.mxu0 0.0
    %2422 = vmatpush1.msra.mxu0 0.0
    %2423 = vmatprep.subr.mxu0 0.0
    %2424 = vmatpush1.msra.mxu0 0.0
    %2425 = vmatprep.subr.mxu0 0.0
    %2426 = vmatpush1.msra.mxu0 0.0
    %2427 = vmatprep.subr.mxu0 0.0
    %2428 = vmatpush1.msra.mxu0 0.0
    %2429 = vmatprep.subr.mxu0 0.0
    %2430 = vmatpush1.msra.mxu0 0.0
    %2431 = vmatprep.subr.mxu0 0.0
    %2432 = vmatpush1.msra.mxu0 0.0
    %2433 = vmatprep.subr.mxu0 0.0
    %2434 = vmatpush1.msra.mxu0 0.0
    %2435 = vmatprep.subr.mxu0 0.0
    %2436 = vmatpush1.msra.mxu0 0.0
    %2437 = vmatprep.subr.mxu0 0.0
    %2438 = vmatpush1.msra.mxu0 0.0
    %2439 = vmatprep.subr.mxu0 0.0
    %2440 = vmatpush1.msra.mxu0 0.0
    %2441 = vmatprep.subr.mxu0 0.0
    %2442 = vmatpush1.msra.mxu0 0.0
    %2443 = vmatprep.subr.mxu0 0.0
    %2444 = vmatpush1.msra.mxu0 0.0
    %2445 = vmatprep.subr.mxu0 0.0
    %2446 = vmatpush1.msra.mxu0 0.0
    %2447 = vmatprep.subr.mxu0 0.0
    %2448 = vmatpush1.msra.mxu0 0.0
    %2449 = vmatprep.subr.mxu0 0.0
    %2450 = vmatpush1.msra.mxu0 0.0
    %2451 = vmatprep.subr.mxu0 0.0
    %2452 = vmatpush1.msra.mxu0 0.0
    %2453 = vmatprep.subr.mxu0 0.0
    %2454 = vmatpush1.msra.mxu0 0.0
    %2455 = vmatprep.subr.mxu0 0.0
    %2456 = vmatpush1.msra.mxu0 0.0
    %2457 = vmatprep.subr.mxu0 0.0
    %2458 = vmatpush1.msra.mxu0 0.0
    %2459 = vmatprep.subr.mxu0 0.0
    %2460 = vmatpush1.msra.mxu0 0.0
    %2461 = vmatprep.subr.mxu0 0.0
    %2462 = vmatpush1.msra.mxu0 0.0
    %2463 = vmatprep.subr.mxu0 0.0
    %2464 = vmatpush1.msra.mxu0 0.0
    %2465 = vmatprep.subr.mxu0 0.0
    %2466 = vmatpush1.msra.mxu0 0.0
    %2467 = vmatprep.subr.mxu0 0.0
    %2468 = vmatpush1.msra.mxu0 0.0
    %2469 = vmatprep.subr.mxu0 0.0
    %2470 = vmatpush1.msra.mxu0 0.0
    %2471 = vmatprep.mubr.f32.mxu0 0.0
    %v2472 = vand.u32 %v1657, 4294901760
    %v2473 = vsub.f32 %v1657, %v2472
    %v2474 = vand.u32 %v2473, 4294901760
    %2475 = vmatmul.mubr.f32.gmra.mrb[0].mxu0 %v2474
    %v2476 = vpop.f32.mrb[0].mxu0
    %v2477 = vadd.f32 %v2400, %v2476
    %v2478 = vpop.f32.mrb[0].mxu0
    %2479 = vdwg.mxu0
    %2480 = vmatprep.subr.mxu0 0.0
    %v2481 = vand.u32 %v2144, 4294901760
    %v2482 = vsub.f32 %v2144, %v2481
    %v2483 = vand.u32 %v2482, 4294901760
    %2484 = vmatpush1.msra.mxu0 %v2483
    %2485 = vmatprep.subr.mxu0 0.0
    %v2486 = vand.u32 %v2145, 4294901760
    %v2487 = vsub.f32 %v2145, %v2486
    %v2488 = vand.u32 %v2487, 4294901760
    %2489 = vmatpush1.msra.mxu0 %v2488
    %2490 = vmatprep.subr.mxu0 0.0
    %v2491 = vand.u32 %v2146, 4294901760
    %v2492 = vsub.f32 %v2146, %v2491
    %v2493 = vand.u32 %v2492, 4294901760
    %2494 = vmatpush1.msra.mxu0 %v2493
    %2495 = vmatprep.subr.mxu0 0.0
    %v2496 = vand.u32 %v2147, 4294901760
    %v2497 = vsub.f32 %v2147, %v2496
    %v2498 = vand.u32 %v2497, 4294901760
    %2499 = vmatpush1.msra.mxu0 %v2498
    %2500 = vmatprep.subr.mxu0 0.0
    %2501 = vmatpush1.msra.mxu0 0.0
    %2502 = vmatprep.subr.mxu0 0.0
    %2503 = vmatpush1.msra.mxu0 0.0
    %2504 = vmatprep.subr.mxu0 0.0
    %2505 = vmatpush1.msra.mxu0 0.0
    %2506 = vmatprep.subr.mxu0 0.0
    %2507 = vmatpush1.msra.mxu0 0.0
    %2508 = vmatprep.subr.mxu0 0.0
    %2509 = vmatpush1.msra.mxu0 0.0
    %2510 = vmatprep.subr.mxu0 0.0
    %2511 = vmatpush1.msra.mxu0 0.0
    %2512 = vmatprep.subr.mxu0 0.0
    %2513 = vmatpush1.msra.mxu0 0.0
    %2514 = vmatprep.subr.mxu0 0.0
    %2515 = vmatpush1.msra.mxu0 0.0
    %2516 = vmatprep.subr.mxu0 0.0
    %2517 = vmatpush1.msra.mxu0 0.0
    %2518 = vmatprep.subr.mxu0 0.0
    %2519 = vmatpush1.msra.mxu0 0.0
    %2520 = vmatprep.subr.mxu0 0.0
    %2521 = vmatpush1.msra.mxu0 0.0
    %2522 = vmatprep.subr.mxu0 0.0
    %2523 = vmatpush1.msra.mxu0 0.0
    %2524 = vmatprep.subr.mxu0 0.0
    %2525 = vmatpush1.msra.mxu0 0.0
    %2526 = vmatprep.subr.mxu0 0.0
    %2527 = vmatpush1.msra.mxu0 0.0
    %2528 = vmatprep.subr.mxu0 0.0
    %2529 = vmatpush1.msra.mxu0 0.0
    %2530 = vmatprep.subr.mxu0 0.0
    %2531 = vmatpush1.msra.mxu0 0.0
    %2532 = vmatprep.subr.mxu0 0.0
    %2533 = vmatpush1.msra.mxu0 0.0
    %2534 = vmatprep.subr.mxu0 0.0
    %2535 = vmatpush1.msra.mxu0 0.0
    %2536 = vmatprep.subr.mxu0 0.0
    %2537 = vmatpush1.msra.mxu0 0.0
    %2538 = vmatprep.subr.mxu0 0.0
    %2539 = vmatpush1.msra.mxu0 0.0
    %2540 = vmatprep.subr.mxu0 0.0
    %2541 = vmatpush1.msra.mxu0 0.0
    %2542 = vmatprep.subr.mxu0 0.0
    %2543 = vmatpush1.msra.mxu0 0.0
    %2544 = vmatprep.subr.mxu0 0.0
    %2545 = vmatpush1.msra.mxu0 0.0
    %2546 = vmatprep.subr.mxu0 0.0
    %2547 = vmatpush1.msra.mxu0 0.0
    %2548 = vmatprep.subr.mxu0 0.0
    %2549 = vmatpush1.msra.mxu0 0.0
    %2550 = vmatprep.subr.mxu0 0.0
    %2551 = vmatpush1.msra.mxu0 0.0
    %2552 = vmatprep.subr.mxu0 0.0
    %2553 = vmatpush1.msra.mxu0 0.0
    %2554 = vmatprep.subr.mxu0 0.0
    %2555 = vmatpush1.msra.mxu0 0.0
    %2556 = vmatprep.mubr.f32.mxu0 0.0
    %v2557 = vand.u32 %v1657, 4294901760
    %2558 = vmatmul.mubr.f32.gmra.mrb[0].mxu0 %v2557
    %v2559 = vpop.f32.mrb[0].mxu0
    %v2560 = vadd.f32 %v2477, %v2559
    %v2561 = vpop.f32.mrb[0].mxu0
    %2562 = vdwg.mxu0
    %2563 = vmatprep.subr.mxu0 0.0
    %v2564 = vand.u32 %v2144, 4294901760
    %2565 = vmatpush1.msra.mxu0 %v2564
    %2566 = vmatprep.subr.mxu0 0.0
    %v2567 = vand.u32 %v2145, 4294901760
    %2568 = vmatpush1.msra.mxu0 %v2567
    %2569 = vmatprep.subr.mxu0 0.0
    %v2570 = vand.u32 %v2146, 4294901760
    %2571 = vmatpush1.msra.mxu0 %v2570
    %2572 = vmatprep.subr.mxu0 0.0
    %v2573 = vand.u32 %v2147, 4294901760
    %2574 = vmatpush1.msra.mxu0 %v2573
    %2575 = vmatprep.subr.mxu0 0.0
    %2576 = vmatpush1.msra.mxu0 0.0
    %2577 = vmatprep.subr.mxu0 0.0
    %2578 = vmatpush1.msra.mxu0 0.0
    %2579 = vmatprep.subr.mxu0 0.0
    %2580 = vmatpush1.msra.mxu0 0.0
    %2581 = vmatprep.subr.mxu0 0.0
    %2582 = vmatpush1.msra.mxu0 0.0
    %2583 = vmatprep.subr.mxu0 0.0
    %2584 = vmatpush1.msra.mxu0 0.0
    %2585 = vmatprep.subr.mxu0 0.0
    %2586 = vmatpush1.msra.mxu0 0.0
    %2587 = vmatprep.subr.mxu0 0.0
    %2588 = vmatpush1.msra.mxu0 0.0
    %2589 = vmatprep.subr.mxu0 0.0
    %2590 = vmatpush1.msra.mxu0 0.0
    %2591 = vmatprep.subr.mxu0 0.0
    %2592 = vmatpush1.msra.mxu0 0.0
    %2593 = vmatprep.subr.mxu0 0.0
    %2594 = vmatpush1.msra.mxu0 0.0
    %2595 = vmatprep.subr.mxu0 0.0
    %2596 = vmatpush1.msra.mxu0 0.0
    %2597 = vmatprep.subr.mxu0 0.0
    %2598 = vmatpush1.msra.mxu0 0.0
    %2599 = vmatprep.subr.mxu0 0.0
    %2600 = vmatpush1.msra.mxu0 0.0
    %2601 = vmatprep.subr.mxu0 0.0
    %2602 = vmatpush1.msra.mxu0 0.0
    %2603 = vmatprep.subr.mxu0 0.0
    %2604 = vmatpush1.msra.mxu0 0.0
    %2605 = vmatprep.subr.mxu0 0.0
    %2606 = vmatpush1.msra.mxu0 0.0
    %2607 = vmatprep.subr.mxu0 0.0
    %2608 = vmatpush1.msra.mxu0 0.0
    %2609 = vmatprep.subr.mxu0 0.0
    %2610 = vmatpush1.msra.mxu0 0.0
    %2611 = vmatprep.subr.mxu0 0.0
    %2612 = vmatpush1.msra.mxu0 0.0
    %2613 = vmatprep.subr.mxu0 0.0
    %2614 = vmatpush1.msra.mxu0 0.0
    %2615 = vmatprep.subr.mxu0 0.0
    %2616 = vmatpush1.msra.mxu0 0.0
    %2617 = vmatprep.subr.mxu0 0.0
    %2618 = vmatpush1.msra.mxu0 0.0
    %2619 = vmatprep.subr.mxu0 0.0
    %2620 = vmatpush1.msra.mxu0 0.0
    %2621 = vmatprep.subr.mxu0 0.0
    %2622 = vmatpush1.msra.mxu0 0.0
    %2623 = vmatprep.subr.mxu0 0.0
    %2624 = vmatpush1.msra.mxu0 0.0
    %2625 = vmatprep.subr.mxu0 0.0
    %2626 = vmatpush1.msra.mxu0 0.0
    %2627 = vmatprep.subr.mxu0 0.0
    %2628 = vmatpush1.msra.mxu0 0.0
    %2629 = vmatprep.subr.mxu0 0.0
    %2630 = vmatpush1.msra.mxu0 0.0
    %2631 = vmatprep.mubr.f32.mxu0 0.0
    %v2632 = vand.u32 %v1657, 4294901760
    %2633 = vmatmul.mubr.f32.gmra.mrb[0].mxu0 %v2632
    %v2634 = vpop.f32.mrb[0].mxu0
    %v2635 = vadd.f32 %v2560, %v2634
    %v2636 = vpop.f32.mrb[0].mxu0
    %2637 = vdwg.mxu0
    %v2638 = vsub.f32 %v2141, %v2635
    %v2639 = vmul.f32 %v2638, %v2638
    %v2640 = vld [vmem:[#allocation7 + $0xa0] sm:$0xff]
    %v2641 = vld [vmem:[#allocation7 + $0xa8] sm:$0xff]
    %v2642 = vld [vmem:[#allocation7 + $0xb0] sm:$0xff]
    %v2643 = vld [vmem:[#allocation7 + $0xb8] sm:$0xff]
    %v2644 = vld [vmem:[#allocation7 + $0xc0] sm:$0xff]
    %v2645 = vld [vmem:[#allocation7 + $0xc8] sm:$0xff]
    %v2646 = vld [vmem:[#allocation7 + $0xd0] sm:$0xff]
    %v2647 = vld [vmem:[#allocation7 + $0xd8] sm:$0xff]
    %v2648 = vld [vmem:[#allocation7 + $0xe0] sm:$0xff]
    %v2649 = vld [vmem:[#allocation7 + $0xe8] sm:$0xff]
    %v2650 = vld [vmem:[#allocation7 + $0xf0] sm:$0xff]
    %v2651 = vld [vmem:[#allocation7 + $0xf8] sm:$0xff]
    %vm2652 = vcmask 785408
    %v2654 = vsel %vm2652, %v2639, 0
    %2656 = vmatprep.subr.mxu0 0.0
    %v2657 = vand.u32 %v2640, 4294901760
    %2658 = vmatpush1.msra.mxu0 %v2657
    %2659 = vmatprep.subr.mxu0 0.0
    %v2660 = vand.u32 %v2641, 4294901760
    %2661 = vmatpush1.msra.mxu0 %v2660
    %2662 = vmatprep.subr.mxu0 0.0
    %v2663 = vand.u32 %v2642, 4294901760
    %2664 = vmatpush1.msra.mxu0 %v2663
    %2665 = vmatprep.subr.mxu0 0.0
    %v2666 = vand.u32 %v2643, 4294901760
    %2667 = vmatpush1.msra.mxu0 %v2666
    %2668 = vmatprep.subr.mxu0 0.0
    %v2669 = vand.u32 %v2644, 4294901760
    %2670 = vmatpush1.msra.mxu0 %v2669
    %2671 = vmatprep.subr.mxu0 0.0
    %v2672 = vand.u32 %v2645, 4294901760
    %2673 = vmatpush1.msra.mxu0 %v2672
    %2674 = vmatprep.subr.mxu0 0.0
    %v2675 = vand.u32 %v2646, 4294901760
    %2676 = vmatpush1.msra.mxu0 %v2675
    %2677 = vmatprep.subr.mxu0 0.0
    %v2678 = vand.u32 %v2647, 4294901760
    %2679 = vmatpush1.msra.mxu0 %v2678
    %2680 = vmatprep.subr.mxu0 0.0
    %v2681 = vand.u32 %v2648, 4294901760
    %2682 = vmatpush1.msra.mxu0 %v2681
    %2683 = vmatprep.subr.mxu0 0.0
    %v2684 = vand.u32 %v2649, 4294901760
    %2685 = vmatpush1.msra.mxu0 %v2684
    %2686 = vmatprep.subr.mxu0 0.0
    %v2687 = vand.u32 %v2650, 4294901760
    %2688 = vmatpush1.msra.mxu0 %v2687
    %2689 = vmatprep.subr.mxu0 0.0
    %v2690 = vand.u32 %v2651, 4294901760
    %2691 = vmatpush1.msra.mxu0 %v2690
    %2692 = vmatprep.subr.mxu0 0.0
    %2693 = vmatpush1.msra.mxu0 0.0
    %2694 = vmatprep.subr.mxu0 0.0
    %2695 = vmatpush1.msra.mxu0 0.0
    %2696 = vmatprep.subr.mxu0 0.0
    %2697 = vmatpush1.msra.mxu0 0.0
    %2698 = vmatprep.subr.mxu0 0.0
    %2699 = vmatpush1.msra.mxu0 0.0
    %2700 = vmatprep.subr.mxu0 0.0
    %2701 = vmatpush1.msra.mxu0 0.0
    %2702 = vmatprep.subr.mxu0 0.0
    %2703 = vmatpush1.msra.mxu0 0.0
    %2704 = vmatprep.subr.mxu0 0.0
    %2705 = vmatpush1.msra.mxu0 0.0
    %2706 = vmatprep.subr.mxu0 0.0
    %2707 = vmatpush1.msra.mxu0 0.0
    %2708 = vmatprep.subr.mxu0 0.0
    %2709 = vmatpush1.msra.mxu0 0.0
    %2710 = vmatprep.subr.mxu0 0.0
    %2711 = vmatpush1.msra.mxu0 0.0
    %2712 = vmatprep.subr.mxu0 0.0
    %2713 = vmatpush1.msra.mxu0 0.0
    %2714 = vmatprep.subr.mxu0 0.0
    %2715 = vmatpush1.msra.mxu0 0.0
    %2716 = vmatprep.subr.mxu0 0.0
    %2717 = vmatpush1.msra.mxu0 0.0
    %2718 = vmatprep.subr.mxu0 0.0
    %2719 = vmatpush1.msra.mxu0 0.0
    %2720 = vmatprep.subr.mxu0 0.0
    %2721 = vmatpush1.msra.mxu0 0.0
    %2722 = vmatprep.subr.mxu0 0.0
    %2723 = vmatpush1.msra.mxu0 0.0
    %2724 = vmatprep.subr.mxu0 0.0
    %2725 = vmatpush1.msra.mxu0 0.0
    %2726 = vmatprep.subr.mxu0 0.0
    %2727 = vmatpush1.msra.mxu0 0.0
    %2728 = vmatprep.subr.mxu0 0.0
    %2729 = vmatpush1.msra.mxu0 0.0
    %2730 = vmatprep.subr.mxu0 0.0
    %2731 = vmatpush1.msra.mxu0 0.0
    %2732 = vmatprep.mubr.f32.mxu0 0.0
    %v2733 = vand.u32 %v2654, 4294901760
    %v2734 = vsub.f32 %v2654, %v2733
    %v2735 = vand.u32 %v2734, 4294901760
    %v2736 = vsub.f32 %v2734, %v2735
    %v2737 = vand.u32 %v2736, 4294901760
    %2738 = vmatmul.mubr.f32.gmra.mrb[0].mxu0 %v2737
    %v2739 = vpop.f32.mrb[0].mxu0
    %v2740 = vadd.f32 1e-05, %v2739
    %v2741 = vpop.f32.mrb[0].mxu0
    %2742 = vdwg.mxu0
    %2743 = vmatprep.subr.mxu0 0.0
    %v2744 = vand.u32 %v2640, 4294901760
    %v2745 = vsub.f32 %v2640, %v2744
    %v2746 = vand.u32 %v2745, 4294901760
    %v2747 = vsub.f32 %v2745, %v2746
    %v2748 = vand.u32 %v2747, 4294901760
    %2749 = vmatpush1.msra.mxu0 %v2748
    %2750 = vmatprep.subr.mxu0 0.0
    %v2751 = vand.u32 %v2641, 4294901760
    %v2752 = vsub.f32 %v2641, %v2751
    %v2753 = vand.u32 %v2752, 4294901760
    %v2754 = vsub.f32 %v2752, %v2753
    %v2755 = vand.u32 %v2754, 4294901760
    %2756 = vmatpush1.msra.mxu0 %v2755
    %2757 = vmatprep.subr.mxu0 0.0
    %v2758 = vand.u32 %v2642, 4294901760
    %v2759 = vsub.f32 %v2642, %v2758
    %v2760 = vand.u32 %v2759, 4294901760
    %v2761 = vsub.f32 %v2759, %v2760
    %v2762 = vand.u32 %v2761, 4294901760
    %2763 = vmatpush1.msra.mxu0 %v2762
    %2764 = vmatprep.subr.mxu0 0.0
    %v2765 = vand.u32 %v2643, 4294901760
    %v2766 = vsub.f32 %v2643, %v2765
    %v2767 = vand.u32 %v2766, 4294901760
    %v2768 = vsub.f32 %v2766, %v2767
    %v2769 = vand.u32 %v2768, 4294901760
    %2770 = vmatpush1.msra.mxu0 %v2769
    %2771 = vmatprep.subr.mxu0 0.0
    %v2772 = vand.u32 %v2644, 4294901760
    %v2773 = vsub.f32 %v2644, %v2772
    %v2774 = vand.u32 %v2773, 4294901760
    %v2775 = vsub.f32 %v2773, %v2774
    %v2776 = vand.u32 %v2775, 4294901760
    %2777 = vmatpush1.msra.mxu0 %v2776
    %2778 = vmatprep.subr.mxu0 0.0
    %v2779 = vand.u32 %v2645, 4294901760
    %v2780 = vsub.f32 %v2645, %v2779
    %v2781 = vand.u32 %v2780, 4294901760
    %v2782 = vsub.f32 %v2780, %v2781
    %v2783 = vand.u32 %v2782, 4294901760
    %2784 = vmatpush1.msra.mxu0 %v2783
    %2785 = vmatprep.subr.mxu0 0.0
    %v2786 = vand.u32 %v2646, 4294901760
    %v2787 = vsub.f32 %v2646, %v2786
    %v2788 = vand.u32 %v2787, 4294901760
    %v2789 = vsub.f32 %v2787, %v2788
    %v2790 = vand.u32 %v2789, 4294901760
    %2791 = vmatpush1.msra.mxu0 %v2790
    %2792 = vmatprep.subr.mxu0 0.0
    %v2793 = vand.u32 %v2647, 4294901760
    %v2794 = vsub.f32 %v2647, %v2793
    %v2795 = vand.u32 %v2794, 4294901760
    %v2796 = vsub.f32 %v2794, %v2795
    %v2797 = vand.u32 %v2796, 4294901760
    %2798 = vmatpush1.msra.mxu0 %v2797
    %2799 = vmatprep.subr.mxu0 0.0
    %v2800 = vand.u32 %v2648, 4294901760
    %v2801 = vsub.f32 %v2648, %v2800
    %v2802 = vand.u32 %v2801, 4294901760
    %v2803 = vsub.f32 %v2801, %v2802
    %v2804 = vand.u32 %v2803, 4294901760
    %2805 = vmatpush1.msra.mxu0 %v2804
    %2806 = vmatprep.subr.mxu0 0.0
    %v2807 = vand.u32 %v2649, 4294901760
    %v2808 = vsub.f32 %v2649, %v2807
    %v2809 = vand.u32 %v2808, 4294901760
    %v2810 = vsub.f32 %v2808, %v2809
    %v2811 = vand.u32 %v2810, 4294901760
    %2812 = vmatpush1.msra.mxu0 %v2811
    %2813 = vmatprep.subr.mxu0 0.0
    %v2814 = vand.u32 %v2650, 4294901760
    %v2815 = vsub.f32 %v2650, %v2814
    %v2816 = vand.u32 %v2815, 4294901760
    %v2817 = vsub.f32 %v2815, %v2816
    %v2818 = vand.u32 %v2817, 4294901760
    %2819 = vmatpush1.msra.mxu0 %v2818
    %2820 = vmatprep.subr.mxu0 0.0
    %v2821 = vand.u32 %v2651, 4294901760
    %v2822 = vsub.f32 %v2651, %v2821
    %v2823 = vand.u32 %v2822, 4294901760
    %v2824 = vsub.f32 %v2822, %v2823
    %v2825 = vand.u32 %v2824, 4294901760
    %2826 = vmatpush1.msra.mxu0 %v2825
    %2827 = vmatprep.subr.mxu0 0.0
    %2828 = vmatpush1.msra.mxu0 0.0
    %2829 = vmatprep.subr.mxu0 0.0
    %2830 = vmatpush1.msra.mxu0 0.0
    %2831 = vmatprep.subr.mxu0 0.0
    %2832 = vmatpush1.msra.mxu0 0.0
    %2833 = vmatprep.subr.mxu0 0.0
    %2834 = vmatpush1.msra.mxu0 0.0
    %2835 = vmatprep.subr.mxu0 0.0
    %2836 = vmatpush1.msra.mxu0 0.0
    %2837 = vmatprep.subr.mxu0 0.0
    %2838 = vmatpush1.msra.mxu0 0.0
    %2839 = vmatprep.subr.mxu0 0.0
    %2840 = vmatpush1.msra.mxu0 0.0
    %2841 = vmatprep.subr.mxu0 0.0
    %2842 = vmatpush1.msra.mxu0 0.0
    %2843 = vmatprep.subr.mxu0 0.0
    %2844 = vmatpush1.msra.mxu0 0.0
    %2845 = vmatprep.subr.mxu0 0.0
    %2846 = vmatpush1.msra.mxu0 0.0
    %2847 = vmatprep.subr.mxu0 0.0
    %2848 = vmatpush1.msra.mxu0 0.0
    %2849 = vmatprep.subr.mxu0 0.0
    %2850 = vmatpush1.msra.mxu0 0.0
    %2851 = vmatprep.subr.mxu0 0.0
    %2852 = vmatpush1.msra.mxu0 0.0
    %2853 = vmatprep.subr.mxu0 0.0
    %2854 = vmatpush1.msra.mxu0 0.0
    %2855 = vmatprep.subr.mxu0 0.0
    %2856 = vmatpush1.msra.mxu0 0.0
    %2857 = vmatprep.subr.mxu0 0.0
    %2858 = vmatpush1.msra.mxu0 0.0
    %2859 = vmatprep.subr.mxu0 0.0
    %2860 = vmatpush1.msra.mxu0 0.0
    %2861 = vmatprep.subr.mxu0 0.0
    %2862 = vmatpush1.msra.mxu0 0.0
    %2863 = vmatprep.subr.mxu0 0.0
    %2864 = vmatpush1.msra.mxu0 0.0
    %2865 = vmatprep.subr.mxu0 0.0
    %2866 = vmatpush1.msra.mxu0 0.0
    %2867 = vmatprep.mubr.f32.mxu0 0.0
    %v2868 = vand.u32 %v2654, 4294901760
    %2869 = vmatmul.mubr.f32.gmra.mrb[0].mxu0 %v2868
    %v2870 = vpop.f32.mrb[0].mxu0
    %v2871 = vadd.f32 %v2740, %v2870
    %v2872 = vpop.f32.mrb[0].mxu0
    %2873 = vdwg.mxu0
    %2874 = vmatprep.subr.mxu0 0.0
    %v2875 = vand.u32 %v2640, 4294901760
    %v2876 = vsub.f32 %v2640, %v2875
    %2877 = vmatpush1.msra.mxu0 %v2876
    %2878 = vmatprep.subr.mxu0 0.0
    %v2879 = vand.u32 %v2641, 4294901760
    %v2880 = vsub.f32 %v2641, %v2879
    %2881 = vmatpush1.msra.mxu0 %v2880
    %2882 = vmatprep.subr.mxu0 0.0
    %v2883 = vand.u32 %v2642, 4294901760
    %v2884 = vsub.f32 %v2642, %v2883
    %2885 = vmatpush1.msra.mxu0 %v2884
    %2886 = vmatprep.subr.mxu0 0.0
    %v2887 = vand.u32 %v2643, 4294901760
    %v2888 = vsub.f32 %v2643, %v2887
    %2889 = vmatpush1.msra.mxu0 %v2888
    %2890 = vmatprep.subr.mxu0 0.0
    %v2891 = vand.u32 %v2644, 4294901760
    %v2892 = vsub.f32 %v2644, %v2891
    %2893 = vmatpush1.msra.mxu0 %v2892
    %2894 = vmatprep.subr.mxu0 0.0
    %v2895 = vand.u32 %v2645, 4294901760
    %v2896 = vsub.f32 %v2645, %v2895
    %2897 = vmatpush1.msra.mxu0 %v2896
    %2898 = vmatprep.subr.mxu0 0.0
    %v2899 = vand.u32 %v2646, 4294901760
    %v2900 = vsub.f32 %v2646, %v2899
    %2901 = vmatpush1.msra.mxu0 %v2900
    %2902 = vmatprep.subr.mxu0 0.0
    %v2903 = vand.u32 %v2647, 4294901760
    %v2904 = vsub.f32 %v2647, %v2903
    %2905 = vmatpush1.msra.mxu0 %v2904
    %2906 = vmatprep.subr.mxu0 0.0
    %v2907 = vand.u32 %v2648, 4294901760
    %v2908 = vsub.f32 %v2648, %v2907
    %2909 = vmatpush1.msra.mxu0 %v2908
    %2910 = vmatprep.subr.mxu0 0.0
    %v2911 = vand.u32 %v2649, 4294901760
    %v2912 = vsub.f32 %v2649, %v2911
    %2913 = vmatpush1.msra.mxu0 %v2912
    %2914 = vmatprep.subr.mxu0 0.0
    %v2915 = vand.u32 %v2650, 4294901760
    %v2916 = vsub.f32 %v2650, %v2915
    %2917 = vmatpush1.msra.mxu0 %v2916
    %2918 = vmatprep.subr.mxu0 0.0
    %v2919 = vand.u32 %v2651, 4294901760
    %v2920 = vsub.f32 %v2651, %v2919
    %2921 = vmatpush1.msra.mxu0 %v2920
    %2922 = vmatprep.subr.mxu0 0.0
    %2923 = vmatpush1.msra.mxu0 0.0
    %2924 = vmatprep.subr.mxu0 0.0
    %2925 = vmatpush1.msra.mxu0 0.0
    %2926 = vmatprep.subr.mxu0 0.0
    %2927 = vmatpush1.msra.mxu0 0.0
    %2928 = vmatprep.subr.mxu0 0.0
    %2929 = vmatpush1.msra.mxu0 0.0
    %2930 = vmatprep.subr.mxu0 0.0
    %2931 = vmatpush1.msra.mxu0 0.0
    %2932 = vmatprep.subr.mxu0 0.0
    %2933 = vmatpush1.msra.mxu0 0.0
    %2934 = vmatprep.subr.mxu0 0.0
    %2935 = vmatpush1.msra.mxu0 0.0
    %2936 = vmatprep.subr.mxu0 0.0
    %2937 = vmatpush1.msra.mxu0 0.0
    %2938 = vmatprep.subr.mxu0 0.0
    %2939 = vmatpush1.msra.mxu0 0.0
    %2940 = vmatprep.subr.mxu0 0.0
    %2941 = vmatpush1.msra.mxu0 0.0
    %2942 = vmatprep.subr.mxu0 0.0
    %2943 = vmatpush1.msra.mxu0 0.0
    %2944 = vmatprep.subr.mxu0 0.0
    %2945 = vmatpush1.msra.mxu0 0.0
    %2946 = vmatprep.subr.mxu0 0.0
    %2947 = vmatpush1.msra.mxu0 0.0
    %2948 = vmatprep.subr.mxu0 0.0
    %2949 = vmatpush1.msra.mxu0 0.0
    %2950 = vmatprep.subr.mxu0 0.0
    %2951 = vmatpush1.msra.mxu0 0.0
    %2952 = vmatprep.subr.mxu0 0.0
    %2953 = vmatpush1.msra.mxu0 0.0
    %2954 = vmatprep.subr.mxu0 0.0
    %2955 = vmatpush1.msra.mxu0 0.0
    %2956 = vmatprep.subr.mxu0 0.0
    %2957 = vmatpush1.msra.mxu0 0.0
    %2958 = vmatprep.subr.mxu0 0.0
    %2959 = vmatpush1.msra.mxu0 0.0
    %2960 = vmatprep.subr.mxu0 0.0
    %2961 = vmatpush1.msra.mxu0 0.0
    %2962 = vmatprep.mubr.f32.mxu0 0.0
    %v2963 = vand.u32 %v2654, 4294901760
    %v2964 = vsub.f32 %v2654, %v2963
    %2965 = vmatmul.mubr.f32.gmra.mrb[0].mxu0 %v2964
    %v2966 = vpop.f32.mrb[0].mxu0
    %v2967 = vadd.f32 %v2871, %v2966
    %v2968 = vpop.f32.mrb[0].mxu0
    %2969 = vdwg.mxu0
    %2970 = vmatprep.subr.mxu0 0.0
    %v2971 = vand.u32 %v2640, 4294901760
    %2972 = vmatpush1.msra.mxu0 %v2971
    %2973 = vmatprep.subr.mxu0 0.0
    %v2974 = vand.u32 %v2641, 4294901760
    %2975 = vmatpush1.msra.mxu0 %v2974
    %2976 = vmatprep.subr.mxu0 0.0
    %v2977 = vand.u32 %v2642, 4294901760
    %2978 = vmatpush1.msra.mxu0 %v2977
    %2979 = vmatprep.subr.mxu0 0.0
    %v2980 = vand.u32 %v2643, 4294901760
    %2981 = vmatpush1.msra.mxu0 %v2980
    %2982 = vmatprep.subr.mxu0 0.0
    %v2983 = vand.u32 %v2644, 4294901760
    %2984 = vmatpush1.msra.mxu0 %v2983
    %2985 = vmatprep.subr.mxu0 0.0
    %v2986 = vand.u32 %v2645, 4294901760
    %2987 = vmatpush1.msra.mxu0 %v2986
    %2988 = vmatprep.subr.mxu0 0.0
    %v2989 = vand.u32 %v2646, 4294901760
    %2990 = vmatpush1.msra.mxu0 %v2989
    %2991 = vmatprep.subr.mxu0 0.0
    %v2992 = vand.u32 %v2647, 4294901760
    %2993 = vmatpush1.msra.mxu0 %v2992
    %2994 = vmatprep.subr.mxu0 0.0
    %v2995 = vand.u32 %v2648, 4294901760
    %2996 = vmatpush1.msra.mxu0 %v2995
    %2997 = vmatprep.subr.mxu0 0.0
    %v2998 = vand.u32 %v2649, 4294901760
    %2999 = vmatpush1.msra.mxu0 %v2998
    %3000 = vmatprep.subr.mxu0 0.0
    %v3001 = vand.u32 %v2650, 4294901760
    %3002 = vmatpush1.msra.mxu0 %v3001
    %3003 = vmatprep.subr.mxu0 0.0
    %v3004 = vand.u32 %v2651, 4294901760
    %3005 = vmatpush1.msra.mxu0 %v3004
    %3006 = vmatprep.subr.mxu0 0.0
    %3007 = vmatpush1.msra.mxu0 0.0
    %3008 = vmatprep.subr.mxu0 0.0
    %3009 = vmatpush1.msra.mxu0 0.0
    %3010 = vmatprep.subr.mxu0 0.0
    %3011 = vmatpush1.msra.mxu0 0.0
    %3012 = vmatprep.subr.mxu0 0.0
    %3013 = vmatpush1.msra.mxu0 0.0
    %3014 = vmatprep.subr.mxu0 0.0
    %3015 = vmatpush1.msra.mxu0 0.0
    %3016 = vmatprep.subr.mxu0 0.0
    %3017 = vmatpush1.msra.mxu0 0.0
    %3018 = vmatprep.subr.mxu0 0.0
    %3019 = vmatpush1.msra.mxu0 0.0
    %3020 = vmatprep.subr.mxu0 0.0
    %3021 = vmatpush1.msra.mxu0 0.0
    %3022 = vmatprep.subr.mxu0 0.0
    %3023 = vmatpush1.msra.mxu0 0.0
    %3024 = vmatprep.subr.mxu0 0.0
    %3025 = vmatpush1.msra.mxu0 0.0
    %3026 = vmatprep.subr.mxu0 0.0
    %3027 = vmatpush1.msra.mxu0 0.0
    %3028 = vmatprep.subr.mxu0 0.0
    %3029 = vmatpush1.msra.mxu0 0.0
    %3030 = vmatprep.subr.mxu0 0.0
    %3031 = vmatpush1.msra.mxu0 0.0
    %3032 = vmatprep.subr.mxu0 0.0
    %3033 = vmatpush1.msra.mxu0 0.0
    %3034 = vmatprep.subr.mxu0 0.0
    %3035 = vmatpush1.msra.mxu0 0.0
    %3036 = vmatprep.subr.mxu0 0.0
    %3037 = vmatpush1.msra.mxu0 0.0
    %3038 = vmatprep.subr.mxu0 0.0
    %3039 = vmatpush1.msra.mxu0 0.0
    %3040 = vmatprep.subr.mxu0 0.0
    %3041 = vmatpush1.msra.mxu0 0.0
    %3042 = vmatprep.subr.mxu0 0.0
    %3043 = vmatpush1.msra.mxu0 0.0
    %3044 = vmatprep.subr.mxu0 0.0
    %3045 = vmatpush1.msra.mxu0 0.0
    %3046 = vmatprep.mubr.f32.mxu0 0.0
    %v3047 = vand.u32 %v2654, 4294901760
    %v3048 = vsub.f32 %v2654, %v3047
    %v3049 = vand.u32 %v3048, 4294901760
    %3050 = vmatmul.mubr.f32.gmra.mrb[0].mxu0 %v3049
    %v3051 = vpop.f32.mrb[0].mxu0
    %v3052 = vadd.f32 %v2967, %v3051
    %v3053 = vpop.f32.mrb[0].mxu0
    %3054 = vdwg.mxu0
    %3055 = vmatprep.subr.mxu0 0.0
    %v3056 = vand.u32 %v2640, 4294901760
    %v3057 = vsub.f32 %v2640, %v3056
    %v3058 = vand.u32 %v3057, 4294901760
    %3059 = vmatpush1.msra.mxu0 %v3058
    %3060 = vmatprep.subr.mxu0 0.0
    %v3061 = vand.u32 %v2641, 4294901760
    %v3062 = vsub.f32 %v2641, %v3061
    %v3063 = vand.u32 %v3062, 4294901760
    %3064 = vmatpush1.msra.mxu0 %v3063
    %3065 = vmatprep.subr.mxu0 0.0
    %v3066 = vand.u32 %v2642, 4294901760
    %v3067 = vsub.f32 %v2642, %v3066
    %v3068 = vand.u32 %v3067, 4294901760
    %3069 = vmatpush1.msra.mxu0 %v3068
    %3070 = vmatprep.subr.mxu0 0.0
    %v3071 = vand.u32 %v2643, 4294901760
    %v3072 = vsub.f32 %v2643, %v3071
    %v3073 = vand.u32 %v3072, 4294901760
    %3074 = vmatpush1.msra.mxu0 %v3073
    %3075 = vmatprep.subr.mxu0 0.0
    %v3076 = vand.u32 %v2644, 4294901760
    %v3077 = vsub.f32 %v2644, %v3076
    %v3078 = vand.u32 %v3077, 4294901760
    %3079 = vmatpush1.msra.mxu0 %v3078
    %3080 = vmatprep.subr.mxu0 0.0
    %v3081 = vand.u32 %v2645, 4294901760
    %v3082 = vsub.f32 %v2645, %v3081
    %v3083 = vand.u32 %v3082, 4294901760
    %3084 = vmatpush1.msra.mxu0 %v3083
    %3085 = vmatprep.subr.mxu0 0.0
    %v3086 = vand.u32 %v2646, 4294901760
    %v3087 = vsub.f32 %v2646, %v3086
    %v3088 = vand.u32 %v3087, 4294901760
    %3089 = vmatpush1.msra.mxu0 %v3088
    %3090 = vmatprep.subr.mxu0 0.0
    %v3091 = vand.u32 %v2647, 4294901760
    %v3092 = vsub.f32 %v2647, %v3091
    %v3093 = vand.u32 %v3092, 4294901760
    %3094 = vmatpush1.msra.mxu0 %v3093
    %3095 = vmatprep.subr.mxu0 0.0
    %v3096 = vand.u32 %v2648, 4294901760
    %v3097 = vsub.f32 %v2648, %v3096
    %v3098 = vand.u32 %v3097, 4294901760
    %3099 = vmatpush1.msra.mxu0 %v3098
    %3100 = vmatprep.subr.mxu0 0.0
    %v3101 = vand.u32 %v2649, 4294901760
    %v3102 = vsub.f32 %v2649, %v3101
    %v3103 = vand.u32 %v3102, 4294901760
    %3104 = vmatpush1.msra.mxu0 %v3103
    %3105 = vmatprep.subr.mxu0 0.0
    %v3106 = vand.u32 %v2650, 4294901760
    %v3107 = vsub.f32 %v2650, %v3106
    %v3108 = vand.u32 %v3107, 4294901760
    %3109 = vmatpush1.msra.mxu0 %v3108
    %3110 = vmatprep.subr.mxu0 0.0
    %v3111 = vand.u32 %v2651, 4294901760
    %v3112 = vsub.f32 %v2651, %v3111
    %v3113 = vand.u32 %v3112, 4294901760
    %3114 = vmatpush1.msra.mxu0 %v3113
    %3115 = vmatprep.subr.mxu0 0.0
    %3116 = vmatpush1.msra.mxu0 0.0
    %3117 = vmatprep.subr.mxu0 0.0
    %3118 = vmatpush1.msra.mxu0 0.0
    %3119 = vmatprep.subr.mxu0 0.0
    %3120 = vmatpush1.msra.mxu0 0.0
    %3121 = vmatprep.subr.mxu0 0.0
    %3122 = vmatpush1.msra.mxu0 0.0
    %3123 = vmatprep.subr.mxu0 0.0
    %3124 = vmatpush1.msra.mxu0 0.0
    %3125 = vmatprep.subr.mxu0 0.0
    %3126 = vmatpush1.msra.mxu0 0.0
    %3127 = vmatprep.subr.mxu0 0.0
    %3128 = vmatpush1.msra.mxu0 0.0
    %3129 = vmatprep.subr.mxu0 0.0
    %3130 = vmatpush1.msra.mxu0 0.0
    %3131 = vmatprep.subr.mxu0 0.0
    %3132 = vmatpush1.msra.mxu0 0.0
    %3133 = vmatprep.subr.mxu0 0.0
    %3134 = vmatpush1.msra.mxu0 0.0
    %3135 = vmatprep.subr.mxu0 0.0
    %3136 = vmatpush1.msra.mxu0 0.0
    %3137 = vmatprep.subr.mxu0 0.0
    %3138 = vmatpush1.msra.mxu0 0.0
    %3139 = vmatprep.subr.mxu0 0.0
    %3140 = vmatpush1.msra.mxu0 0.0
    %3141 = vmatprep.subr.mxu0 0.0
    %3142 = vmatpush1.msra.mxu0 0.0
    %3143 = vmatprep.subr.mxu0 0.0
    %3144 = vmatpush1.msra.mxu0 0.0
    %3145 = vmatprep.subr.mxu0 0.0
    %3146 = vmatpush1.msra.mxu0 0.0
    %3147 = vmatprep.subr.mxu0 0.0
    %3148 = vmatpush1.msra.mxu0 0.0
    %3149 = vmatprep.subr.mxu0 0.0
    %3150 = vmatpush1.msra.mxu0 0.0
    %3151 = vmatprep.subr.mxu0 0.0
    %3152 = vmatpush1.msra.mxu0 0.0
    %3153 = vmatprep.subr.mxu0 0.0
    %3154 = vmatpush1.msra.mxu0 0.0
    %3155 = vmatprep.mubr.f32.mxu0 0.0
    %v3156 = vand.u32 %v2654, 4294901760
    %3157 = vmatmul.mubr.f32.gmra.mrb[0].mxu0 %v3156
    %v3158 = vpop.f32.mrb[0].mxu0
    %v3159 = vadd.f32 %v3052, %v3158
    %v3160 = vpop.f32.mrb[0].mxu0
    %3161 = vdwg.mxu0
    %3162 = vmatprep.subr.mxu0 0.0
    %v3163 = vand.u32 %v2640, 4294901760
    %3164 = vmatpush1.msra.mxu0 %v3163
    %3165 = vmatprep.subr.mxu0 0.0
    %v3166 = vand.u32 %v2641, 4294901760
    %3167 = vmatpush1.msra.mxu0 %v3166
    %3168 = vmatprep.subr.mxu0 0.0
    %v3169 = vand.u32 %v2642, 4294901760
    %3170 = vmatpush1.msra.mxu0 %v3169
    %3171 = vmatprep.subr.mxu0 0.0
    %v3172 = vand.u32 %v2643, 4294901760
    %3173 = vmatpush1.msra.mxu0 %v3172
    %3174 = vmatprep.subr.mxu0 0.0
    %v3175 = vand.u32 %v2644, 4294901760
    %3176 = vmatpush1.msra.mxu0 %v3175
    %3177 = vmatprep.subr.mxu0 0.0
    %v3178 = vand.u32 %v2645, 4294901760
    %3179 = vmatpush1.msra.mxu0 %v3178
    %3180 = vmatprep.subr.mxu0 0.0
    %v3181 = vand.u32 %v2646, 4294901760
    %3182 = vmatpush1.msra.mxu0 %v3181
    %3183 = vmatprep.subr.mxu0 0.0
    %v3184 = vand.u32 %v2647, 4294901760
    %3185 = vmatpush1.msra.mxu0 %v3184
    %3186 = vmatprep.subr.mxu0 0.0
    %v3187 = vand.u32 %v2648, 4294901760
    %3188 = vmatpush1.msra.mxu0 %v3187
    %3189 = vmatprep.subr.mxu0 0.0
    %v3190 = vand.u32 %v2649, 4294901760
    %3191 = vmatpush1.msra.mxu0 %v3190
    %3192 = vmatprep.subr.mxu0 0.0
    %v3193 = vand.u32 %v2650, 4294901760
    %3194 = vmatpush1.msra.mxu0 %v3193
    %3195 = vmatprep.subr.mxu0 0.0
    %v3196 = vand.u32 %v2651, 4294901760
    %3197 = vmatpush1.msra.mxu0 %v3196
    %3198 = vmatprep.subr.mxu0 0.0
    %3199 = vmatpush1.msra.mxu0 0.0
    %3200 = vmatprep.subr.mxu0 0.0
    %3201 = vmatpush1.msra.mxu0 0.0
    %3202 = vmatprep.subr.mxu0 0.0
    %3203 = vmatpush1.msra.mxu0 0.0
    %3204 = vmatprep.subr.mxu0 0.0
    %3205 = vmatpush1.msra.mxu0 0.0
    %3206 = vmatprep.subr.mxu0 0.0
    %3207 = vmatpush1.msra.mxu0 0.0
    %3208 = vmatprep.subr.mxu0 0.0
    %3209 = vmatpush1.msra.mxu0 0.0
    %3210 = vmatprep.subr.mxu0 0.0
    %3211 = vmatpush1.msra.mxu0 0.0
    %3212 = vmatprep.subr.mxu0 0.0
    %3213 = vmatpush1.msra.mxu0 0.0
    %3214 = vmatprep.subr.mxu0 0.0
    %3215 = vmatpush1.msra.mxu0 0.0
    %3216 = vmatprep.subr.mxu0 0.0
    %3217 = vmatpush1.msra.mxu0 0.0
    %3218 = vmatprep.subr.mxu0 0.0
    %3219 = vmatpush1.msra.mxu0 0.0
    %3220 = vmatprep.subr.mxu0 0.0
    %3221 = vmatpush1.msra.mxu0 0.0
    %3222 = vmatprep.subr.mxu0 0.0
    %3223 = vmatpush1.msra.mxu0 0.0
    %3224 = vmatprep.subr.mxu0 0.0
    %3225 = vmatpush1.msra.mxu0 0.0
    %3226 = vmatprep.subr.mxu0 0.0
    %3227 = vmatpush1.msra.mxu0 0.0
    %3228 = vmatprep.subr.mxu0 0.0
    %3229 = vmatpush1.msra.mxu0 0.0
    %3230 = vmatprep.subr.mxu0 0.0
    %3231 = vmatpush1.msra.mxu0 0.0
    %3232 = vmatprep.subr.mxu0 0.0
    %3233 = vmatpush1.msra.mxu0 0.0
    %3234 = vmatprep.subr.mxu0 0.0
    %3235 = vmatpush1.msra.mxu0 0.0
    %3236 = vmatprep.subr.mxu0 0.0
    %3237 = vmatpush1.msra.mxu0 0.0
    %3238 = vmatprep.mubr.f32.mxu0 0.0
    %v3239 = vand.u32 %v2654, 4294901760
    %3240 = vmatmul.mubr.f32.gmra.mrb[0].mxu0 %v3239
    %v3241 = vpop.f32.mrb[0].mxu0
    %v3242 = vadd.f32 %v3159, %v3241
    %v3243 = vpop.f32.mrb[0].mxu0
    %3244 = vdwg.mxu0
    %v3245 = vrsqrt.pop %v3242
    %v3246 = vmul.f32 %v2638, %v3245
    %v3247 = vld [vmem:[#allocation7 + $0x167] sm:$0x1]
    %v3248 = vlaneseq
    %v3249 = vshrl.u32 %v3248, 7
    %v3250 = vsub.s32 0, %v3249
    %v3251 = vrot.slane %v3247, %v3250
    %v3252 = vmul.f32 %v3246, %v3251
    %v3253 = vld [vmem:[#allocation7 + $0x168] sm:$0x1]
    %v3254 = vlaneseq
    %v3255 = vshrl.u32 %v3254, 7
    %v3256 = vsub.s32 0, %v3255
    %v3257 = vrot.slane %v3253, %v3256
    %v3258 = vadd.f32 %v3252, %v3257
    %v3259 = vmul.f32 %v3258, 0.5
    %v3260 = vmul.f32 %v3258, 0.70710677
    %vm3261 = vcmp.lt.f32.partialorder %v3260, 0.0
    %v3262 = vsel %vm3261, -1.0, 1.0
    %v3263 = vand.u32 2147483647, %v3260
    %v3264 = vmul.f32 %v3263, 0.3275911
    %v3265 = vadd.f32 %v3264, 1.0
    %v3266 = vrcp.pop %v3265
    %v3267 = vmul.f32 1.0, %v3266
    %v3268 = vmul.f32 %v3267, 1.0614054
    %v3269 = vadd.f32 %v3268, -1.4531521
    %v3270 = vmul.f32 %v3269, %v3267
    %v3271 = vadd.f32 %v3270, 1.4214138
    %v3272 = vmul.f32 %v3271, %v3267
    %v3273 = vadd.f32 %v3272, -0.28449672
    %v3274 = vmul.f32 %v3273, %v3267
    %v3275 = vadd.f32 %v3274, 0.2548296
    %v3276 = vmul.f32 %v3275, %v3267
    %v3277 = vsub.f32 0.0, %v3263
    %v3278 = vmul.f32 %v3277, %v3263
    %v3279 = vmul.f32 %v3278, 1.442695
    %v3280 = vpow.pop %v3279
    %v3281 = vmul.f32 %v3276, %v3280
    %v3282 = vsub.f32 1.0, %v3281
    %v3283 = vmul.f32 %v3262, %v3282
    %v3284 = vadd.f32 %v3283, 1.0
    %v3285 = vmul.f32 %v3259, %v3284
    %v3286 = vld [vmem:[#allocation7 + $0x100] sm:$0xff]
    %v3287 = vld [vmem:[#allocation7 + $0x108] sm:$0xff]
    %v3288 = vld [vmem:[#allocation7 + $0x110] sm:$0xff]
    %v3289 = vld [vmem:[#allocation7 + $0x118] sm:$0xff]
    %v3290 = vld [vmem:[#allocation7 + $0x120] sm:$0xff]
    %v3291 = vld [vmem:[#allocation7 + $0x128] sm:$0xff]
    %v3292 = vld [vmem:[#allocation7 + $0x130] sm:$0xff]
    %v3293 = vld [vmem:[#allocation7 + $0x138] sm:$0xff]
    %v3294 = vld [vmem:[#allocation7 + $0x140] sm:$0xff]
    %v3295 = vld [vmem:[#allocation7 + $0x148] sm:$0xff]
    %v3296 = vld [vmem:[#allocation7 + $0x150] sm:$0xff]
    %v3297 = vld [vmem:[#allocation7 + $0x158] sm:$0xff]
    %v3298 = vld [vmem:[#allocation7 + $0x169] sm:$0x1]
    %v3299 = vlaneseq
    %v3300 = vshrl.u32 %v3299, 7
    %v3301 = vsub.s32 0, %v3300
    %v3302 = vrot.slane %v3298, %v3301
    %v3304 = vsel %vm2652, %v3285, 0
    %3306 = vmatprep.subr.mxu0 0.0
    %v3307 = vand.u32 %v3286, 4294901760
    %3308 = vmatpush1.msra.mxu0 %v3307
    %3309 = vmatprep.subr.mxu0 0.0
    %v3310 = vand.u32 %v3287, 4294901760
    %3311 = vmatpush1.msra.mxu0 %v3310
    %3312 = vmatprep.subr.mxu0 0.0
    %v3313 = vand.u32 %v3288, 4294901760
    %3314 = vmatpush1.msra.mxu0 %v3313
    %3315 = vmatprep.subr.mxu0 0.0
    %v3316 = vand.u32 %v3289, 4294901760
    %3317 = vmatpush1.msra.mxu0 %v3316
    %3318 = vmatprep.subr.mxu0 0.0
    %v3319 = vand.u32 %v3290, 4294901760
    %3320 = vmatpush1.msra.mxu0 %v3319
    %3321 = vmatprep.subr.mxu0 0.0
    %v3322 = vand.u32 %v3291, 4294901760
    %3323 = vmatpush1.msra.mxu0 %v3322
    %3324 = vmatprep.subr.mxu0 0.0
    %v3325 = vand.u32 %v3292, 4294901760
    %3326 = vmatpush1.msra.mxu0 %v3325
    %3327 = vmatprep.subr.mxu0 0.0
    %v3328 = vand.u32 %v3293, 4294901760
    %3329 = vmatpush1.msra.mxu0 %v3328
    %3330 = vmatprep.subr.mxu0 0.0
    %v3331 = vand.u32 %v3294, 4294901760
    %3332 = vmatpush1.msra.mxu0 %v3331
    %3333 = vmatprep.subr.mxu0 0.0
    %v3334 = vand.u32 %v3295, 4294901760
    %3335 = vmatpush1.msra.mxu0 %v3334
    %3336 = vmatprep.subr.mxu0 0.0
    %v3337 = vand.u32 %v3296, 4294901760
    %3338 = vmatpush1.msra.mxu0 %v3337
    %3339 = vmatprep.subr.mxu0 0.0
    %v3340 = vand.u32 %v3297, 4294901760
    %3341 = vmatpush1.msra.mxu0 %v3340
    %3342 = vmatprep.subr.mxu0 0.0
    %3343 = vmatpush1.msra.mxu0 0.0
    %3344 = vmatprep.subr.mxu0 0.0
    %3345 = vmatpush1.msra.mxu0 0.0
    %3346 = vmatprep.subr.mxu0 0.0
    %3347 = vmatpush1.msra.mxu0 0.0
    %3348 = vmatprep.subr.mxu0 0.0
    %3349 = vmatpush1.msra.mxu0 0.0
    %3350 = vmatprep.subr.mxu0 0.0
    %3351 = vmatpush1.msra.mxu0 0.0
    %3352 = vmatprep.subr.mxu0 0.0
    %3353 = vmatpush1.msra.mxu0 0.0
    %3354 = vmatprep.subr.mxu0 0.0
    %3355 = vmatpush1.msra.mxu0 0.0
    %3356 = vmatprep.subr.mxu0 0.0
    %3357 = vmatpush1.msra.mxu0 0.0
    %3358 = vmatprep.subr.mxu0 0.0
    %3359 = vmatpush1.msra.mxu0 0.0
    %3360 = vmatprep.subr.mxu0 0.0
    %3361 = vmatpush1.msra.mxu0 0.0
    %3362 = vmatprep.subr.mxu0 0.0
    %3363 = vmatpush1.msra.mxu0 0.0
    %3364 = vmatprep.subr.mxu0 0.0
    %3365 = vmatpush1.msra.mxu0 0.0
    %3366 = vmatprep.subr.mxu0 0.0
    %3367 = vmatpush1.msra.mxu0 0.0
    %3368 = vmatprep.subr.mxu0 0.0
    %3369 = vmatpush1.msra.mxu0 0.0
    %3370 = vmatprep.subr.mxu0 0.0
    %3371 = vmatpush1.msra.mxu0 0.0
    %3372 = vmatprep.subr.mxu0 0.0
    %3373 = vmatpush1.msra.mxu0 0.0
    %3374 = vmatprep.subr.mxu0 0.0
    %3375 = vmatpush1.msra.mxu0 0.0
    %3376 = vmatprep.subr.mxu0 0.0
    %3377 = vmatpush1.msra.mxu0 0.0
    %3378 = vmatprep.subr.mxu0 0.0
    %3379 = vmatpush1.msra.mxu0 0.0
    %3380 = vmatprep.subr.mxu0 0.0
    %3381 = vmatpush1.msra.mxu0 0.0
    %3382 = vmatprep.mubr.f32.mxu0 0.0
    %v3383 = vand.u32 %v3304, 4294901760
    %v3384 = vsub.f32 %v3304, %v3383
    %v3385 = vand.u32 %v3384, 4294901760
    %v3386 = vsub.f32 %v3384, %v3385
    %v3387 = vand.u32 %v3386, 4294901760
    %3388 = vmatmul.mubr.f32.gmra.mrb[0].mxu0 %v3387
    %v3389 = vpop.f32.mrb[0].mxu0
    %v3390 = vadd.f32 %v3302, %v3389
    %v3391 = vpop.f32.mrb[0].mxu0
    %3392 = vdwg.mxu0
    %3393 = vmatprep.subr.mxu0 0.0
    %v3394 = vand.u32 %v3286, 4294901760
    %v3395 = vsub.f32 %v3286, %v3394
    %v3396 = vand.u32 %v3395, 4294901760
    %v3397 = vsub.f32 %v3395, %v3396
    %v3398 = vand.u32 %v3397, 4294901760
    %3399 = vmatpush1.msra.mxu0 %v3398
    %3400 = vmatprep.subr.mxu0 0.0
    %v3401 = vand.u32 %v3287, 4294901760
    %v3402 = vsub.f32 %v3287, %v3401
    %v3403 = vand.u32 %v3402, 4294901760
    %v3404 = vsub.f32 %v3402, %v3403
    %v3405 = vand.u32 %v3404, 4294901760
    %3406 = vmatpush1.msra.mxu0 %v3405
    %3407 = vmatprep.subr.mxu0 0.0
    %v3408 = vand.u32 %v3288, 4294901760
    %v3409 = vsub.f32 %v3288, %v3408
    %v3410 = vand.u32 %v3409, 4294901760
    %v3411 = vsub.f32 %v3409, %v3410
    %v3412 = vand.u32 %v3411, 4294901760
    %3413 = vmatpush1.msra.mxu0 %v3412
    %3414 = vmatprep.subr.mxu0 0.0
    %v3415 = vand.u32 %v3289, 4294901760
    %v3416 = vsub.f32 %v3289, %v3415
    %v3417 = vand.u32 %v3416, 4294901760
    %v3418 = vsub.f32 %v3416, %v3417
    %v3419 = vand.u32 %v3418, 4294901760
    %3420 = vmatpush1.msra.mxu0 %v3419
    %3421 = vmatprep.subr.mxu0 0.0
    %v3422 = vand.u32 %v3290, 4294901760
    %v3423 = vsub.f32 %v3290, %v3422
    %v3424 = vand.u32 %v3423, 4294901760
    %v3425 = vsub.f32 %v3423, %v3424
    %v3426 = vand.u32 %v3425, 4294901760
    %3427 = vmatpush1.msra.mxu0 %v3426
    %3428 = vmatprep.subr.mxu0 0.0
    %v3429 = vand.u32 %v3291, 4294901760
    %v3430 = vsub.f32 %v3291, %v3429
    %v3431 = vand.u32 %v3430, 4294901760
    %v3432 = vsub.f32 %v3430, %v3431
    %v3433 = vand.u32 %v3432, 4294901760
    %3434 = vmatpush1.msra.mxu0 %v3433
    %3435 = vmatprep.subr.mxu0 0.0
    %v3436 = vand.u32 %v3292, 4294901760
    %v3437 = vsub.f32 %v3292, %v3436
    %v3438 = vand.u32 %v3437, 4294901760
    %v3439 = vsub.f32 %v3437, %v3438
    %v3440 = vand.u32 %v3439, 4294901760
    %3441 = vmatpush1.msra.mxu0 %v3440
    %3442 = vmatprep.subr.mxu0 0.0
    %v3443 = vand.u32 %v3293, 4294901760
    %v3444 = vsub.f32 %v3293, %v3443
    %v3445 = vand.u32 %v3444, 4294901760
    %v3446 = vsub.f32 %v3444, %v3445
    %v3447 = vand.u32 %v3446, 4294901760
    %3448 = vmatpush1.msra.mxu0 %v3447
    %3449 = vmatprep.subr.mxu0 0.0
    %v3450 = vand.u32 %v3294, 4294901760
    %v3451 = vsub.f32 %v3294, %v3450
    %v3452 = vand.u32 %v3451, 4294901760
    %v3453 = vsub.f32 %v3451, %v3452
    %v3454 = vand.u32 %v3453, 4294901760
    %3455 = vmatpush1.msra.mxu0 %v3454
    %3456 = vmatprep.subr.mxu0 0.0
    %v3457 = vand.u32 %v3295, 4294901760
    %v3458 = vsub.f32 %v3295, %v3457
    %v3459 = vand.u32 %v3458, 4294901760
    %v3460 = vsub.f32 %v3458, %v3459
    %v3461 = vand.u32 %v3460, 4294901760
    %3462 = vmatpush1.msra.mxu0 %v3461
    %3463 = vmatprep.subr.mxu0 0.0
    %v3464 = vand.u32 %v3296, 4294901760
    %v3465 = vsub.f32 %v3296, %v3464
    %v3466 = vand.u32 %v3465, 4294901760
    %v3467 = vsub.f32 %v3465, %v3466
    %v3468 = vand.u32 %v3467, 4294901760
    %3469 = vmatpush1.msra.mxu0 %v3468
    %3470 = vmatprep.subr.mxu0 0.0
    %v3471 = vand.u32 %v3297, 4294901760
    %v3472 = vsub.f32 %v3297, %v3471
    %v3473 = vand.u32 %v3472, 4294901760
    %v3474 = vsub.f32 %v3472, %v3473
    %v3475 = vand.u32 %v3474, 4294901760
    %3476 = vmatpush1.msra.mxu0 %v3475
    %3477 = vmatprep.subr.mxu0 0.0
    %3478 = vmatpush1.msra.mxu0 0.0
    %3479 = vmatprep.subr.mxu0 0.0
    %3480 = vmatpush1.msra.mxu0 0.0
    %3481 = vmatprep.subr.mxu0 0.0
    %3482 = vmatpush1.msra.mxu0 0.0
    %3483 = vmatprep.subr.mxu0 0.0
    %3484 = vmatpush1.msra.mxu0 0.0
    %3485 = vmatprep.subr.mxu0 0.0
    %3486 = vmatpush1.msra.mxu0 0.0
    %3487 = vmatprep.subr.mxu0 0.0
    %3488 = vmatpush1.msra.mxu0 0.0
    %3489 = vmatprep.subr.mxu0 0.0
    %3490 = vmatpush1.msra.mxu0 0.0
    %3491 = vmatprep.subr.mxu0 0.0
    %3492 = vmatpush1.msra.mxu0 0.0
    %3493 = vmatprep.subr.mxu0 0.0
    %3494 = vmatpush1.msra.mxu0 0.0
    %3495 = vmatprep.subr.mxu0 0.0
    %3496 = vmatpush1.msra.mxu0 0.0
    %3497 = vmatprep.subr.mxu0 0.0
    %3498 = vmatpush1.msra.mxu0 0.0
    %3499 = vmatprep.subr.mxu0 0.0
    %3500 = vmatpush1.msra.mxu0 0.0
    %3501 = vmatprep.subr.mxu0 0.0
    %3502 = vmatpush1.msra.mxu0 0.0
    %3503 = vmatprep.subr.mxu0 0.0
    %3504 = vmatpush1.msra.mxu0 0.0
    %3505 = vmatprep.subr.mxu0 0.0
    %3506 = vmatpush1.msra.mxu0 0.0
    %3507 = vmatprep.subr.mxu0 0.0
    %3508 = vmatpush1.msra.mxu0 0.0
    %3509 = vmatprep.subr.mxu0 0.0
    %3510 = vmatpush1.msra.mxu0 0.0
    %3511 = vmatprep.subr.mxu0 0.0
    %3512 = vmatpush1.msra.mxu0 0.0
    %3513 = vmatprep.subr.mxu0 0.0
    %3514 = vmatpush1.msra.mxu0 0.0
    %3515 = vmatprep.subr.mxu0 0.0
    %3516 = vmatpush1.msra.mxu0 0.0
    %3517 = vmatprep.mubr.f32.mxu0 0.0
    %v3518 = vand.u32 %v3304, 4294901760
    %3519 = vmatmul.mubr.f32.gmra.mrb[0].mxu0 %v3518
    %v3520 = vpop.f32.mrb[0].mxu0
    %v3521 = vadd.f32 %v3390, %v3520
    %v3522 = vpop.f32.mrb[0].mxu0
    %3523 = vdwg.mxu0
    %3524 = vmatprep.subr.mxu0 0.0
    %v3525 = vand.u32 %v3286, 4294901760
    %v3526 = vsub.f32 %v3286, %v3525
    %3527 = vmatpush1.msra.mxu0 %v3526
    %3528 = vmatprep.subr.mxu0 0.0
    %v3529 = vand.u32 %v3287, 4294901760
    %v3530 = vsub.f32 %v3287, %v3529
    %3531 = vmatpush1.msra.mxu0 %v3530
    %3532 = vmatprep.subr.mxu0 0.0
    %v3533 = vand.u32 %v3288, 4294901760
    %v3534 = vsub.f32 %v3288, %v3533
    %3535 = vmatpush1.msra.mxu0 %v3534
    %3536 = vmatprep.subr.mxu0 0.0
    %v3537 = vand.u32 %v3289, 4294901760
    %v3538 = vsub.f32 %v3289, %v3537
    %3539 = vmatpush1.msra.mxu0 %v3538
    %3540 = vmatprep.subr.mxu0 0.0
    %v3541 = vand.u32 %v3290, 4294901760
    %v3542 = vsub.f32 %v3290, %v3541
    %3543 = vmatpush1.msra.mxu0 %v3542
    %3544 = vmatprep.subr.mxu0 0.0
    %v3545 = vand.u32 %v3291, 4294901760
    %v3546 = vsub.f32 %v3291, %v3545
    %3547 = vmatpush1.msra.mxu0 %v3546
    %3548 = vmatprep.subr.mxu0 0.0
    %v3549 = vand.u32 %v3292, 4294901760
    %v3550 = vsub.f32 %v3292, %v3549
    %3551 = vmatpush1.msra.mxu0 %v3550
    %3552 = vmatprep.subr.mxu0 0.0
    %v3553 = vand.u32 %v3293, 4294901760
    %v3554 = vsub.f32 %v3293, %v3553
    %3555 = vmatpush1.msra.mxu0 %v3554
    %3556 = vmatprep.subr.mxu0 0.0
    %v3557 = vand.u32 %v3294, 4294901760
    %v3558 = vsub.f32 %v3294, %v3557
    %3559 = vmatpush1.msra.mxu0 %v3558
    %3560 = vmatprep.subr.mxu0 0.0
    %v3561 = vand.u32 %v3295, 4294901760
    %v3562 = vsub.f32 %v3295, %v3561
    %3563 = vmatpush1.msra.mxu0 %v3562
    %3564 = vmatprep.subr.mxu0 0.0
    %v3565 = vand.u32 %v3296, 4294901760
    %v3566 = vsub.f32 %v3296, %v3565
    %3567 = vmatpush1.msra.mxu0 %v3566
    %3568 = vmatprep.subr.mxu0 0.0
    %v3569 = vand.u32 %v3297, 4294901760
    %v3570 = vsub.f32 %v3297, %v3569
    %3571 = vmatpush1.msra.mxu0 %v3570
    %3572 = vmatprep.subr.mxu0 0.0
    %3573 = vmatpush1.msra.mxu0 0.0
    %3574 = vmatprep.subr.mxu0 0.0
    %3575 = vmatpush1.msra.mxu0 0.0
    %3576 = vmatprep.subr.mxu0 0.0
    %3577 = vmatpush1.msra.mxu0 0.0
    %3578 = vmatprep.subr.mxu0 0.0
    %3579 = vmatpush1.msra.mxu0 0.0
    %3580 = vmatprep.subr.mxu0 0.0
    %3581 = vmatpush1.msra.mxu0 0.0
    %3582 = vmatprep.subr.mxu0 0.0
    %3583 = vmatpush1.msra.mxu0 0.0
    %3584 = vmatprep.subr.mxu0 0.0
    %3585 = vmatpush1.msra.mxu0 0.0
    %3586 = vmatprep.subr.mxu0 0.0
    %3587 = vmatpush1.msra.mxu0 0.0
    %3588 = vmatprep.subr.mxu0 0.0
    %3589 = vmatpush1.msra.mxu0 0.0
    %3590 = vmatprep.subr.mxu0 0.0
    %3591 = vmatpush1.msra.mxu0 0.0
    %3592 = vmatprep.subr.mxu0 0.0
    %3593 = vmatpush1.msra.mxu0 0.0
    %3594 = vmatprep.subr.mxu0 0.0
    %3595 = vmatpush1.msra.mxu0 0.0
    %3596 = vmatprep.subr.mxu0 0.0
    %3597 = vmatpush1.msra.mxu0 0.0
    %3598 = vmatprep.subr.mxu0 0.0
    %3599 = vmatpush1.msra.mxu0 0.0
    %3600 = vmatprep.subr.mxu0 0.0
    %3601 = vmatpush1.msra.mxu0 0.0
    %3602 = vmatprep.subr.mxu0 0.0
    %3603 = vmatpush1.msra.mxu0 0.0
    %3604 = vmatprep.subr.mxu0 0.0
    %3605 = vmatpush1.msra.mxu0 0.0
    %3606 = vmatprep.subr.mxu0 0.0
    %3607 = vmatpush1.msra.mxu0 0.0
    %3608 = vmatprep.subr.mxu0 0.0
    %3609 = vmatpush1.msra.mxu0 0.0
    %3610 = vmatprep.subr.mxu0 0.0
    %3611 = vmatpush1.msra.mxu0 0.0
    %3612 = vmatprep.mubr.f32.mxu0 0.0
    %v3613 = vand.u32 %v3304, 4294901760
    %v3614 = vsub.f32 %v3304, %v3613
    %3615 = vmatmul.mubr.f32.gmra.mrb[0].mxu0 %v3614
    %v3616 = vpop.f32.mrb[0].mxu0
    %v3617 = vadd.f32 %v3521, %v3616
    %v3618 = vpop.f32.mrb[0].mxu0
    %3619 = vdwg.mxu0
    %3620 = vmatprep.subr.mxu0 0.0
    %v3621 = vand.u32 %v3286, 4294901760
    %3622 = vmatpush1.msra.mxu0 %v3621
    %3623 = vmatprep.subr.mxu0 0.0
    %v3624 = vand.u32 %v3287, 4294901760
    %3625 = vmatpush1.msra.mxu0 %v3624
    %3626 = vmatprep.subr.mxu0 0.0
    %v3627 = vand.u32 %v3288, 4294901760
    %3628 = vmatpush1.msra.mxu0 %v3627
    %3629 = vmatprep.subr.mxu0 0.0
    %v3630 = vand.u32 %v3289, 4294901760
    %3631 = vmatpush1.msra.mxu0 %v3630
    %3632 = vmatprep.subr.mxu0 0.0
    %v3633 = vand.u32 %v3290, 4294901760
    %3634 = vmatpush1.msra.mxu0 %v3633
    %3635 = vmatprep.subr.mxu0 0.0
    %v3636 = vand.u32 %v3291, 4294901760
    %3637 = vmatpush1.msra.mxu0 %v3636
    %3638 = vmatprep.subr.mxu0 0.0
    %v3639 = vand.u32 %v3292, 4294901760
    %3640 = vmatpush1.msra.mxu0 %v3639
    %3641 = vmatprep.subr.mxu0 0.0
    %v3642 = vand.u32 %v3293, 4294901760
    %3643 = vmatpush1.msra.mxu0 %v3642
    %3644 = vmatprep.subr.mxu0 0.0
    %v3645 = vand.u32 %v3294, 4294901760
    %3646 = vmatpush1.msra.mxu0 %v3645
    %3647 = vmatprep.subr.mxu0 0.0
    %v3648 = vand.u32 %v3295, 4294901760
    %3649 = vmatpush1.msra.mxu0 %v3648
    %3650 = vmatprep.subr.mxu0 0.0
    %v3651 = vand.u32 %v3296, 4294901760
    %3652 = vmatpush1.msra.mxu0 %v3651
    %3653 = vmatprep.subr.mxu0 0.0
    %v3654 = vand.u32 %v3297, 4294901760
    %3655 = vmatpush1.msra.mxu0 %v3654
    %3656 = vmatprep.subr.mxu0 0.0
    %3657 = vmatpush1.msra.mxu0 0.0
    %3658 = vmatprep.subr.mxu0 0.0
    %3659 = vmatpush1.msra.mxu0 0.0
    %3660 = vmatprep.subr.mxu0 0.0
    %3661 = vmatpush1.msra.mxu0 0.0
    %3662 = vmatprep.subr.mxu0 0.0
    %3663 = vmatpush1.msra.mxu0 0.0
    %3664 = vmatprep.subr.mxu0 0.0
    %3665 = vmatpush1.msra.mxu0 0.0
    %3666 = vmatprep.subr.mxu0 0.0
    %3667 = vmatpush1.msra.mxu0 0.0
    %3668 = vmatprep.subr.mxu0 0.0
    %3669 = vmatpush1.msra.mxu0 0.0
    %3670 = vmatprep.subr.mxu0 0.0
    %3671 = vmatpush1.msra.mxu0 0.0
    %3672 = vmatprep.subr.mxu0 0.0
    %3673 = vmatpush1.msra.mxu0 0.0
    %3674 = vmatprep.subr.mxu0 0.0
    %3675 = vmatpush1.msra.mxu0 0.0
    %3676 = vmatprep.subr.mxu0 0.0
    %3677 = vmatpush1.msra.mxu0 0.0
    %3678 = vmatprep.subr.mxu0 0.0
    %3679 = vmatpush1.msra.mxu0 0.0
    %3680 = vmatprep.subr.mxu0 0.0
    %3681 = vmatpush1.msra.mxu0 0.0
    %3682 = vmatprep.subr.mxu0 0.0
    %3683 = vmatpush1.msra.mxu0 0.0
    %3684 = vmatprep.subr.mxu0 0.0
    %3685 = vmatpush1.msra.mxu0 0.0
    %3686 = vmatprep.subr.mxu0 0.0
    %3687 = vmatpush1.msra.mxu0 0.0
    %3688 = vmatprep.subr.mxu0 0.0
    %3689 = vmatpush1.msra.mxu0 0.0
    %3690 = vmatprep.subr.mxu0 0.0
    %3691 = vmatpush1.msra.mxu0 0.0
    %3692 = vmatprep.subr.mxu0 0.0
    %3693 = vmatpush1.msra.mxu0 0.0
    %3694 = vmatprep.subr.mxu0 0.0
    %3695 = vmatpush1.msra.mxu0 0.0
    %3696 = vmatprep.mubr.f32.mxu0 0.0
    %v3697 = vand.u32 %v3304, 4294901760
    %v3698 = vsub.f32 %v3304, %v3697
    %v3699 = vand.u32 %v3698, 4294901760
    %3700 = vmatmul.mubr.f32.gmra.mrb[0].mxu0 %v3699
    %v3701 = vpop.f32.mrb[0].mxu0
    %v3702 = vadd.f32 %v3617, %v3701
    %v3703 = vpop.f32.mrb[0].mxu0
    %3704 = vdwg.mxu0
    %3705 = vmatprep.subr.mxu0 0.0
    %v3706 = vand.u32 %v3286, 4294901760
    %v3707 = vsub.f32 %v3286, %v3706
    %v3708 = vand.u32 %v3707, 4294901760
    %3709 = vmatpush1.msra.mxu0 %v3708
    %3710 = vmatprep.subr.mxu0 0.0
    %v3711 = vand.u32 %v3287, 4294901760
    %v3712 = vsub.f32 %v3287, %v3711
    %v3713 = vand.u32 %v3712, 4294901760
    %3714 = vmatpush1.msra.mxu0 %v3713
    %3715 = vmatprep.subr.mxu0 0.0
    %v3716 = vand.u32 %v3288, 4294901760
    %v3717 = vsub.f32 %v3288, %v3716
    %v3718 = vand.u32 %v3717, 4294901760
    %3719 = vmatpush1.msra.mxu0 %v3718
    %3720 = vmatprep.subr.mxu0 0.0
    %v3721 = vand.u32 %v3289, 4294901760
    %v3722 = vsub.f32 %v3289, %v3721
    %v3723 = vand.u32 %v3722, 4294901760
    %3724 = vmatpush1.msra.mxu0 %v3723
    %3725 = vmatprep.subr.mxu0 0.0
    %v3726 = vand.u32 %v3290, 4294901760
    %v3727 = vsub.f32 %v3290, %v3726
    %v3728 = vand.u32 %v3727, 4294901760
    %3729 = vmatpush1.msra.mxu0 %v3728
    %3730 = vmatprep.subr.mxu0 0.0
    %v3731 = vand.u32 %v3291, 4294901760
    %v3732 = vsub.f32 %v3291, %v3731
    %v3733 = vand.u32 %v3732, 4294901760
    %3734 = vmatpush1.msra.mxu0 %v3733
    %3735 = vmatprep.subr.mxu0 0.0
    %v3736 = vand.u32 %v3292, 4294901760
    %v3737 = vsub.f32 %v3292, %v3736
    %v3738 = vand.u32 %v3737, 4294901760
    %3739 = vmatpush1.msra.mxu0 %v3738
    %3740 = vmatprep.subr.mxu0 0.0
    %v3741 = vand.u32 %v3293, 4294901760
    %v3742 = vsub.f32 %v3293, %v3741
    %v3743 = vand.u32 %v3742, 4294901760
    %3744 = vmatpush1.msra.mxu0 %v3743
    %3745 = vmatprep.subr.mxu0 0.0
    %v3746 = vand.u32 %v3294, 4294901760
    %v3747 = vsub.f32 %v3294, %v3746
    %v3748 = vand.u32 %v3747, 4294901760
    %3749 = vmatpush1.msra.mxu0 %v3748
    %3750 = vmatprep.subr.mxu0 0.0
    %v3751 = vand.u32 %v3295, 4294901760
    %v3752 = vsub.f32 %v3295, %v3751
    %v3753 = vand.u32 %v3752, 4294901760
    %3754 = vmatpush1.msra.mxu0 %v3753
    %3755 = vmatprep.subr.mxu0 0.0
    %v3756 = vand.u32 %v3296, 4294901760
    %v3757 = vsub.f32 %v3296, %v3756
    %v3758 = vand.u32 %v3757, 4294901760
    %3759 = vmatpush1.msra.mxu0 %v3758
    %3760 = vmatprep.subr.mxu0 0.0
    %v3761 = vand.u32 %v3297, 4294901760
    %v3762 = vsub.f32 %v3297, %v3761
    %v3763 = vand.u32 %v3762, 4294901760
    %3764 = vmatpush1.msra.mxu0 %v3763
    %3765 = vmatprep.subr.mxu0 0.0
    %3766 = vmatpush1.msra.mxu0 0.0
    %3767 = vmatprep.subr.mxu0 0.0
    %3768 = vmatpush1.msra.mxu0 0.0
    %3769 = vmatprep.subr.mxu0 0.0
    %3770 = vmatpush1.msra.mxu0 0.0
    %3771 = vmatprep.subr.mxu0 0.0
    %3772 = vmatpush1.msra.mxu0 0.0
    %3773 = vmatprep.subr.mxu0 0.0
    %3774 = vmatpush1.msra.mxu0 0.0
    %3775 = vmatprep.subr.mxu0 0.0
    %3776 = vmatpush1.msra.mxu0 0.0
    %3777 = vmatprep.subr.mxu0 0.0
    %3778 = vmatpush1.msra.mxu0 0.0
    %3779 = vmatprep.subr.mxu0 0.0
    %3780 = vmatpush1.msra.mxu0 0.0
    %3781 = vmatprep.subr.mxu0 0.0
    %3782 = vmatpush1.msra.mxu0 0.0
    %3783 = vmatprep.subr.mxu0 0.0
    %3784 = vmatpush1.msra.mxu0 0.0
    %3785 = vmatprep.subr.mxu0 0.0
    %3786 = vmatpush1.msra.mxu0 0.0
    %3787 = vmatprep.subr.mxu0 0.0
    %3788 = vmatpush1.msra.mxu0 0.0
    %3789 = vmatprep.subr.mxu0 0.0
    %3790 = vmatpush1.msra.mxu0 0.0
    %3791 = vmatprep.subr.mxu0 0.0
    %3792 = vmatpush1.msra.mxu0 0.0
    %3793 = vmatprep.subr.mxu0 0.0
    %3794 = vmatpush1.msra.mxu0 0.0
    %3795 = vmatprep.subr.mxu0 0.0
    %3796 = vmatpush1.msra.mxu0 0.0
    %3797 = vmatprep.subr.mxu0 0.0
    %3798 = vmatpush1.msra.mxu0 0.0
    %3799 = vmatprep.subr.mxu0 0.0
    %3800 = vmatpush1.msra.mxu0 0.0
    %3801 = vmatprep.subr.mxu0 0.0
    %3802 = vmatpush1.msra.mxu0 0.0
    %3803 = vmatprep.subr.mxu0 0.0
    %3804 = vmatpush1.msra.mxu0 0.0
    %3805 = vmatprep.mubr.f32.mxu0 0.0
    %v3806 = vand.u32 %v3304, 4294901760
    %3807 = vmatmul.mubr.f32.gmra.mrb[0].mxu0 %v3806
    %v3808 = vpop.f32.mrb[0].mxu0
    %v3809 = vadd.f32 %v3702, %v3808
    %v3810 = vpop.f32.mrb[0].mxu0
    %3811 = vdwg.mxu0
    %3812 = vmatprep.subr.mxu0 0.0
    %v3813 = vand.u32 %v3286, 4294901760
    %3814 = vmatpush1.msra.mxu0 %v3813
    %3815 = vmatprep.subr.mxu0 0.0
    %v3816 = vand.u32 %v3287, 4294901760
    %3817 = vmatpush1.msra.mxu0 %v3816
    %3818 = vmatprep.subr.mxu0 0.0
    %v3819 = vand.u32 %v3288, 4294901760
    %3820 = vmatpush1.msra.mxu0 %v3819
    %3821 = vmatprep.subr.mxu0 0.0
    %v3822 = vand.u32 %v3289, 4294901760
    %3823 = vmatpush1.msra.mxu0 %v3822
    %3824 = vmatprep.subr.mxu0 0.0
    %v3825 = vand.u32 %v3290, 4294901760
    %3826 = vmatpush1.msra.mxu0 %v3825
    %3827 = vmatprep.subr.mxu0 0.0
    %v3828 = vand.u32 %v3291, 4294901760
    %3829 = vmatpush1.msra.mxu0 %v3828
    %3830 = vmatprep.subr.mxu0 0.0
    %v3831 = vand.u32 %v3292, 4294901760
    %3832 = vmatpush1.msra.mxu0 %v3831
    %3833 = vmatprep.subr.mxu0 0.0
    %v3834 = vand.u32 %v3293, 4294901760
    %3835 = vmatpush1.msra.mxu0 %v3834
    %3836 = vmatprep.subr.mxu0 0.0
    %v3837 = vand.u32 %v3294, 4294901760
    %3838 = vmatpush1.msra.mxu0 %v3837
    %3839 = vmatprep.subr.mxu0 0.0
    %v3840 = vand.u32 %v3295, 4294901760
    %3841 = vmatpush1.msra.mxu0 %v3840
    %3842 = vmatprep.subr.mxu0 0.0
    %v3843 = vand.u32 %v3296, 4294901760
    %3844 = vmatpush1.msra.mxu0 %v3843
    %3845 = vmatprep.subr.mxu0 0.0
    %v3846 = vand.u32 %v3297, 4294901760
    %3847 = vmatpush1.msra.mxu0 %v3846
    %3848 = vmatprep.subr.mxu0 0.0
    %3849 = vmatpush1.msra.mxu0 0.0
    %3850 = vmatprep.subr.mxu0 0.0
    %3851 = vmatpush1.msra.mxu0 0.0
    %3852 = vmatprep.subr.mxu0 0.0
    %3853 = vmatpush1.msra.mxu0 0.0
    %3854 = vmatprep.subr.mxu0 0.0
    %3855 = vmatpush1.msra.mxu0 0.0
    %3856 = vmatprep.subr.mxu0 0.0
    %3857 = vmatpush1.msra.mxu0 0.0
    %3858 = vmatprep.subr.mxu0 0.0
    %3859 = vmatpush1.msra.mxu0 0.0
    %3860 = vmatprep.subr.mxu0 0.0
    %3861 = vmatpush1.msra.mxu0 0.0
    %3862 = vmatprep.subr.mxu0 0.0
    %3863 = vmatpush1.msra.mxu0 0.0
    %3864 = vmatprep.subr.mxu0 0.0
    %3865 = vmatpush1.msra.mxu0 0.0
    %3866 = vmatprep.subr.mxu0 0.0
    %3867 = vmatpush1.msra.mxu0 0.0
    %3868 = vmatprep.subr.mxu0 0.0
    %3869 = vmatpush1.msra.mxu0 0.0
    %3870 = vmatprep.subr.mxu0 0.0
    %3871 = vmatpush1.msra.mxu0 0.0
    %3872 = vmatprep.subr.mxu0 0.0
    %3873 = vmatpush1.msra.mxu0 0.0
    %3874 = vmatprep.subr.mxu0 0.0
    %3875 = vmatpush1.msra.mxu0 0.0
    %3876 = vmatprep.subr.mxu0 0.0
    %3877 = vmatpush1.msra.mxu0 0.0
    %3878 = vmatprep.subr.mxu0 0.0
    %3879 = vmatpush1.msra.mxu0 0.0
    %3880 = vmatprep.subr.mxu0 0.0
    %3881 = vmatpush1.msra.mxu0 0.0
    %3882 = vmatprep.subr.mxu0 0.0
    %3883 = vmatpush1.msra.mxu0 0.0
    %3884 = vmatprep.subr.mxu0 0.0
    %3885 = vmatpush1.msra.mxu0 0.0
    %3886 = vmatprep.subr.mxu0 0.0
    %3887 = vmatpush1.msra.mxu0 0.0
    %3888 = vmatprep.mubr.f32.mxu0 0.0
    %v3889 = vand.u32 %v3304, 4294901760
    %3890 = vmatmul.mubr.f32.gmra.mrb[0].mxu0 %v3889
    %v3891 = vpop.f32.mrb[0].mxu0
    %v3892 = vadd.f32 %v3809, %v3891
    %v3893 = vpop.f32.mrb[0].mxu0
    %3894 = vdwg.mxu0
    %3895 = vst [vmem:[#allocation8] sm:$0xff] %v3892
    // Predicated region
    $region26: #{tpu_custom_call.1} parent=1 // pred_check
      _
    $region27: #{tpu_custom_call.1} parent=1 // pred_check_branch
      %3897 = sbr.rel (0) target = $region29
    $region28: #{tpu_custom_call.1} parent=1 // pred_region
      %s3899 = ssub.s32 128, 128
      %3900 = vsyncadd [#allocation4], %s3899
      %s3902 = sshll.u32 [#allocation8], 4
      %s3903 = int_to_ptr.vmem [resolvable:$true] %s3902
      %3905 = dma.vmem_to_hbm [thread:$0]  %s3903, 128, %s3, [#allocation4]
    $region29: #{tpu_custom_call.1} parent=1 // pred_fallthru
      _
    // Predicated region
    $region30: #{tpu_custom_call.1} parent=1 // pred_check
      _
    $region31: #{tpu_custom_call.1} parent=1 // pred_check_branch
      %3907 = sbr.rel (0) target = $region33
    $region32: #{tpu_custom_call.1} parent=1 // pred_region
      %3908 = dma.done [#allocation4], 128
    $region33: #{tpu_custom_call.1} parent=1 // pred_fallthru
      _
    %3909 = vsyncpa [#allocation3], 1
    %3910 = vsyncpa [#allocation6], 1
    %3911 = vsyncpa [#allocation4], 1

</llo_original>
